<compile_context>
chip_gen: v7x
topology: tpu7x:2x2x1
jax: 0.10.0
libtpu: 0.0.40
codegen_flags: <defaults>
</compile_context>

<pallas_src>
import jax
import jax.numpy as jnp
from jax.experimental import pallas as pl
from jax.experimental.pallas import tpu as pltpu

LEAKY_SLOPE = 0.01  # torch.nn.LeakyReLU default negative_slope


def _leaky_relu(x):
    return jnp.where(x > 0, x, LEAKY_SLOPE * x)


def _round_up(x, m):
    return ((x + m - 1) // m) * m


def discriminator_kernel(x_ref,
                         w1_ref, b1_ref,
                         w2_ref, b2_ref,
                         w3_ref, b3_ref,
                         w4_ref, b4_ref,
                         o_ref):
    # One batch tile per grid step; all weights fully resident in VMEM.
    x = x_ref[...]

    h = jnp.dot(x, w1_ref[...], preferred_element_type=jnp.float32) + b1_ref[...]
    h = _leaky_relu(h)

    h = jnp.dot(h, w2_ref[...], preferred_element_type=jnp.float32) + b2_ref[...]
    h = _leaky_relu(h)

    h = jnp.dot(h, w3_ref[...], preferred_element_type=jnp.float32) + b3_ref[...]
    h = _leaky_relu(h)

    # Final 256 -> 1 layer: N=1 matmul wastes the MXU; do it on the VPU (mul) + XLU
    # (lane reduce) instead. w4_ref is (1, H3), broadcasts across the batch rows.
    logits = jnp.sum(h * w4_ref[...], axis=-1, keepdims=True) + b4_ref[...]

    # sigmoid = 1 / (1 + exp(-logits)); both exp and the approx reciprocal go to the EUP.
    o_ref[...] = pl.reciprocal(1.0 + jnp.exp(-logits), approx=True)


def discriminator_forward(x, params, *, batch_tile=256):
    """x: (B, D) float32. params: dict of w1..w4 (in,out) and b1..b4 (1,out)."""
    B, D = x.shape
    w1, b1 = params["w1"], params["b1"]
    w2, b2 = params["w2"], params["b2"]
    w3, b3 = params["w3"], params["b3"]
    w4, b4 = params["w4"], params["b4"]

    # Derive layer sizes from the params themselves.
    assert w1.shape[0] == D, f"d_input_dim mismatch: x has {D}, w1 expects {w1.shape[0]}"
    H1 = w1.shape[1]
    H2 = w2.shape[1]
    H3 = w3.shape[1]
    H4 = w4.shape[1]
    assert w2.shape[0] == H1 and w3.shape[0] == H2 and w4.shape[0] == H3

    # Effective batch tile: MXU-friendly (>=128 rows) whenever possible, never larger
    # than the (padded) batch. Large batches keep multiple "parallel" grid steps so
    # v7x can shard them across both TensorCores.
    if B >= batch_tile:
        tile = batch_tile
    else:
        tile = min(batch_tile, max(8, _round_up(B, 128)))

    B_pad = _round_up(B, tile)
    x_pad = x if B_pad == B else jnp.pad(x, ((0, B_pad - B), (0, 0)))

    grid = (B_pad // tile,)

    # Last layer as a lane-dense row vector for the VPU reduction.
    w4_row = w4.reshape(1, H3)

    def x_map(i):
        return (i, 0)

    def full_map(i):
        return (0, 0)

    # Explicit VMEM budget: double-buffered weights + batch-tile activations + headroom.
    # Never reduce below the 32 MiB scoped default.
    weight_bytes = 4 * (D * H1 + H1 + H1 * H2 + H2 + H2 * H3 + H3 + H3 + H4)
    act_bytes = 4 * tile * (D + H1 + H2 + H3 + H4)
    vmem_limit = int(min(
        100 * 2**20,
        max(32 * 2**20, 2 * weight_bytes + 4 * act_bytes + (8 << 20)),
    ))

    out = pl.pallas_call(
        discriminator_kernel,
        out_shape=jax.ShapeDtypeStruct((B_pad, H4), jnp.float32),
        grid_spec=pltpu.PrefetchScalarGridSpec(
            num_scalar_prefetch=0,
            grid=grid,
            in_specs=[
                pl.BlockSpec((tile, D), x_map),
                pl.BlockSpec((D, H1), full_map),
                pl.BlockSpec((1, H1), full_map),
                pl.BlockSpec((H1, H2), full_map),
                pl.BlockSpec((1, H2), full_map),
                pl.BlockSpec((H2, H3), full_map),
                pl.BlockSpec((1, H3), full_map),
                pl.BlockSpec((1, H3), full_map),   # w4 as a row vector
                pl.BlockSpec((1, H4), full_map),
            ],
            out_specs=pl.BlockSpec((tile, H4), x_map),
        ),
        compiler_params=pltpu.CompilerParams(
            dimension_semantics=("parallel",),
            vmem_limit_bytes=vmem_limit,
        ),
    )(x_pad, w1, b1, w2, b2, w3, b3, w4_row, b4)

    return out[:B] if B_pad != B else out


def init_params(key, d_input_dim):
    """Deterministic init mimicking torch.nn.Linear (uniform +-1/sqrt(fan_in))."""
    dims = [(d_input_dim, 1024), (1024, 512), (512, 256), (256, 1)]
    params = {}
    for idx, (fan_in, fan_out) in enumerate(dims, start=1):
        key, kw, kb = jax.random.split(key, 3)
        bound = 1.0 / jnp.sqrt(float(fan_in))
        params[f"w{idx}"] = jax.random.uniform(
            kw, (fan_in, fan_out), jnp.float32, -bound, bound)
        params[f"b{idx}"] = jax.random.uniform(
            kb, (1, fan_out), jnp.float32, -bound, bound)
    return params


def discriminator_ref(x, params):
    h = x
    for i in range(1, 4):
        h = h @ params[f"w{i}"] + params[f"b{i}"]
        h = jnp.where(h > 0, h, LEAKY_SLOPE * h)
    logits = h @ params["w4"] + params["b4"]
    return jax.nn.sigmoid(logits)


if __name__ == "__main__":
    key = jax.random.PRNGKey(0)
    k_params, k_x = jax.random.split(key)

    B, D = 8, 128  # small batch, d_input_dim = 128 (wrapper pads batch internally)
    params = init_params(k_params, D)
    x = jax.random.normal(k_x, (B, D), dtype=jnp.float32)

    out = discriminator_forward(x, params)
    out = jax.block_until_ready(out)

    ref = discriminator_ref(x, params)
    assert out.shape == (B, 1)
    max_err = jnp.max(jnp.abs(out - ref))
    # Approx-reciprocal sigmoid: allow a slightly looser (but still tight) tolerance.
    assert jnp.allclose(out, ref, atol=2e-3, rtol=2e-3), f"max abs err {max_err}"

    print("KERNEL_OK")
</pallas_src>

<mosaic_0001>
module attributes {stable_mosaic.version = 11 : i64} {
  func.func @discriminator_kernel(%arg0: i32, %arg1: memref<128x128xf32, #tpu.memory_space<vmem>>, %arg2: memref<128x1024xf32, #tpu.memory_space<vmem>>, %arg3: memref<1x1024xf32, #tpu.memory_space<vmem>>, %arg4: memref<1024x512xf32, #tpu.memory_space<vmem>>, %arg5: memref<1x512xf32, #tpu.memory_space<vmem>>, %arg6: memref<512x256xf32, #tpu.memory_space<vmem>>, %arg7: memref<1x256xf32, #tpu.memory_space<vmem>>, %arg8: memref<1x256xf32, #tpu.memory_space<vmem>>, %arg9: memref<1x1xf32, #tpu.memory_space<vmem>>, %arg10: memref<128x1xf32, #tpu.memory_space<vmem>>) attributes {dimension_semantics = [#tpu.dimension_semantics<parallel>], iteration_bounds = array<i64: 1>, scalar_prefetch = 0 : i64, scratch_operands = 0 : i64, tpu.core_type = #tpu.core_type<tc>, window_params = [{transform_indices = @transform_0, window_bounds = array<i64: 128, 128>}, {pipeline_mode = #tpu.pipeline_mode<synchronous>, transform_indices = @transform_1, window_bounds = array<i64: 128, 1024>}, {pipeline_mode = #tpu.pipeline_mode<synchronous>, transform_indices = @transform_2, window_bounds = array<i64: 1, 1024>}, {pipeline_mode = #tpu.pipeline_mode<synchronous>, transform_indices = @transform_3, window_bounds = array<i64: 1024, 512>}, {pipeline_mode = #tpu.pipeline_mode<synchronous>, transform_indices = @transform_4, window_bounds = array<i64: 1, 512>}, {pipeline_mode = #tpu.pipeline_mode<synchronous>, transform_indices = @transform_5, window_bounds = array<i64: 512, 256>}, {pipeline_mode = #tpu.pipeline_mode<synchronous>, transform_indices = @transform_6, window_bounds = array<i64: 1, 256>}, {pipeline_mode = #tpu.pipeline_mode<synchronous>, transform_indices = @transform_7, window_bounds = array<i64: 1, 256>}, {pipeline_mode = #tpu.pipeline_mode<synchronous>, transform_indices = @transform_8, window_bounds = array<i64: 1, 1>}, {transform_indices = @transform_9, window_bounds = array<i64: 128, 1>}]} {
    %c0 = arith.constant 0 : index
    %c0_0 = arith.constant 0 : index
    %0 = vector.load %arg1[%c0, %c0_0] : memref<128x128xf32, #tpu.memory_space<vmem>>, vector<128x128xf32>
    %c0_1 = arith.constant 0 : index
    %c0_2 = arith.constant 0 : index
    %1 = vector.load %arg2[%c0_1, %c0_2] : memref<128x1024xf32, #tpu.memory_space<vmem>>, vector<128x1024xf32>
    %cst = arith.constant dense<0.000000e+00> : vector<128x1024xf32>
    %2 = tpu.matmul %0, %1, %cst {dimension_numbers = #tpu.dot_dimension_numbers<[1], [0], [0], [1], [0, 0, 1, 1], [], []>} : vector<128x128xf32>, vector<128x1024xf32>, vector<128x1024xf32> -> vector<128x1024xf32>
    %c0_3 = arith.constant 0 : index
    %c0_4 = arith.constant 0 : index
    %3 = vector.load %arg3[%c0_3, %c0_4] : memref<1x1024xf32, #tpu.memory_space<vmem>>, vector<1x1024xf32>
    %4 = vector.broadcast %3 : vector<1x1024xf32> to vector<128x1024xf32>
    %5 = arith.addf %2, %4 : vector<128x1024xf32>
    %cst_5 = arith.constant 0.000000e+00 : f32
    %6 = vector.broadcast %cst_5 : f32 to vector<128x1024xf32>
    %7 = arith.cmpf ogt, %5, %6 : vector<128x1024xf32>
    %cst_6 = arith.constant 0.00999999977 : f32
    %8 = vector.broadcast %cst_6 : f32 to vector<128x1024xf32>
    %9 = arith.mulf %8, %5 : vector<128x1024xf32>
    %10 = arith.select %7, %5, %9 : vector<128x1024xi1>, vector<128x1024xf32>
    %c0_7 = arith.constant 0 : index
    %c0_8 = arith.constant 0 : index
    %11 = vector.load %arg4[%c0_7, %c0_8] : memref<1024x512xf32, #tpu.memory_space<vmem>>, vector<1024x512xf32>
    %cst_9 = arith.constant dense<0.000000e+00> : vector<128x512xf32>
    %12 = tpu.matmul %10, %11, %cst_9 {dimension_numbers = #tpu.dot_dimension_numbers<[1], [0], [0], [1], [0, 0, 1, 1], [], []>} : vector<128x1024xf32>, vector<1024x512xf32>, vector<128x512xf32> -> vector<128x512xf32>
    %c0_10 = arith.constant 0 : index
    %c0_11 = arith.constant 0 : index
    %13 = vector.load %arg5[%c0_10, %c0_11] : memref<1x512xf32, #tpu.memory_space<vmem>>, vector<1x512xf32>
    %14 = vector.broadcast %13 : vector<1x512xf32> to vector<128x512xf32>
    %15 = arith.addf %12, %14 : vector<128x512xf32>
    %cst_12 = arith.constant 0.000000e+00 : f32
    %16 = vector.broadcast %cst_12 : f32 to vector<128x512xf32>
    %17 = arith.cmpf ogt, %15, %16 : vector<128x512xf32>
    %cst_13 = arith.constant 0.00999999977 : f32
    %18 = vector.broadcast %cst_13 : f32 to vector<128x512xf32>
    %19 = arith.mulf %18, %15 : vector<128x512xf32>
    %20 = arith.select %17, %15, %19 : vector<128x512xi1>, vector<128x512xf32>
    %c0_14 = arith.constant 0 : index
    %c0_15 = arith.constant 0 : index
    %21 = vector.load %arg6[%c0_14, %c0_15] : memref<512x256xf32, #tpu.memory_space<vmem>>, vector<512x256xf32>
    %cst_16 = arith.constant dense<0.000000e+00> : vector<128x256xf32>
    %22 = tpu.matmul %20, %21, %cst_16 {dimension_numbers = #tpu.dot_dimension_numbers<[1], [0], [0], [1], [0, 0, 1, 1], [], []>} : vector<128x512xf32>, vector<512x256xf32>, vector<128x256xf32> -> vector<128x256xf32>
    %c0_17 = arith.constant 0 : index
    %c0_18 = arith.constant 0 : index
    %23 = vector.load %arg7[%c0_17, %c0_18] : memref<1x256xf32, #tpu.memory_space<vmem>>, vector<1x256xf32>
    %24 = vector.broadcast %23 : vector<1x256xf32> to vector<128x256xf32>
    %25 = arith.addf %22, %24 : vector<128x256xf32>
    %cst_19 = arith.constant 0.000000e+00 : f32
    %26 = vector.broadcast %cst_19 : f32 to vector<128x256xf32>
    %27 = arith.cmpf ogt, %25, %26 : vector<128x256xf32>
    %cst_20 = arith.constant 0.00999999977 : f32
    %28 = vector.broadcast %cst_20 : f32 to vector<128x256xf32>
    %29 = arith.mulf %28, %25 : vector<128x256xf32>
    %30 = arith.select %27, %25, %29 : vector<128x256xi1>, vector<128x256xf32>
    %c0_21 = arith.constant 0 : index
    %c0_22 = arith.constant 0 : index
    %31 = vector.load %arg8[%c0_21, %c0_22] : memref<1x256xf32, #tpu.memory_space<vmem>>, vector<1x256xf32>
    %32 = vector.broadcast %31 : vector<1x256xf32> to vector<128x256xf32>
    %33 = arith.mulf %30, %32 : vector<128x256xf32>
    %cst_23 = arith.constant dense<0.000000e+00> : vector<128xf32>
    %34 = vector.multi_reduction <add>, %33, %cst_23 [1] : vector<128x256xf32> to vector<128xf32>
    %35 = vector.shape_cast %34 : vector<128xf32> to vector<128x1xf32>
    %c0_24 = arith.constant 0 : index
    %c0_25 = arith.constant 0 : index
    %36 = vector.load %arg9[%c0_24, %c0_25] : memref<1x1xf32, #tpu.memory_space<vmem>>, vector<1x1xf32>
    %37 = vector.broadcast %36 : vector<1x1xf32> to vector<128x1xf32>
    %38 = arith.addf %35, %37 : vector<128x1xf32>
    %cst_26 = arith.constant 0.000000e+00 : f32
    %39 = vector.broadcast %cst_26 : f32 to vector<128x1xf32>
    %40 = arith.subf %39, %38 : vector<128x1xf32>
    %41 = math.exp %40 : vector<128x1xf32>
    %cst_27 = arith.constant 1.000000e+00 : f32
    %42 = vector.broadcast %cst_27 : f32 to vector<128x1xf32>
    %43 = arith.addf %42, %41 : vector<128x1xf32>
    %44 = tpu.reciprocal %43 {approx = true} : vector<128x1xf32> -> vector<128x1xf32>
    %c0_28 = arith.constant 0 : index
    %c0_29 = arith.constant 0 : index
    %45 = vector.load %arg10[%c0_28, %c0_29] : memref<128x1xf32, #tpu.memory_space<vmem>>, vector<128x1xf32>
    tpu.vector_store %arg10[%c0_28, %c0_29], %44 {strides = array<i32>} : memref<128x1xf32, #tpu.memory_space<vmem>>, vector<128x1xf32>,
    return
  }
  func.func @transform_0(%arg0: i32) -> (i32, i32) {
    %c0_i32 = arith.constant 0 : i32
    %c0_i32_0 = arith.constant 0 : i32
    return %arg0, %c0_i32 : i32, i32
  }
  func.func @transform_1(%arg0: i32) -> (i32, i32) {
    %c0_i32 = arith.constant 0 : i32
    %c0_i32_0 = arith.constant 0 : i32
    %c0_i32_1 = arith.constant 0 : i32
    return %c0_i32, %c0_i32_0 : i32, i32
  }
  func.func @transform_2(%arg0: i32) -> (i32, i32) {
    %c0_i32 = arith.constant 0 : i32
    %c0_i32_0 = arith.constant 0 : i32
    %c0_i32_1 = arith.constant 0 : i32
    return %c0_i32, %c0_i32_0 : i32, i32
  }
  func.func @transform_3(%arg0: i32) -> (i32, i32) {
    %c0_i32 = arith.constant 0 : i32
    %c0_i32_0 = arith.constant 0 : i32
    %c0_i32_1 = arith.constant 0 : i32
    return %c0_i32, %c0_i32_0 : i32, i32
  }
  func.func @transform_4(%arg0: i32) -> (i32, i32) {
    %c0_i32 = arith.constant 0 : i32
    %c0_i32_0 = arith.constant 0 : i32
    %c0_i32_1 = arith.constant 0 : i32
    return %c0_i32, %c0_i32_0 : i32, i32
  }
  func.func @transform_5(%arg0: i32) -> (i32, i32) {
    %c0_i32 = arith.constant 0 : i32
    %c0_i32_0 = arith.constant 0 : i32
    %c0_i32_1 = arith.constant 0 : i32
    return %c0_i32, %c0_i32_0 : i32, i32
  }
  func.func @transform_6(%arg0: i32) -> (i32, i32) {
    %c0_i32 = arith.constant 0 : i32
    %c0_i32_0 = arith.constant 0 : i32
    %c0_i32_1 = arith.constant 0 : i32
    return %c0_i32, %c0_i32_0 : i32, i32
  }
  func.func @transform_7(%arg0: i32) -> (i32, i32) {
    %c0_i32 = arith.constant 0 : i32
    %c0_i32_0 = arith.constant 0 : i32
    %c0_i32_1 = arith.constant 0 : i32
    return %c0_i32, %c0_i32_0 : i32, i32
  }
  func.func @transform_8(%arg0: i32) -> (i32, i32) {
    %c0_i32 = arith.constant 0 : i32
    %c0_i32_0 = arith.constant 0 : i32
    %c0_i32_1 = arith.constant 0 : i32
    return %c0_i32, %c0_i32_0 : i32, i32
  }
  func.func @transform_9(%arg0: i32) -> (i32, i32) {
    %c0_i32 = arith.constant 0 : i32
    %c0_i32_0 = arith.constant 0 : i32
    return %arg0, %c0_i32 : i32, i32
  }
}

</mosaic_0001>

<llo_original>
// kernel: tpu_custom_call.1
$region0: #{tpu_custom_call.1}
  #allocation0 [shape = 'u32[]', space=smem, size = 0x4, offset = 0x4, fixed_abs, tag = 'smem constant byte address 0x4 - core index']
  #allocation1 [shape = 'u32[144,128]{1,0:T(1,128)}', space=vmem, size = 0x12000, scoped, tag = 'internal scratch']
  #allocation2 [shape = 'f32[1,1]{1,0:T(1,128)S(1)}', space=vmem, size = 0x200, scoped, tag = 'scoped memory for tpu_custom_call.1']
  %s0 = inlined_call_operand.hbm [shape: f32[128,128], index: 0, kind: input, shape index: {}]
  %s1 = inlined_call_operand.hbm [shape: f32[128,1024], index: 1, kind: input, shape index: {}]
  %s2 = inlined_call_operand.hbm [shape: f32[1,1024], index: 2, kind: input, shape index: {}]
  %s3 = inlined_call_operand.hbm [shape: f32[1024,512], index: 3, kind: input, shape index: {}]
  %s4 = inlined_call_operand.hbm [shape: f32[1,512], index: 4, kind: input, shape index: {}]
  %s5 = inlined_call_operand.hbm [shape: f32[512,256], index: 5, kind: input, shape index: {}]
  %s6 = inlined_call_operand.hbm [shape: f32[1,256], index: 6, kind: input, shape index: {}]
  %s7 = inlined_call_operand.hbm [shape: f32[1,256], index: 7, kind: input, shape index: {}]
  %s8 = inlined_call_operand.<no memory space> [shape: f32[1,1], index: 8, kind: input, shape index: {}]
  %s9 = inlined_call_operand.vmem [shape: f32[128,1], index: 9, kind: output, shape index: {}]
  %s10 = sld [smem:[#allocation0]]
  $region78: #{tpu_custom_call.1} parent=0
    _
  %s12 = ssub.s32 1, %s10
  %s13 = scalar_select 0, %s12, %s10
  %v14 = vstv %s8
  %15 = vst [vmem:[#allocation2] sm:$0x1] %v14
  $region1: #{tpu_custom_call.1} parent=0
    #allocation3 [shape = 'u8[65536]{0}', space=vmem, size = 0x10000, scoped, tag = 'input window, operand 0, single buffered']
    #allocation4 [shape = 's32[1]{0}', space=sflag, size = 0x4, scoped, tag = 'scoped memory for tpu_custom_call.1']
    #allocation5 [shape = 'u8[524288]{0}', space=vmem, size = 0x80000, scoped, tag = 'input window, operand 1, single buffered']
    #allocation6 [shape = 's32[1]{0}', space=sflag, size = 0x4, scoped, tag = 'scoped memory for tpu_custom_call.1']
    #allocation7 [shape = 'u8[4096]{0}', space=vmem, size = 0x1000, scoped, tag = 'input window, operand 2, single buffered']
    #allocation8 [shape = 'u8[2097152]{0}', space=vmem, size = 0x200000, scoped, tag = 'input window, operand 3, single buffered']
    #allocation9 [shape = 's32[1]{0}', space=sflag, size = 0x4, scoped, tag = 'scoped memory for tpu_custom_call.1']
    #allocation10 [shape = 'u8[2048]{0}', space=vmem, size = 0x800, scoped, tag = 'input window, operand 4, single buffered']
    #allocation11 [shape = 'u8[524288]{0}', space=vmem, size = 0x80000, scoped, tag = 'input window, operand 5, single buffered']
    #allocation12 [shape = 's32[1]{0}', space=sflag, size = 0x4, scoped, tag = 'scoped memory for tpu_custom_call.1']
    #allocation13 [shape = 'u8[1024]{0}', space=vmem, size = 0x400, scoped, tag = 'input window, operand 6, single buffered']
    #allocation14 [shape = 'u8[1024]{0}', space=vmem, size = 0x400, scoped, tag = 'input window, operand 7, single buffered']
    #allocation15 [shape = 's32[1]{0}', space=sflag, size = 0x4, scoped, tag = 'scoped memory for tpu_custom_call.1']
    %16 = vsyncpa [#allocation4], 0
    %17 = vsyncpa [#allocation6], 0
    %18 = vsyncpa [#allocation9], 0
    %19 = vsyncpa [#allocation12], 0
    %20 = vsyncpa [#allocation15], 0
    // Predicated region
    $region2: #{tpu_custom_call.1} parent=1 // pred_check
      _
    $region3: #{tpu_custom_call.1} parent=1 // pred_check_branch
      %22 = sbr.rel (0) target = $region5
    $region4: #{tpu_custom_call.1} parent=1 // pred_region
      %s24 = ssub.s32 2048, 2048
      %25 = vsyncadd [#allocation4], %s24
      %s26 = sshll.u32 [#allocation3], 4
      %s27 = int_to_ptr.vmem [resolvable:$true] %s26
      %32 = dma.hbm_to_vmem [thread:$0]  %s0, 2048, %s27, [#allocation4], 128, 128, 8
    $region5: #{tpu_custom_call.1} parent=1 // pred_fallthru
      _
    // Predicated region
    $region6: #{tpu_custom_call.1} parent=1 // pred_check
      _
    $region7: #{tpu_custom_call.1} parent=1 // pred_check_branch
      %34 = sbr.rel (0) target = $region9
    $region8: #{tpu_custom_call.1} parent=1 // pred_region
      %s36 = ssub.s32 16384, 16384
      %37 = vsyncadd [#allocation6], %s36
      %s38 = sshll.u32 [#allocation5], 4
      %s39 = int_to_ptr.vmem [resolvable:$true] %s38
      %44 = dma.hbm_to_vmem [thread:$0]  %s1, 16384, %s39, [#allocation6], 1024, 1024, 64
    $region9: #{tpu_custom_call.1} parent=1 // pred_fallthru
      _
    // Predicated region
    $region10: #{tpu_custom_call.1} parent=1 // pred_check
      _
    $region11: #{tpu_custom_call.1} parent=1 // pred_check_branch
      %46 = sbr.rel (0) target = $region13
    $region12: #{tpu_custom_call.1} parent=1 // pred_region
      %s48 = ssub.s32 128, 128
      %49 = vsyncadd [#allocation6], %s48
      %s51 = sshll.u32 [#allocation7], 4
      %s52 = int_to_ptr.vmem [resolvable:$true] %s51
      %54 = dma.hbm_to_vmem [thread:$0]  %s2, 128, %s52, [#allocation6]
    $region13: #{tpu_custom_call.1} parent=1 // pred_fallthru
      _
    // Predicated region
    $region14: #{tpu_custom_call.1} parent=1 // pred_check
      _
    $region15: #{tpu_custom_call.1} parent=1 // pred_check_branch
      %56 = sbr.rel (0) target = $region17
    $region16: #{tpu_custom_call.1} parent=1 // pred_region
      %s58 = ssub.s32 65536, 65536
      %59 = vsyncadd [#allocation9], %s58
      %s60 = sshll.u32 [#allocation8], 4
      %s61 = int_to_ptr.vmem [resolvable:$true] %s60
      %66 = dma.hbm_to_vmem [thread:$0]  %s3, 65536, %s61, [#allocation9], 512, 512, 32
    $region17: #{tpu_custom_call.1} parent=1 // pred_fallthru
      _
    // Predicated region
    $region18: #{tpu_custom_call.1} parent=1 // pred_check
      _
    $region19: #{tpu_custom_call.1} parent=1 // pred_check_branch
      %68 = sbr.rel (0) target = $region21
    $region20: #{tpu_custom_call.1} parent=1 // pred_region
      %s70 = ssub.s32 64, 64
      %71 = vsyncadd [#allocation9], %s70
      %s73 = sshll.u32 [#allocation10], 4
      %s74 = int_to_ptr.vmem [resolvable:$true] %s73
      %76 = dma.hbm_to_vmem [thread:$0]  %s4, 64, %s74, [#allocation9]
    $region21: #{tpu_custom_call.1} parent=1 // pred_fallthru
      _
    // Predicated region
    $region22: #{tpu_custom_call.1} parent=1 // pred_check
      _
    $region23: #{tpu_custom_call.1} parent=1 // pred_check_branch
      %78 = sbr.rel (0) target = $region25
    $region24: #{tpu_custom_call.1} parent=1 // pred_region
      %s80 = ssub.s32 16384, 16384
      %81 = vsyncadd [#allocation12], %s80
      %s82 = sshll.u32 [#allocation11], 4
      %s83 = int_to_ptr.vmem [resolvable:$true] %s82
      %88 = dma.hbm_to_vmem [thread:$0]  %s5, 16384, %s83, [#allocation12], 256, 256, 16
    $region25: #{tpu_custom_call.1} parent=1 // pred_fallthru
      _
    // Predicated region
    $region26: #{tpu_custom_call.1} parent=1 // pred_check
      _
    $region27: #{tpu_custom_call.1} parent=1 // pred_check_branch
      %90 = sbr.rel (0) target = $region29
    $region28: #{tpu_custom_call.1} parent=1 // pred_region
      %s92 = ssub.s32 32, 32
      %93 = vsyncadd [#allocation12], %s92
      %s95 = sshll.u32 [#allocation13], 4
      %s96 = int_to_ptr.vmem [resolvable:$true] %s95
      %98 = dma.hbm_to_vmem [thread:$0]  %s6, 32, %s96, [#allocation12]
    $region29: #{tpu_custom_call.1} parent=1 // pred_fallthru
      _
    // Predicated region
    $region30: #{tpu_custom_call.1} parent=1 // pred_check
      _
    $region31: #{tpu_custom_call.1} parent=1 // pred_check_branch
      %100 = sbr.rel (0) target = $region33
    $region32: #{tpu_custom_call.1} parent=1 // pred_region
      %s102 = ssub.s32 32, 32
      %103 = vsyncadd [#allocation15], %s102
      %s105 = sshll.u32 [#allocation14], 4
      %s106 = int_to_ptr.vmem [resolvable:$true] %s105
      %108 = dma.hbm_to_vmem [thread:$0]  %s7, 32, %s106, [#allocation15]
    $region33: #{tpu_custom_call.1} parent=1 // pred_fallthru
      _
    // Predicated region
    $region34: #{tpu_custom_call.1} parent=1 // pred_check
      _
    $region35: #{tpu_custom_call.1} parent=1 // pred_check_branch
      %110 = sbr.rel (0) target = $region37
    $region36: #{tpu_custom_call.1} parent=1 // pred_region
      _
    $region37: #{tpu_custom_call.1} parent=1 // pred_fallthru
      _
    // Predicated region
    $region38: #{tpu_custom_call.1} parent=1 // pred_check
      _
    $region39: #{tpu_custom_call.1} parent=1 // pred_check_branch
      %112 = sbr.rel (0) target = $region41
    $region40: #{tpu_custom_call.1} parent=1 // pred_region
      %113 = dma.done [#allocation4], 2048
    $region41: #{tpu_custom_call.1} parent=1 // pred_fallthru
      _
    // Predicated region
    $region42: #{tpu_custom_call.1} parent=1 // pred_check
      _
    $region43: #{tpu_custom_call.1} parent=1 // pred_check_branch
      %115 = sbr.rel (0) target = $region45
    $region44: #{tpu_custom_call.1} parent=1 // pred_region
      %116 = dma.done [#allocation6], 16384
    $region45: #{tpu_custom_call.1} parent=1 // pred_fallthru
      _
    // Predicated region
    $region46: #{tpu_custom_call.1} parent=1 // pred_check
      _
    $region47: #{tpu_custom_call.1} parent=1 // pred_check_branch
      %118 = sbr.rel (0) target = $region49
    $region48: #{tpu_custom_call.1} parent=1 // pred_region
      %119 = dma.done [#allocation6], 128
    $region49: #{tpu_custom_call.1} parent=1 // pred_fallthru
      _
    // Predicated region
    $region50: #{tpu_custom_call.1} parent=1 // pred_check
      _
    $region51: #{tpu_custom_call.1} parent=1 // pred_check_branch
      %121 = sbr.rel (0) target = $region53
    $region52: #{tpu_custom_call.1} parent=1 // pred_region
      %122 = dma.done [#allocation9], 65536
    $region53: #{tpu_custom_call.1} parent=1 // pred_fallthru
      _
    // Predicated region
    $region54: #{tpu_custom_call.1} parent=1 // pred_check
      _
    $region55: #{tpu_custom_call.1} parent=1 // pred_check_branch
      %124 = sbr.rel (0) target = $region57
    $region56: #{tpu_custom_call.1} parent=1 // pred_region
      %125 = dma.done [#allocation9], 64
    $region57: #{tpu_custom_call.1} parent=1 // pred_fallthru
      _
    // Predicated region
    $region58: #{tpu_custom_call.1} parent=1 // pred_check
      _
    $region59: #{tpu_custom_call.1} parent=1 // pred_check_branch
      %127 = sbr.rel (0) target = $region61
    $region60: #{tpu_custom_call.1} parent=1 // pred_region
      %128 = dma.done [#allocation12], 16384
    $region61: #{tpu_custom_call.1} parent=1 // pred_fallthru
      _
    // Predicated region
    $region62: #{tpu_custom_call.1} parent=1 // pred_check
      _
    $region63: #{tpu_custom_call.1} parent=1 // pred_check_branch
      %130 = sbr.rel (0) target = $region65
    $region64: #{tpu_custom_call.1} parent=1 // pred_region
      %131 = dma.done [#allocation12], 32
    $region65: #{tpu_custom_call.1} parent=1 // pred_fallthru
      _
    // Predicated region
    $region66: #{tpu_custom_call.1} parent=1 // pred_check
      _
    $region67: #{tpu_custom_call.1} parent=1 // pred_check_branch
      %133 = sbr.rel (0) target = $region69
    $region68: #{tpu_custom_call.1} parent=1 // pred_region
      %134 = dma.done [#allocation15], 32
    $region69: #{tpu_custom_call.1} parent=1 // pred_fallthru
      _
    %v135 = vld [vmem:[#allocation3] sm:$0xff]
    %v136 = vld [vmem:[#allocation3 + $0x8] sm:$0xff]
    %v137 = vld [vmem:[#allocation3 + $0x10] sm:$0xff]
    %v138 = vld [vmem:[#allocation3 + $0x18] sm:$0xff]
    %v139 = vld [vmem:[#allocation3 + $0x20] sm:$0xff]
    %v140 = vld [vmem:[#allocation3 + $0x28] sm:$0xff]
    %v141 = vld [vmem:[#allocation3 + $0x30] sm:$0xff]
    %v142 = vld [vmem:[#allocation3 + $0x38] sm:$0xff]
    %v143 = vld [vmem:[#allocation3 + $0x40] sm:$0xff]
    %v144 = vld [vmem:[#allocation3 + $0x48] sm:$0xff]
    %v145 = vld [vmem:[#allocation3 + $0x50] sm:$0xff]
    %v146 = vld [vmem:[#allocation3 + $0x58] sm:$0xff]
    %v147 = vld [vmem:[#allocation3 + $0x60] sm:$0xff]
    %v148 = vld [vmem:[#allocation3 + $0x68] sm:$0xff]
    %v149 = vld [vmem:[#allocation3 + $0x70] sm:$0xff]
    %v150 = vld [vmem:[#allocation3 + $0x78] sm:$0xff]
    %v151 = vld [vmem:[#allocation5] sm:$0xff]
    %v152 = vld [vmem:[#allocation5 + $0x8] sm:$0xff]
    %v153 = vld [vmem:[#allocation5 + $0x10] sm:$0xff]
    %v154 = vld [vmem:[#allocation5 + $0x18] sm:$0xff]
    %v155 = vld [vmem:[#allocation5 + $0x20] sm:$0xff]
    %v156 = vld [vmem:[#allocation5 + $0x28] sm:$0xff]
    %v157 = vld [vmem:[#allocation5 + $0x30] sm:$0xff]
    %v158 = vld [vmem:[#allocation5 + $0x38] sm:$0xff]
    %v159 = vld [vmem:[#allocation5 + $0x40] sm:$0xff]
    %v160 = vld [vmem:[#allocation5 + $0x48] sm:$0xff]
    %v161 = vld [vmem:[#allocation5 + $0x50] sm:$0xff]
    %v162 = vld [vmem:[#allocation5 + $0x58] sm:$0xff]
    %v163 = vld [vmem:[#allocation5 + $0x60] sm:$0xff]
    %v164 = vld [vmem:[#allocation5 + $0x68] sm:$0xff]
    %v165 = vld [vmem:[#allocation5 + $0x70] sm:$0xff]
    %v166 = vld [vmem:[#allocation5 + $0x78] sm:$0xff]
    %v167 = vld [vmem:[#allocation5 + $0x80] sm:$0xff]
    %v168 = vld [vmem:[#allocation5 + $0x88] sm:$0xff]
    %v169 = vld [vmem:[#allocation5 + $0x90] sm:$0xff]
    %v170 = vld [vmem:[#allocation5 + $0x98] sm:$0xff]
    %v171 = vld [vmem:[#allocation5 + $0xa0] sm:$0xff]
    %v172 = vld [vmem:[#allocation5 + $0xa8] sm:$0xff]
    %v173 = vld [vmem:[#allocation5 + $0xb0] sm:$0xff]
    %v174 = vld [vmem:[#allocation5 + $0xb8] sm:$0xff]
    %v175 = vld [vmem:[#allocation5 + $0xc0] sm:$0xff]
    %v176 = vld [vmem:[#allocation5 + $0xc8] sm:$0xff]
    %v177 = vld [vmem:[#allocation5 + $0xd0] sm:$0xff]
    %v178 = vld [vmem:[#allocation5 + $0xd8] sm:$0xff]
    %v179 = vld [vmem:[#allocation5 + $0xe0] sm:$0xff]
    %v180 = vld [vmem:[#allocation5 + $0xe8] sm:$0xff]
    %v181 = vld [vmem:[#allocation5 + $0xf0] sm:$0xff]
    %v182 = vld [vmem:[#allocation5 + $0xf8] sm:$0xff]
    %v183 = vld [vmem:[#allocation5 + $0x100] sm:$0xff]
    %v184 = vld [vmem:[#allocation5 + $0x108] sm:$0xff]
    %v185 = vld [vmem:[#allocation5 + $0x110] sm:$0xff]
    %v186 = vld [vmem:[#allocation5 + $0x118] sm:$0xff]
    %v187 = vld [vmem:[#allocation5 + $0x120] sm:$0xff]
    %v188 = vld [vmem:[#allocation5 + $0x128] sm:$0xff]
    %v189 = vld [vmem:[#allocation5 + $0x130] sm:$0xff]
    %v190 = vld [vmem:[#allocation5 + $0x138] sm:$0xff]
    %v191 = vld [vmem:[#allocation5 + $0x140] sm:$0xff]
    %v192 = vld [vmem:[#allocation5 + $0x148] sm:$0xff]
    %v193 = vld [vmem:[#allocation5 + $0x150] sm:$0xff]
    %v194 = vld [vmem:[#allocation5 + $0x158] sm:$0xff]
    %v195 = vld [vmem:[#allocation5 + $0x160] sm:$0xff]
    %v196 = vld [vmem:[#allocation5 + $0x168] sm:$0xff]
    %v197 = vld [vmem:[#allocation5 + $0x170] sm:$0xff]
    %v198 = vld [vmem:[#allocation5 + $0x178] sm:$0xff]
    %v199 = vld [vmem:[#allocation5 + $0x180] sm:$0xff]
    %v200 = vld [vmem:[#allocation5 + $0x188] sm:$0xff]
    %v201 = vld [vmem:[#allocation5 + $0x190] sm:$0xff]
    %v202 = vld [vmem:[#allocation5 + $0x198] sm:$0xff]
    %v203 = vld [vmem:[#allocation5 + $0x1a0] sm:$0xff]
    %v204 = vld [vmem:[#allocation5 + $0x1a8] sm:$0xff]
    %v205 = vld [vmem:[#allocation5 + $0x1b0] sm:$0xff]
    %v206 = vld [vmem:[#allocation5 + $0x1b8] sm:$0xff]
    %v207 = vld [vmem:[#allocation5 + $0x1c0] sm:$0xff]
    %v208 = vld [vmem:[#allocation5 + $0x1c8] sm:$0xff]
    %v209 = vld [vmem:[#allocation5 + $0x1d0] sm:$0xff]
    %v210 = vld [vmem:[#allocation5 + $0x1d8] sm:$0xff]
    %v211 = vld [vmem:[#allocation5 + $0x1e0] sm:$0xff]
    %v212 = vld [vmem:[#allocation5 + $0x1e8] sm:$0xff]
    %v213 = vld [vmem:[#allocation5 + $0x1f0] sm:$0xff]
    %v214 = vld [vmem:[#allocation5 + $0x1f8] sm:$0xff]
    %v215 = vld [vmem:[#allocation5 + $0x200] sm:$0xff]
    %v216 = vld [vmem:[#allocation5 + $0x208] sm:$0xff]
    %v217 = vld [vmem:[#allocation5 + $0x210] sm:$0xff]
    %v218 = vld [vmem:[#allocation5 + $0x218] sm:$0xff]
    %v219 = vld [vmem:[#allocation5 + $0x220] sm:$0xff]
    %v220 = vld [vmem:[#allocation5 + $0x228] sm:$0xff]
    %v221 = vld [vmem:[#allocation5 + $0x230] sm:$0xff]
    %v222 = vld [vmem:[#allocation5 + $0x238] sm:$0xff]
    %v223 = vld [vmem:[#allocation5 + $0x240] sm:$0xff]
    %v224 = vld [vmem:[#allocation5 + $0x248] sm:$0xff]
    %v225 = vld [vmem:[#allocation5 + $0x250] sm:$0xff]
    %v226 = vld [vmem:[#allocation5 + $0x258] sm:$0xff]
    %v227 = vld [vmem:[#allocation5 + $0x260] sm:$0xff]
    %v228 = vld [vmem:[#allocation5 + $0x268] sm:$0xff]
    %v229 = vld [vmem:[#allocation5 + $0x270] sm:$0xff]
    %v230 = vld [vmem:[#allocation5 + $0x278] sm:$0xff]
    %v231 = vld [vmem:[#allocation5 + $0x280] sm:$0xff]
    %v232 = vld [vmem:[#allocation5 + $0x288] sm:$0xff]
    %v233 = vld [vmem:[#allocation5 + $0x290] sm:$0xff]
    %v234 = vld [vmem:[#allocation5 + $0x298] sm:$0xff]
    %v235 = vld [vmem:[#allocation5 + $0x2a0] sm:$0xff]
    %v236 = vld [vmem:[#allocation5 + $0x2a8] sm:$0xff]
    %v237 = vld [vmem:[#allocation5 + $0x2b0] sm:$0xff]
    %v238 = vld [vmem:[#allocation5 + $0x2b8] sm:$0xff]
    %v239 = vld [vmem:[#allocation5 + $0x2c0] sm:$0xff]
    %v240 = vld [vmem:[#allocation5 + $0x2c8] sm:$0xff]
    %v241 = vld [vmem:[#allocation5 + $0x2d0] sm:$0xff]
    %v242 = vld [vmem:[#allocation5 + $0x2d8] sm:$0xff]
    %v243 = vld [vmem:[#allocation5 + $0x2e0] sm:$0xff]
    %v244 = vld [vmem:[#allocation5 + $0x2e8] sm:$0xff]
    %v245 = vld [vmem:[#allocation5 + $0x2f0] sm:$0xff]
    %v246 = vld [vmem:[#allocation5 + $0x2f8] sm:$0xff]
    %v247 = vld [vmem:[#allocation5 + $0x300] sm:$0xff]
    %v248 = vld [vmem:[#allocation5 + $0x308] sm:$0xff]
    %v249 = vld [vmem:[#allocation5 + $0x310] sm:$0xff]
    %v250 = vld [vmem:[#allocation5 + $0x318] sm:$0xff]
    %v251 = vld [vmem:[#allocation5 + $0x320] sm:$0xff]
    %v252 = vld [vmem:[#allocation5 + $0x328] sm:$0xff]
    %v253 = vld [vmem:[#allocation5 + $0x330] sm:$0xff]
    %v254 = vld [vmem:[#allocation5 + $0x338] sm:$0xff]
    %v255 = vld [vmem:[#allocation5 + $0x340] sm:$0xff]
    %v256 = vld [vmem:[#allocation5 + $0x348] sm:$0xff]
    %v257 = vld [vmem:[#allocation5 + $0x350] sm:$0xff]
    %v258 = vld [vmem:[#allocation5 + $0x358] sm:$0xff]
    %v259 = vld [vmem:[#allocation5 + $0x360] sm:$0xff]
    %v260 = vld [vmem:[#allocation5 + $0x368] sm:$0xff]
    %v261 = vld [vmem:[#allocation5 + $0x370] sm:$0xff]
    %v262 = vld [vmem:[#allocation5 + $0x378] sm:$0xff]
    %v263 = vld [vmem:[#allocation5 + $0x380] sm:$0xff]
    %v264 = vld [vmem:[#allocation5 + $0x388] sm:$0xff]
    %v265 = vld [vmem:[#allocation5 + $0x390] sm:$0xff]
    %v266 = vld [vmem:[#allocation5 + $0x398] sm:$0xff]
    %v267 = vld [vmem:[#allocation5 + $0x3a0] sm:$0xff]
    %v268 = vld [vmem:[#allocation5 + $0x3a8] sm:$0xff]
    %v269 = vld [vmem:[#allocation5 + $0x3b0] sm:$0xff]
    %v270 = vld [vmem:[#allocation5 + $0x3b8] sm:$0xff]
    %v271 = vld [vmem:[#allocation5 + $0x3c0] sm:$0xff]
    %v272 = vld [vmem:[#allocation5 + $0x3c8] sm:$0xff]
    %v273 = vld [vmem:[#allocation5 + $0x3d0] sm:$0xff]
    %v274 = vld [vmem:[#allocation5 + $0x3d8] sm:$0xff]
    %v275 = vld [vmem:[#allocation5 + $0x3e0] sm:$0xff]
    %v276 = vld [vmem:[#allocation5 + $0x3e8] sm:$0xff]
    %v277 = vld [vmem:[#allocation5 + $0x3f0] sm:$0xff]
    %v278 = vld [vmem:[#allocation5 + $0x3f8] sm:$0xff]
    %v279 = vld [vmem:[#allocation7] sm:$0xff]
    %v281 = vlaneseq
    %v282 = vshrl.u32 %v281, 7
    %v283 = vsub.s32 0, %v282
    %v284 = vrot.slane %v279, %v283
    %v285 = vlaneseq
    %v286 = vshrl.u32 %v285, 7
    %v287 = vsub.s32 1, %v286
    %v288 = vrot.slane %v279, %v287
    %v289 = vlaneseq
    %v290 = vshrl.u32 %v289, 7
    %v291 = vsub.s32 2, %v290
    %v292 = vrot.slane %v279, %v291
    %v293 = vlaneseq
    %v294 = vshrl.u32 %v293, 7
    %v295 = vsub.s32 3, %v294
    %v296 = vrot.slane %v279, %v295
    %v297 = vlaneseq
    %v298 = vshrl.u32 %v297, 7
    %v299 = vsub.s32 4, %v298
    %v300 = vrot.slane %v279, %v299
    %v301 = vlaneseq
    %v302 = vshrl.u32 %v301, 7
    %v303 = vsub.s32 5, %v302
    %v304 = vrot.slane %v279, %v303
    %v305 = vlaneseq
    %v306 = vshrl.u32 %v305, 7
    %v307 = vsub.s32 6, %v306
    %v308 = vrot.slane %v279, %v307
    %v309 = vlaneseq
    %v310 = vshrl.u32 %v309, 7
    %v311 = vsub.s32 7, %v310
    %v312 = vrot.slane %v279, %v311
    %321 = vmatprep.subr.mxu0 %v152
    %322 = vmatpush1.msra.mxu0 %v151
    %323 = vmatprep.subr.mxu0 %v160
    %324 = vmatpush1.msra.mxu0 %v159
    %325 = vmatprep.subr.mxu0 %v168
    %326 = vmatpush1.msra.mxu0 %v167
    %327 = vmatprep.subr.mxu0 %v176
    %328 = vmatpush1.msra.mxu0 %v175
    %329 = vmatprep.subr.mxu0 %v184
    %330 = vmatpush1.msra.mxu0 %v183
    %331 = vmatprep.subr.mxu0 %v192
    %332 = vmatpush1.msra.mxu0 %v191
    %333 = vmatprep.subr.mxu0 %v200
    %334 = vmatpush1.msra.mxu0 %v199
    %335 = vmatprep.subr.mxu0 %v208
    %336 = vmatpush1.msra.mxu0 %v207
    %337 = vmatprep.subr.mxu0 %v216
    %338 = vmatpush1.msra.mxu0 %v215
    %339 = vmatprep.subr.mxu0 %v224
    %340 = vmatpush1.msra.mxu0 %v223
    %341 = vmatprep.subr.mxu0 %v232
    %342 = vmatpush1.msra.mxu0 %v231
    %343 = vmatprep.subr.mxu0 %v240
    %344 = vmatpush1.msra.mxu0 %v239
    %345 = vmatprep.subr.mxu0 %v248
    %346 = vmatpush1.msra.mxu0 %v247
    %347 = vmatprep.subr.mxu0 %v256
    %348 = vmatpush1.msra.mxu0 %v255
    %349 = vmatprep.subr.mxu0 %v264
    %350 = vmatpush1.msra.mxu0 %v263
    %351 = vmatprep.subr.mxu0 %v272
    %352 = vmatpush1.msra.mxu0 %v271
    %353 = vmatprep.subr.mxu0 0.0
    %354 = vmatpush1.msra.mxu0 0.0
    %355 = vmatprep.subr.mxu0 0.0
    %356 = vmatpush1.msra.mxu0 0.0
    %357 = vmatprep.subr.mxu0 0.0
    %358 = vmatpush1.msra.mxu0 0.0
    %359 = vmatprep.subr.mxu0 0.0
    %360 = vmatpush1.msra.mxu0 0.0
    %361 = vmatprep.subr.mxu0 0.0
    %362 = vmatpush1.msra.mxu0 0.0
    %363 = vmatprep.subr.mxu0 0.0
    %364 = vmatpush1.msra.mxu0 0.0
    %365 = vmatprep.subr.mxu0 0.0
    %366 = vmatpush1.msra.mxu0 0.0
    %367 = vmatprep.subr.mxu0 0.0
    %368 = vmatpush1.msra.mxu0 0.0
    %369 = vmatprep.subr.mxu0 0.0
    %370 = vmatpush1.msra.mxu0 0.0
    %371 = vmatprep.subr.mxu0 0.0
    %372 = vmatpush1.msra.mxu0 0.0
    %373 = vmatprep.subr.mxu0 0.0
    %374 = vmatpush1.msra.mxu0 0.0
    %375 = vmatprep.subr.mxu0 0.0
    %376 = vmatpush1.msra.mxu0 0.0
    %377 = vmatprep.subr.mxu0 0.0
    %378 = vmatpush1.msra.mxu0 0.0
    %379 = vmatprep.subr.mxu0 0.0
    %380 = vmatpush1.msra.mxu0 0.0
    %381 = vmatprep.subr.mxu0 0.0
    %382 = vmatpush1.msra.mxu0 0.0
    %383 = vmatprep.subr.mxu0 0.0
    %384 = vmatpush1.msra.mxu0 0.0
    %385 = vmatprep.mubr.f32.mxu0 0.0
    %386 = vmatmul.mubr.f32.gmra.mrb[0].mxu0 %v135
    %v387 = vpop.f32.mrb[0].mxu0
    %v388 = vadd.f32 %v284, %v387
    %v389 = vpop.f32.mrb[0].mxu0
    %v390 = vadd.f32 %v288, %v389
    %391 = vmatprep.mubr.f32.mxu0 0.0
    %392 = vmatmul.mubr.f32.gmra.mrb[0].mxu0 %v136
    %v393 = vpop.f32.mrb[0].mxu0
    %v394 = vadd.f32 %v284, %v393
    %v395 = vpop.f32.mrb[0].mxu0
    %v396 = vadd.f32 %v288, %v395
    %397 = vmatprep.mubr.f32.mxu0 0.0
    %398 = vmatmul.mubr.f32.gmra.mrb[0].mxu0 %v137
    %v399 = vpop.f32.mrb[0].mxu0
    %v400 = vadd.f32 %v284, %v399
    %v401 = vpop.f32.mrb[0].mxu0
    %v402 = vadd.f32 %v288, %v401
    %403 = vmatprep.mubr.f32.mxu0 0.0
    %404 = vmatmul.mubr.f32.gmra.mrb[0].mxu0 %v138
    %v405 = vpop.f32.mrb[0].mxu0
    %v406 = vadd.f32 %v284, %v405
    %v407 = vpop.f32.mrb[0].mxu0
    %v408 = vadd.f32 %v288, %v407
    %409 = vmatprep.mubr.f32.mxu0 0.0
    %410 = vmatmul.mubr.f32.gmra.mrb[0].mxu0 %v139
    %v411 = vpop.f32.mrb[0].mxu0
    %v412 = vadd.f32 %v284, %v411
    %v413 = vpop.f32.mrb[0].mxu0
    %v414 = vadd.f32 %v288, %v413
    %415 = vmatprep.mubr.f32.mxu0 0.0
    %416 = vmatmul.mubr.f32.gmra.mrb[0].mxu0 %v140
    %v417 = vpop.f32.mrb[0].mxu0
    %v418 = vadd.f32 %v284, %v417
    %v419 = vpop.f32.mrb[0].mxu0
    %v420 = vadd.f32 %v288, %v419
    %421 = vmatprep.mubr.f32.mxu0 0.0
    %422 = vmatmul.mubr.f32.gmra.mrb[0].mxu0 %v141
    %v423 = vpop.f32.mrb[0].mxu0
    %v424 = vadd.f32 %v284, %v423
    %v425 = vpop.f32.mrb[0].mxu0
    %v426 = vadd.f32 %v288, %v425
    %427 = vmatprep.mubr.f32.mxu0 0.0
    %428 = vmatmul.mubr.f32.gmra.mrb[0].mxu0 %v142
    %v429 = vpop.f32.mrb[0].mxu0
    %v430 = vadd.f32 %v284, %v429
    %v431 = vpop.f32.mrb[0].mxu0
    %v432 = vadd.f32 %v288, %v431
    %433 = vmatprep.mubr.f32.mxu0 0.0
    %434 = vmatmul.mubr.f32.gmra.mrb[0].mxu0 %v143
    %v435 = vpop.f32.mrb[0].mxu0
    %v436 = vadd.f32 %v284, %v435
    %v437 = vpop.f32.mrb[0].mxu0
    %v438 = vadd.f32 %v288, %v437
    %439 = vmatprep.mubr.f32.mxu0 0.0
    %440 = vmatmul.mubr.f32.gmra.mrb[0].mxu0 %v144
    %v441 = vpop.f32.mrb[0].mxu0
    %v442 = vadd.f32 %v284, %v441
    %v443 = vpop.f32.mrb[0].mxu0
    %v444 = vadd.f32 %v288, %v443
    %445 = vmatprep.mubr.f32.mxu0 0.0
    %446 = vmatmul.mubr.f32.gmra.mrb[0].mxu0 %v145
    %v447 = vpop.f32.mrb[0].mxu0
    %v448 = vadd.f32 %v284, %v447
    %v449 = vpop.f32.mrb[0].mxu0
    %v450 = vadd.f32 %v288, %v449
    %451 = vmatprep.mubr.f32.mxu0 0.0
    %452 = vmatmul.mubr.f32.gmra.mrb[0].mxu0 %v146
    %v453 = vpop.f32.mrb[0].mxu0
    %v454 = vadd.f32 %v284, %v453
    %v455 = vpop.f32.mrb[0].mxu0
    %v456 = vadd.f32 %v288, %v455
    %457 = vmatprep.mubr.f32.mxu0 0.0
    %458 = vmatmul.mubr.f32.gmra.mrb[0].mxu0 %v147
    %v459 = vpop.f32.mrb[0].mxu0
    %v460 = vadd.f32 %v284, %v459
    %v461 = vpop.f32.mrb[0].mxu0
    %v462 = vadd.f32 %v288, %v461
    %463 = vmatprep.mubr.f32.mxu0 0.0
    %464 = vmatmul.mubr.f32.gmra.mrb[0].mxu0 %v148
    %v465 = vpop.f32.mrb[0].mxu0
    %v466 = vadd.f32 %v284, %v465
    %v467 = vpop.f32.mrb[0].mxu0
    %v468 = vadd.f32 %v288, %v467
    %469 = vmatprep.mubr.f32.mxu0 0.0
    %470 = vmatmul.mubr.f32.gmra.mrb[0].mxu0 %v149
    %v471 = vpop.f32.mrb[0].mxu0
    %v472 = vadd.f32 %v284, %v471
    %v473 = vpop.f32.mrb[0].mxu0
    %v474 = vadd.f32 %v288, %v473
    %475 = vmatprep.mubr.f32.mxu0 0.0
    %476 = vmatmul.mubr.f32.gmra.mrb[0].mxu0 %v150
    %v477 = vpop.f32.mrb[0].mxu0
    %v478 = vadd.f32 %v284, %v477
    %v479 = vpop.f32.mrb[0].mxu0
    %v480 = vadd.f32 %v288, %v479
    %481 = vdwg.mxu0
    %482 = vmatprep.subr.mxu0 %v154
    %483 = vmatpush1.msra.mxu0 %v153
    %484 = vmatprep.subr.mxu0 %v162
    %485 = vmatpush1.msra.mxu0 %v161
    %486 = vmatprep.subr.mxu0 %v170
    %487 = vmatpush1.msra.mxu0 %v169
    %488 = vmatprep.subr.mxu0 %v178
    %489 = vmatpush1.msra.mxu0 %v177
    %490 = vmatprep.subr.mxu0 %v186
    %491 = vmatpush1.msra.mxu0 %v185
    %492 = vmatprep.subr.mxu0 %v194
    %493 = vmatpush1.msra.mxu0 %v193
    %494 = vmatprep.subr.mxu0 %v202
    %495 = vmatpush1.msra.mxu0 %v201
    %496 = vmatprep.subr.mxu0 %v210
    %497 = vmatpush1.msra.mxu0 %v209
    %498 = vmatprep.subr.mxu0 %v218
    %499 = vmatpush1.msra.mxu0 %v217
    %500 = vmatprep.subr.mxu0 %v226
    %501 = vmatpush1.msra.mxu0 %v225
    %502 = vmatprep.subr.mxu0 %v234
    %503 = vmatpush1.msra.mxu0 %v233
    %504 = vmatprep.subr.mxu0 %v242
    %505 = vmatpush1.msra.mxu0 %v241
    %506 = vmatprep.subr.mxu0 %v250
    %507 = vmatpush1.msra.mxu0 %v249
    %508 = vmatprep.subr.mxu0 %v258
    %509 = vmatpush1.msra.mxu0 %v257
    %510 = vmatprep.subr.mxu0 %v266
    %511 = vmatpush1.msra.mxu0 %v265
    %512 = vmatprep.subr.mxu0 %v274
    %513 = vmatpush1.msra.mxu0 %v273
    %514 = vmatprep.subr.mxu0 0.0
    %515 = vmatpush1.msra.mxu0 0.0
    %516 = vmatprep.subr.mxu0 0.0
    %517 = vmatpush1.msra.mxu0 0.0
    %518 = vmatprep.subr.mxu0 0.0
    %519 = vmatpush1.msra.mxu0 0.0
    %520 = vmatprep.subr.mxu0 0.0
    %521 = vmatpush1.msra.mxu0 0.0
    %522 = vmatprep.subr.mxu0 0.0
    %523 = vmatpush1.msra.mxu0 0.0
    %524 = vmatprep.subr.mxu0 0.0
    %525 = vmatpush1.msra.mxu0 0.0
    %526 = vmatprep.subr.mxu0 0.0
    %527 = vmatpush1.msra.mxu0 0.0
    %528 = vmatprep.subr.mxu0 0.0
    %529 = vmatpush1.msra.mxu0 0.0
    %530 = vmatprep.subr.mxu0 0.0
    %531 = vmatpush1.msra.mxu0 0.0
    %532 = vmatprep.subr.mxu0 0.0
    %533 = vmatpush1.msra.mxu0 0.0
    %534 = vmatprep.subr.mxu0 0.0
    %535 = vmatpush1.msra.mxu0 0.0
    %536 = vmatprep.subr.mxu0 0.0
    %537 = vmatpush1.msra.mxu0 0.0
    %538 = vmatprep.subr.mxu0 0.0
    %539 = vmatpush1.msra.mxu0 0.0
    %540 = vmatprep.subr.mxu0 0.0
    %541 = vmatpush1.msra.mxu0 0.0
    %542 = vmatprep.subr.mxu0 0.0
    %543 = vmatpush1.msra.mxu0 0.0
    %544 = vmatprep.subr.mxu0 0.0
    %545 = vmatpush1.msra.mxu0 0.0
    %546 = vmatprep.mubr.f32.mxu0 0.0
    %547 = vmatmul.mubr.f32.gmra.mrb[0].mxu0 %v135
    %v548 = vpop.f32.mrb[0].mxu0
    %v549 = vadd.f32 %v292, %v548
    %v550 = vpop.f32.mrb[0].mxu0
    %v551 = vadd.f32 %v296, %v550
    %552 = vmatprep.mubr.f32.mxu0 0.0
    %553 = vmatmul.mubr.f32.gmra.mrb[0].mxu0 %v136
    %v554 = vpop.f32.mrb[0].mxu0
    %v555 = vadd.f32 %v292, %v554
    %v556 = vpop.f32.mrb[0].mxu0
    %v557 = vadd.f32 %v296, %v556
    %558 = vmatprep.mubr.f32.mxu0 0.0
    %559 = vmatmul.mubr.f32.gmra.mrb[0].mxu0 %v137
    %v560 = vpop.f32.mrb[0].mxu0
    %v561 = vadd.f32 %v292, %v560
    %v562 = vpop.f32.mrb[0].mxu0
    %v563 = vadd.f32 %v296, %v562
    %564 = vmatprep.mubr.f32.mxu0 0.0
    %565 = vmatmul.mubr.f32.gmra.mrb[0].mxu0 %v138
    %v566 = vpop.f32.mrb[0].mxu0
    %v567 = vadd.f32 %v292, %v566
    %v568 = vpop.f32.mrb[0].mxu0
    %v569 = vadd.f32 %v296, %v568
    %570 = vmatprep.mubr.f32.mxu0 0.0
    %571 = vmatmul.mubr.f32.gmra.mrb[0].mxu0 %v139
    %v572 = vpop.f32.mrb[0].mxu0
    %v573 = vadd.f32 %v292, %v572
    %v574 = vpop.f32.mrb[0].mxu0
    %v575 = vadd.f32 %v296, %v574
    %576 = vmatprep.mubr.f32.mxu0 0.0
    %577 = vmatmul.mubr.f32.gmra.mrb[0].mxu0 %v140
    %v578 = vpop.f32.mrb[0].mxu0
    %v579 = vadd.f32 %v292, %v578
    %v580 = vpop.f32.mrb[0].mxu0
    %v581 = vadd.f32 %v296, %v580
    %582 = vmatprep.mubr.f32.mxu0 0.0
    %583 = vmatmul.mubr.f32.gmra.mrb[0].mxu0 %v141
    %v584 = vpop.f32.mrb[0].mxu0
    %v585 = vadd.f32 %v292, %v584
    %v586 = vpop.f32.mrb[0].mxu0
    %v587 = vadd.f32 %v296, %v586
    %588 = vmatprep.mubr.f32.mxu0 0.0
    %589 = vmatmul.mubr.f32.gmra.mrb[0].mxu0 %v142
    %v590 = vpop.f32.mrb[0].mxu0
    %v591 = vadd.f32 %v292, %v590
    %v592 = vpop.f32.mrb[0].mxu0
    %v593 = vadd.f32 %v296, %v592
    %594 = vmatprep.mubr.f32.mxu0 0.0
    %595 = vmatmul.mubr.f32.gmra.mrb[0].mxu0 %v143
    %v596 = vpop.f32.mrb[0].mxu0
    %v597 = vadd.f32 %v292, %v596
    %v598 = vpop.f32.mrb[0].mxu0
    %v599 = vadd.f32 %v296, %v598
    %600 = vmatprep.mubr.f32.mxu0 0.0
    %601 = vmatmul.mubr.f32.gmra.mrb[0].mxu0 %v144
    %v602 = vpop.f32.mrb[0].mxu0
    %v603 = vadd.f32 %v292, %v602
    %v604 = vpop.f32.mrb[0].mxu0
    %v605 = vadd.f32 %v296, %v604
    %606 = vmatprep.mubr.f32.mxu0 0.0
    %607 = vmatmul.mubr.f32.gmra.mrb[0].mxu0 %v145
    %v608 = vpop.f32.mrb[0].mxu0
    %v609 = vadd.f32 %v292, %v608
    %v610 = vpop.f32.mrb[0].mxu0
    %v611 = vadd.f32 %v296, %v610
    %612 = vmatprep.mubr.f32.mxu0 0.0
    %613 = vmatmul.mubr.f32.gmra.mrb[0].mxu0 %v146
    %v614 = vpop.f32.mrb[0].mxu0
    %v615 = vadd.f32 %v292, %v614
    %v616 = vpop.f32.mrb[0].mxu0
    %v617 = vadd.f32 %v296, %v616
    %618 = vmatprep.mubr.f32.mxu0 0.0
    %619 = vmatmul.mubr.f32.gmra.mrb[0].mxu0 %v147
    %v620 = vpop.f32.mrb[0].mxu0
    %v621 = vadd.f32 %v292, %v620
    %v622 = vpop.f32.mrb[0].mxu0
    %v623 = vadd.f32 %v296, %v622
    %624 = vmatprep.mubr.f32.mxu0 0.0
    %625 = vmatmul.mubr.f32.gmra.mrb[0].mxu0 %v148
    %v626 = vpop.f32.mrb[0].mxu0
    %v627 = vadd.f32 %v292, %v626
    %v628 = vpop.f32.mrb[0].mxu0
    %v629 = vadd.f32 %v296, %v628
    %630 = vmatprep.mubr.f32.mxu0 0.0
    %631 = vmatmul.mubr.f32.gmra.mrb[0].mxu0 %v149
    %v632 = vpop.f32.mrb[0].mxu0
    %v633 = vadd.f32 %v292, %v632
    %v634 = vpop.f32.mrb[0].mxu0
    %v635 = vadd.f32 %v296, %v634
    %636 = vmatprep.mubr.f32.mxu0 0.0
    %637 = vmatmul.mubr.f32.gmra.mrb[0].mxu0 %v150
    %v638 = vpop.f32.mrb[0].mxu0
    %v639 = vadd.f32 %v292, %v638
    %v640 = vpop.f32.mrb[0].mxu0
    %v641 = vadd.f32 %v296, %v640
    %642 = vdwg.mxu0
    %643 = vmatprep.subr.mxu0 %v156
    %644 = vmatpush1.msra.mxu0 %v155
    %645 = vmatprep.subr.mxu0 %v164
    %646 = vmatpush1.msra.mxu0 %v163
    %647 = vmatprep.subr.mxu0 %v172
    %648 = vmatpush1.msra.mxu0 %v171
    %649 = vmatprep.subr.mxu0 %v180
    %650 = vmatpush1.msra.mxu0 %v179
    %651 = vmatprep.subr.mxu0 %v188
    %652 = vmatpush1.msra.mxu0 %v187
    %653 = vmatprep.subr.mxu0 %v196
    %654 = vmatpush1.msra.mxu0 %v195
    %655 = vmatprep.subr.mxu0 %v204
    %656 = vmatpush1.msra.mxu0 %v203
    %657 = vmatprep.subr.mxu0 %v212
    %658 = vmatpush1.msra.mxu0 %v211
    %659 = vmatprep.subr.mxu0 %v220
    %660 = vmatpush1.msra.mxu0 %v219
    %661 = vmatprep.subr.mxu0 %v228
    %662 = vmatpush1.msra.mxu0 %v227
    %663 = vmatprep.subr.mxu0 %v236
    %664 = vmatpush1.msra.mxu0 %v235
    %665 = vmatprep.subr.mxu0 %v244
    %666 = vmatpush1.msra.mxu0 %v243
    %667 = vmatprep.subr.mxu0 %v252
    %668 = vmatpush1.msra.mxu0 %v251
    %669 = vmatprep.subr.mxu0 %v260
    %670 = vmatpush1.msra.mxu0 %v259
    %671 = vmatprep.subr.mxu0 %v268
    %672 = vmatpush1.msra.mxu0 %v267
    %673 = vmatprep.subr.mxu0 %v276
    %674 = vmatpush1.msra.mxu0 %v275
    %675 = vmatprep.subr.mxu0 0.0
    %676 = vmatpush1.msra.mxu0 0.0
    %677 = vmatprep.subr.mxu0 0.0
    %678 = vmatpush1.msra.mxu0 0.0
    %679 = vmatprep.subr.mxu0 0.0
    %680 = vmatpush1.msra.mxu0 0.0
    %681 = vmatprep.subr.mxu0 0.0
    %682 = vmatpush1.msra.mxu0 0.0
    %683 = vmatprep.subr.mxu0 0.0
    %684 = vmatpush1.msra.mxu0 0.0
    %685 = vmatprep.subr.mxu0 0.0
    %686 = vmatpush1.msra.mxu0 0.0
    %687 = vmatprep.subr.mxu0 0.0
    %688 = vmatpush1.msra.mxu0 0.0
    %689 = vmatprep.subr.mxu0 0.0
    %690 = vmatpush1.msra.mxu0 0.0
    %691 = vmatprep.subr.mxu0 0.0
    %692 = vmatpush1.msra.mxu0 0.0
    %693 = vmatprep.subr.mxu0 0.0
    %694 = vmatpush1.msra.mxu0 0.0
    %695 = vmatprep.subr.mxu0 0.0
    %696 = vmatpush1.msra.mxu0 0.0
    %697 = vmatprep.subr.mxu0 0.0
    %698 = vmatpush1.msra.mxu0 0.0
    %699 = vmatprep.subr.mxu0 0.0
    %700 = vmatpush1.msra.mxu0 0.0
    %701 = vmatprep.subr.mxu0 0.0
    %702 = vmatpush1.msra.mxu0 0.0
    %703 = vmatprep.subr.mxu0 0.0
    %704 = vmatpush1.msra.mxu0 0.0
    %705 = vmatprep.subr.mxu0 0.0
    %706 = vmatpush1.msra.mxu0 0.0
    %707 = vmatprep.mubr.f32.mxu0 0.0
    %708 = vmatmul.mubr.f32.gmra.mrb[0].mxu0 %v135
    %v709 = vpop.f32.mrb[0].mxu0
    %v710 = vadd.f32 %v300, %v709
    %v711 = vpop.f32.mrb[0].mxu0
    %v712 = vadd.f32 %v304, %v711
    %713 = vmatprep.mubr.f32.mxu0 0.0
    %714 = vmatmul.mubr.f32.gmra.mrb[0].mxu0 %v136
    %v715 = vpop.f32.mrb[0].mxu0
    %v716 = vadd.f32 %v300, %v715
    %v717 = vpop.f32.mrb[0].mxu0
    %v718 = vadd.f32 %v304, %v717
    %719 = vmatprep.mubr.f32.mxu0 0.0
    %720 = vmatmul.mubr.f32.gmra.mrb[0].mxu0 %v137
    %v721 = vpop.f32.mrb[0].mxu0
    %v722 = vadd.f32 %v300, %v721
    %v723 = vpop.f32.mrb[0].mxu0
    %v724 = vadd.f32 %v304, %v723
    %725 = vmatprep.mubr.f32.mxu0 0.0
    %726 = vmatmul.mubr.f32.gmra.mrb[0].mxu0 %v138
    %v727 = vpop.f32.mrb[0].mxu0
    %v728 = vadd.f32 %v300, %v727
    %v729 = vpop.f32.mrb[0].mxu0
    %v730 = vadd.f32 %v304, %v729
    %731 = vmatprep.mubr.f32.mxu0 0.0
    %732 = vmatmul.mubr.f32.gmra.mrb[0].mxu0 %v139
    %v733 = vpop.f32.mrb[0].mxu0
    %v734 = vadd.f32 %v300, %v733
    %v735 = vpop.f32.mrb[0].mxu0
    %v736 = vadd.f32 %v304, %v735
    %737 = vmatprep.mubr.f32.mxu0 0.0
    %738 = vmatmul.mubr.f32.gmra.mrb[0].mxu0 %v140
    %v739 = vpop.f32.mrb[0].mxu0
    %v740 = vadd.f32 %v300, %v739
    %v741 = vpop.f32.mrb[0].mxu0
    %v742 = vadd.f32 %v304, %v741
    %743 = vmatprep.mubr.f32.mxu0 0.0
    %744 = vmatmul.mubr.f32.gmra.mrb[0].mxu0 %v141
    %v745 = vpop.f32.mrb[0].mxu0
    %v746 = vadd.f32 %v300, %v745
    %v747 = vpop.f32.mrb[0].mxu0
    %v748 = vadd.f32 %v304, %v747
    %749 = vmatprep.mubr.f32.mxu0 0.0
    %750 = vmatmul.mubr.f32.gmra.mrb[0].mxu0 %v142
    %v751 = vpop.f32.mrb[0].mxu0
    %v752 = vadd.f32 %v300, %v751
    %v753 = vpop.f32.mrb[0].mxu0
    %v754 = vadd.f32 %v304, %v753
    %755 = vmatprep.mubr.f32.mxu0 0.0
    %756 = vmatmul.mubr.f32.gmra.mrb[0].mxu0 %v143
    %v757 = vpop.f32.mrb[0].mxu0
    %v758 = vadd.f32 %v300, %v757
    %v759 = vpop.f32.mrb[0].mxu0
    %v760 = vadd.f32 %v304, %v759
    %761 = vmatprep.mubr.f32.mxu0 0.0
    %762 = vmatmul.mubr.f32.gmra.mrb[0].mxu0 %v144
    %v763 = vpop.f32.mrb[0].mxu0
    %v764 = vadd.f32 %v300, %v763
    %v765 = vpop.f32.mrb[0].mxu0
    %v766 = vadd.f32 %v304, %v765
    %767 = vmatprep.mubr.f32.mxu0 0.0
    %768 = vmatmul.mubr.f32.gmra.mrb[0].mxu0 %v145
    %v769 = vpop.f32.mrb[0].mxu0
    %v770 = vadd.f32 %v300, %v769
    %v771 = vpop.f32.mrb[0].mxu0
    %v772 = vadd.f32 %v304, %v771
    %773 = vmatprep.mubr.f32.mxu0 0.0
    %774 = vmatmul.mubr.f32.gmra.mrb[0].mxu0 %v146
    %v775 = vpop.f32.mrb[0].mxu0
    %v776 = vadd.f32 %v300, %v775
    %v777 = vpop.f32.mrb[0].mxu0
    %v778 = vadd.f32 %v304, %v777
    %779 = vmatprep.mubr.f32.mxu0 0.0
    %780 = vmatmul.mubr.f32.gmra.mrb[0].mxu0 %v147
    %v781 = vpop.f32.mrb[0].mxu0
    %v782 = vadd.f32 %v300, %v781
    %v783 = vpop.f32.mrb[0].mxu0
    %v784 = vadd.f32 %v304, %v783
    %785 = vmatprep.mubr.f32.mxu0 0.0
    %786 = vmatmul.mubr.f32.gmra.mrb[0].mxu0 %v148
    %v787 = vpop.f32.mrb[0].mxu0
    %v788 = vadd.f32 %v300, %v787
    %v789 = vpop.f32.mrb[0].mxu0
    %v790 = vadd.f32 %v304, %v789
    %791 = vmatprep.mubr.f32.mxu0 0.0
    %792 = vmatmul.mubr.f32.gmra.mrb[0].mxu0 %v149
    %v793 = vpop.f32.mrb[0].mxu0
    %v794 = vadd.f32 %v300, %v793
    %v795 = vpop.f32.mrb[0].mxu0
    %v796 = vadd.f32 %v304, %v795
    %797 = vmatprep.mubr.f32.mxu0 0.0
    %798 = vmatmul.mubr.f32.gmra.mrb[0].mxu0 %v150
    %v799 = vpop.f32.mrb[0].mxu0
    %v800 = vadd.f32 %v300, %v799
    %v801 = vpop.f32.mrb[0].mxu0
    %v802 = vadd.f32 %v304, %v801
    %803 = vdwg.mxu0
    %804 = vmatprep.subr.mxu0 %v158
    %805 = vmatpush1.msra.mxu0 %v157
    %806 = vmatprep.subr.mxu0 %v166
    %807 = vmatpush1.msra.mxu0 %v165
    %808 = vmatprep.subr.mxu0 %v174
    %809 = vmatpush1.msra.mxu0 %v173
    %810 = vmatprep.subr.mxu0 %v182
    %811 = vmatpush1.msra.mxu0 %v181
    %812 = vmatprep.subr.mxu0 %v190
    %813 = vmatpush1.msra.mxu0 %v189
    %814 = vmatprep.subr.mxu0 %v198
    %815 = vmatpush1.msra.mxu0 %v197
    %816 = vmatprep.subr.mxu0 %v206
    %817 = vmatpush1.msra.mxu0 %v205
    %818 = vmatprep.subr.mxu0 %v214
    %819 = vmatpush1.msra.mxu0 %v213
    %820 = vmatprep.subr.mxu0 %v222
    %821 = vmatpush1.msra.mxu0 %v221
    %822 = vmatprep.subr.mxu0 %v230
    %823 = vmatpush1.msra.mxu0 %v229
    %824 = vmatprep.subr.mxu0 %v238
    %825 = vmatpush1.msra.mxu0 %v237
    %826 = vmatprep.subr.mxu0 %v246
    %827 = vmatpush1.msra.mxu0 %v245
    %828 = vmatprep.subr.mxu0 %v254
    %829 = vmatpush1.msra.mxu0 %v253
    %830 = vmatprep.subr.mxu0 %v262
    %831 = vmatpush1.msra.mxu0 %v261
    %832 = vmatprep.subr.mxu0 %v270
    %833 = vmatpush1.msra.mxu0 %v269
    %834 = vmatprep.subr.mxu0 %v278
    %835 = vmatpush1.msra.mxu0 %v277
    %836 = vmatprep.subr.mxu0 0.0
    %837 = vmatpush1.msra.mxu0 0.0
    %838 = vmatprep.subr.mxu0 0.0
    %839 = vmatpush1.msra.mxu0 0.0
    %840 = vmatprep.subr.mxu0 0.0
    %841 = vmatpush1.msra.mxu0 0.0
    %842 = vmatprep.subr.mxu0 0.0
    %843 = vmatpush1.msra.mxu0 0.0
    %844 = vmatprep.subr.mxu0 0.0
    %845 = vmatpush1.msra.mxu0 0.0
    %846 = vmatprep.subr.mxu0 0.0
    %847 = vmatpush1.msra.mxu0 0.0
    %848 = vmatprep.subr.mxu0 0.0
    %849 = vmatpush1.msra.mxu0 0.0
    %850 = vmatprep.subr.mxu0 0.0
    %851 = vmatpush1.msra.mxu0 0.0
    %852 = vmatprep.subr.mxu0 0.0
    %853 = vmatpush1.msra.mxu0 0.0
    %854 = vmatprep.subr.mxu0 0.0
    %855 = vmatpush1.msra.mxu0 0.0
    %856 = vmatprep.subr.mxu0 0.0
    %857 = vmatpush1.msra.mxu0 0.0
    %858 = vmatprep.subr.mxu0 0.0
    %859 = vmatpush1.msra.mxu0 0.0
    %860 = vmatprep.subr.mxu0 0.0
    %861 = vmatpush1.msra.mxu0 0.0
    %862 = vmatprep.subr.mxu0 0.0
    %863 = vmatpush1.msra.mxu0 0.0
    %864 = vmatprep.subr.mxu0 0.0
    %865 = vmatpush1.msra.mxu0 0.0
    %866 = vmatprep.subr.mxu0 0.0
    %867 = vmatpush1.msra.mxu0 0.0
    %868 = vmatprep.mubr.f32.mxu0 0.0
    %869 = vmatmul.mubr.f32.gmra.mrb[0].mxu0 %v135
    %v870 = vpop.f32.mrb[0].mxu0
    %v871 = vadd.f32 %v308, %v870
    %v872 = vpop.f32.mrb[0].mxu0
    %v873 = vadd.f32 %v312, %v872
    %874 = vmatprep.mubr.f32.mxu0 0.0
    %875 = vmatmul.mubr.f32.gmra.mrb[0].mxu0 %v136
    %v876 = vpop.f32.mrb[0].mxu0
    %v877 = vadd.f32 %v308, %v876
    %v878 = vpop.f32.mrb[0].mxu0
    %v879 = vadd.f32 %v312, %v878
    %880 = vmatprep.mubr.f32.mxu0 0.0
    %881 = vmatmul.mubr.f32.gmra.mrb[0].mxu0 %v137
    %v882 = vpop.f32.mrb[0].mxu0
    %v883 = vadd.f32 %v308, %v882
    %v884 = vpop.f32.mrb[0].mxu0
    %v885 = vadd.f32 %v312, %v884
    %886 = vmatprep.mubr.f32.mxu0 0.0
    %887 = vmatmul.mubr.f32.gmra.mrb[0].mxu0 %v138
    %v888 = vpop.f32.mrb[0].mxu0
    %v889 = vadd.f32 %v308, %v888
    %v890 = vpop.f32.mrb[0].mxu0
    %v891 = vadd.f32 %v312, %v890
    %892 = vmatprep.mubr.f32.mxu0 0.0
    %893 = vmatmul.mubr.f32.gmra.mrb[0].mxu0 %v139
    %v894 = vpop.f32.mrb[0].mxu0
    %v895 = vadd.f32 %v308, %v894
    %v896 = vpop.f32.mrb[0].mxu0
    %v897 = vadd.f32 %v312, %v896
    %898 = vmatprep.mubr.f32.mxu0 0.0
    %899 = vmatmul.mubr.f32.gmra.mrb[0].mxu0 %v140
    %v900 = vpop.f32.mrb[0].mxu0
    %v901 = vadd.f32 %v308, %v900
    %v902 = vpop.f32.mrb[0].mxu0
    %v903 = vadd.f32 %v312, %v902
    %904 = vmatprep.mubr.f32.mxu0 0.0
    %905 = vmatmul.mubr.f32.gmra.mrb[0].mxu0 %v141
    %v906 = vpop.f32.mrb[0].mxu0
    %v907 = vadd.f32 %v308, %v906
    %v908 = vpop.f32.mrb[0].mxu0
    %v909 = vadd.f32 %v312, %v908
    %910 = vmatprep.mubr.f32.mxu0 0.0
    %911 = vmatmul.mubr.f32.gmra.mrb[0].mxu0 %v142
    %v912 = vpop.f32.mrb[0].mxu0
    %v913 = vadd.f32 %v308, %v912
    %v914 = vpop.f32.mrb[0].mxu0
    %v915 = vadd.f32 %v312, %v914
    %916 = vmatprep.mubr.f32.mxu0 0.0
    %917 = vmatmul.mubr.f32.gmra.mrb[0].mxu0 %v143
    %v918 = vpop.f32.mrb[0].mxu0
    %v919 = vadd.f32 %v308, %v918
    %v920 = vpop.f32.mrb[0].mxu0
    %v921 = vadd.f32 %v312, %v920
    %922 = vmatprep.mubr.f32.mxu0 0.0
    %923 = vmatmul.mubr.f32.gmra.mrb[0].mxu0 %v144
    %v924 = vpop.f32.mrb[0].mxu0
    %v925 = vadd.f32 %v308, %v924
    %v926 = vpop.f32.mrb[0].mxu0
    %v927 = vadd.f32 %v312, %v926
    %928 = vmatprep.mubr.f32.mxu0 0.0
    %929 = vmatmul.mubr.f32.gmra.mrb[0].mxu0 %v145
    %v930 = vpop.f32.mrb[0].mxu0
    %v931 = vadd.f32 %v308, %v930
    %v932 = vpop.f32.mrb[0].mxu0
    %v933 = vadd.f32 %v312, %v932
    %934 = vmatprep.mubr.f32.mxu0 0.0
    %935 = vmatmul.mubr.f32.gmra.mrb[0].mxu0 %v146
    %v936 = vpop.f32.mrb[0].mxu0
    %v937 = vadd.f32 %v308, %v936
    %v938 = vpop.f32.mrb[0].mxu0
    %v939 = vadd.f32 %v312, %v938
    %940 = vmatprep.mubr.f32.mxu0 0.0
    %941 = vmatmul.mubr.f32.gmra.mrb[0].mxu0 %v147
    %v942 = vpop.f32.mrb[0].mxu0
    %v943 = vadd.f32 %v308, %v942
    %v944 = vpop.f32.mrb[0].mxu0
    %v945 = vadd.f32 %v312, %v944
    %946 = vmatprep.mubr.f32.mxu0 0.0
    %947 = vmatmul.mubr.f32.gmra.mrb[0].mxu0 %v148
    %v948 = vpop.f32.mrb[0].mxu0
    %v949 = vadd.f32 %v308, %v948
    %v950 = vpop.f32.mrb[0].mxu0
    %v951 = vadd.f32 %v312, %v950
    %952 = vmatprep.mubr.f32.mxu0 0.0
    %953 = vmatmul.mubr.f32.gmra.mrb[0].mxu0 %v149
    %v954 = vpop.f32.mrb[0].mxu0
    %v955 = vadd.f32 %v308, %v954
    %v956 = vpop.f32.mrb[0].mxu0
    %v957 = vadd.f32 %v312, %v956
    %958 = vmatprep.mubr.f32.mxu0 0.0
    %959 = vmatmul.mubr.f32.gmra.mrb[0].mxu0 %v150
    %v960 = vpop.f32.mrb[0].mxu0
    %v961 = vadd.f32 %v308, %v960
    %v962 = vpop.f32.mrb[0].mxu0
    %v963 = vadd.f32 %v312, %v962
    %964 = vdwg.mxu0
    %vm965 = vcmp.gt.f32.partialorder %v388, 0.0
    %vm966 = vcmp.gt.f32.partialorder %v390, 0.0
    %vm967 = vcmp.gt.f32.partialorder %v549, 0.0
    %vm968 = vcmp.gt.f32.partialorder %v551, 0.0
    %vm969 = vcmp.gt.f32.partialorder %v710, 0.0
    %vm970 = vcmp.gt.f32.partialorder %v712, 0.0
    %vm971 = vcmp.gt.f32.partialorder %v871, 0.0
    %vm972 = vcmp.gt.f32.partialorder %v873, 0.0
    %vm973 = vcmp.gt.f32.partialorder %v394, 0.0
    %vm974 = vcmp.gt.f32.partialorder %v396, 0.0
    %vm975 = vcmp.gt.f32.partialorder %v555, 0.0
    %vm976 = vcmp.gt.f32.partialorder %v557, 0.0
    %vm977 = vcmp.gt.f32.partialorder %v716, 0.0
    %vm978 = vcmp.gt.f32.partialorder %v718, 0.0
    %vm979 = vcmp.gt.f32.partialorder %v877, 0.0
    %vm980 = vcmp.gt.f32.partialorder %v879, 0.0
    %vm981 = vcmp.gt.f32.partialorder %v400, 0.0
    %vm982 = vcmp.gt.f32.partialorder %v402, 0.0
    %vm983 = vcmp.gt.f32.partialorder %v561, 0.0
    %vm984 = vcmp.gt.f32.partialorder %v563, 0.0
    %vm985 = vcmp.gt.f32.partialorder %v722, 0.0
    %vm986 = vcmp.gt.f32.partialorder %v724, 0.0
    %vm987 = vcmp.gt.f32.partialorder %v883, 0.0
    %vm988 = vcmp.gt.f32.partialorder %v885, 0.0
    %vm989 = vcmp.gt.f32.partialorder %v406, 0.0
    %vm990 = vcmp.gt.f32.partialorder %v408, 0.0
    %vm991 = vcmp.gt.f32.partialorder %v567, 0.0
    %vm992 = vcmp.gt.f32.partialorder %v569, 0.0
    %vm993 = vcmp.gt.f32.partialorder %v728, 0.0
    %vm994 = vcmp.gt.f32.partialorder %v730, 0.0
    %vm995 = vcmp.gt.f32.partialorder %v889, 0.0
    %vm996 = vcmp.gt.f32.partialorder %v891, 0.0
    %vm997 = vcmp.gt.f32.partialorder %v412, 0.0
    %vm998 = vcmp.gt.f32.partialorder %v414, 0.0
    %vm999 = vcmp.gt.f32.partialorder %v573, 0.0
    %vm1000 = vcmp.gt.f32.partialorder %v575, 0.0
    %vm1001 = vcmp.gt.f32.partialorder %v734, 0.0
    %vm1002 = vcmp.gt.f32.partialorder %v736, 0.0
    %vm1003 = vcmp.gt.f32.partialorder %v895, 0.0
    %vm1004 = vcmp.gt.f32.partialorder %v897, 0.0
    %vm1005 = vcmp.gt.f32.partialorder %v418, 0.0
    %vm1006 = vcmp.gt.f32.partialorder %v420, 0.0
    %vm1007 = vcmp.gt.f32.partialorder %v579, 0.0
    %vm1008 = vcmp.gt.f32.partialorder %v581, 0.0
    %vm1009 = vcmp.gt.f32.partialorder %v740, 0.0
    %vm1010 = vcmp.gt.f32.partialorder %v742, 0.0
    %vm1011 = vcmp.gt.f32.partialorder %v901, 0.0
    %vm1012 = vcmp.gt.f32.partialorder %v903, 0.0
    %vm1013 = vcmp.gt.f32.partialorder %v424, 0.0
    %vm1014 = vcmp.gt.f32.partialorder %v426, 0.0
    %vm1015 = vcmp.gt.f32.partialorder %v585, 0.0
    %vm1016 = vcmp.gt.f32.partialorder %v587, 0.0
    %vm1017 = vcmp.gt.f32.partialorder %v746, 0.0
    %vm1018 = vcmp.gt.f32.partialorder %v748, 0.0
    %vm1019 = vcmp.gt.f32.partialorder %v907, 0.0
    %vm1020 = vcmp.gt.f32.partialorder %v909, 0.0
    %vm1021 = vcmp.gt.f32.partialorder %v430, 0.0
    %vm1022 = vcmp.gt.f32.partialorder %v432, 0.0
    %vm1023 = vcmp.gt.f32.partialorder %v591, 0.0
    %vm1024 = vcmp.gt.f32.partialorder %v593, 0.0
    %vm1025 = vcmp.gt.f32.partialorder %v752, 0.0
    %vm1026 = vcmp.gt.f32.partialorder %v754, 0.0
    %vm1027 = vcmp.gt.f32.partialorder %v913, 0.0
    %vm1028 = vcmp.gt.f32.partialorder %v915, 0.0
    %vm1029 = vcmp.gt.f32.partialorder %v436, 0.0
    %vm1030 = vcmp.gt.f32.partialorder %v438, 0.0
    %vm1031 = vcmp.gt.f32.partialorder %v597, 0.0
    %vm1032 = vcmp.gt.f32.partialorder %v599, 0.0
    %vm1033 = vcmp.gt.f32.partialorder %v758, 0.0
    %vm1034 = vcmp.gt.f32.partialorder %v760, 0.0
    %vm1035 = vcmp.gt.f32.partialorder %v919, 0.0
    %vm1036 = vcmp.gt.f32.partialorder %v921, 0.0
    %vm1037 = vcmp.gt.f32.partialorder %v442, 0.0
    %vm1038 = vcmp.gt.f32.partialorder %v444, 0.0
    %vm1039 = vcmp.gt.f32.partialorder %v603, 0.0
    %vm1040 = vcmp.gt.f32.partialorder %v605, 0.0
    %vm1041 = vcmp.gt.f32.partialorder %v764, 0.0
    %vm1042 = vcmp.gt.f32.partialorder %v766, 0.0
    %vm1043 = vcmp.gt.f32.partialorder %v925, 0.0
    %vm1044 = vcmp.gt.f32.partialorder %v927, 0.0
    %vm1045 = vcmp.gt.f32.partialorder %v448, 0.0
    %vm1046 = vcmp.gt.f32.partialorder %v450, 0.0
    %vm1047 = vcmp.gt.f32.partialorder %v609, 0.0
    %vm1048 = vcmp.gt.f32.partialorder %v611, 0.0
    %vm1049 = vcmp.gt.f32.partialorder %v770, 0.0
    %vm1050 = vcmp.gt.f32.partialorder %v772, 0.0
    %vm1051 = vcmp.gt.f32.partialorder %v931, 0.0
    %vm1052 = vcmp.gt.f32.partialorder %v933, 0.0
    %vm1053 = vcmp.gt.f32.partialorder %v454, 0.0
    %vm1054 = vcmp.gt.f32.partialorder %v456, 0.0
    %vm1055 = vcmp.gt.f32.partialorder %v615, 0.0
    %vm1056 = vcmp.gt.f32.partialorder %v617, 0.0
    %vm1057 = vcmp.gt.f32.partialorder %v776, 0.0
    %vm1058 = vcmp.gt.f32.partialorder %v778, 0.0
    %vm1059 = vcmp.gt.f32.partialorder %v937, 0.0
    %vm1060 = vcmp.gt.f32.partialorder %v939, 0.0
    %vm1061 = vcmp.gt.f32.partialorder %v460, 0.0
    %vm1062 = vcmp.gt.f32.partialorder %v462, 0.0
    %vm1063 = vcmp.gt.f32.partialorder %v621, 0.0
    %vm1064 = vcmp.gt.f32.partialorder %v623, 0.0
    %vm1065 = vcmp.gt.f32.partialorder %v782, 0.0
    %vm1066 = vcmp.gt.f32.partialorder %v784, 0.0
    %vm1067 = vcmp.gt.f32.partialorder %v943, 0.0
    %vm1068 = vcmp.gt.f32.partialorder %v945, 0.0
    %vm1069 = vcmp.gt.f32.partialorder %v466, 0.0
    %vm1070 = vcmp.gt.f32.partialorder %v468, 0.0
    %vm1071 = vcmp.gt.f32.partialorder %v627, 0.0
    %vm1072 = vcmp.gt.f32.partialorder %v629, 0.0
    %vm1073 = vcmp.gt.f32.partialorder %v788, 0.0
    %vm1074 = vcmp.gt.f32.partialorder %v790, 0.0
    %vm1075 = vcmp.gt.f32.partialorder %v949, 0.0
    %vm1076 = vcmp.gt.f32.partialorder %v951, 0.0
    %vm1077 = vcmp.gt.f32.partialorder %v472, 0.0
    %vm1078 = vcmp.gt.f32.partialorder %v474, 0.0
    %vm1079 = vcmp.gt.f32.partialorder %v633, 0.0
    %vm1080 = vcmp.gt.f32.partialorder %v635, 0.0
    %vm1081 = vcmp.gt.f32.partialorder %v794, 0.0
    %vm1082 = vcmp.gt.f32.partialorder %v796, 0.0
    %vm1083 = vcmp.gt.f32.partialorder %v955, 0.0
    %vm1084 = vcmp.gt.f32.partialorder %v957, 0.0
    %vm1085 = vcmp.gt.f32.partialorder %v478, 0.0
    %vm1086 = vcmp.gt.f32.partialorder %v480, 0.0
    %vm1087 = vcmp.gt.f32.partialorder %v639, 0.0
    %vm1088 = vcmp.gt.f32.partialorder %v641, 0.0
    %vm1089 = vcmp.gt.f32.partialorder %v800, 0.0
    %vm1090 = vcmp.gt.f32.partialorder %v802, 0.0
    %vm1091 = vcmp.gt.f32.partialorder %v961, 0.0
    %vm1092 = vcmp.gt.f32.partialorder %v963, 0.0
    %v1093 = vmul.f32 %v388, 0.01
    %v1094 = vmul.f32 %v390, 0.01
    %v1095 = vmul.f32 %v549, 0.01
    %v1096 = vmul.f32 %v551, 0.01
    %v1097 = vmul.f32 %v710, 0.01
    %v1098 = vmul.f32 %v712, 0.01
    %v1099 = vmul.f32 %v871, 0.01
    %v1100 = vmul.f32 %v873, 0.01
    %v1101 = vmul.f32 %v394, 0.01
    %v1102 = vmul.f32 %v396, 0.01
    %v1103 = vmul.f32 %v555, 0.01
    %v1104 = vmul.f32 %v557, 0.01
    %v1105 = vmul.f32 %v716, 0.01
    %v1106 = vmul.f32 %v718, 0.01
    %v1107 = vmul.f32 %v877, 0.01
    %v1108 = vmul.f32 %v879, 0.01
    %v1109 = vmul.f32 %v400, 0.01
    %v1110 = vmul.f32 %v402, 0.01
    %v1111 = vmul.f32 %v561, 0.01
    %v1112 = vmul.f32 %v563, 0.01
    %v1113 = vmul.f32 %v722, 0.01
    %v1114 = vmul.f32 %v724, 0.01
    %v1115 = vmul.f32 %v883, 0.01
    %v1116 = vmul.f32 %v885, 0.01
    %v1117 = vmul.f32 %v406, 0.01
    %v1118 = vmul.f32 %v408, 0.01
    %v1119 = vmul.f32 %v567, 0.01
    %v1120 = vmul.f32 %v569, 0.01
    %v1121 = vmul.f32 %v728, 0.01
    %v1122 = vmul.f32 %v730, 0.01
    %v1123 = vmul.f32 %v889, 0.01
    %v1124 = vmul.f32 %v891, 0.01
    %v1125 = vmul.f32 %v412, 0.01
    %v1126 = vmul.f32 %v414, 0.01
    %v1127 = vmul.f32 %v573, 0.01
    %v1128 = vmul.f32 %v575, 0.01
    %v1129 = vmul.f32 %v734, 0.01
    %v1130 = vmul.f32 %v736, 0.01
    %v1131 = vmul.f32 %v895, 0.01
    %v1132 = vmul.f32 %v897, 0.01
    %v1133 = vmul.f32 %v418, 0.01
    %v1134 = vmul.f32 %v420, 0.01
    %v1135 = vmul.f32 %v579, 0.01
    %v1136 = vmul.f32 %v581, 0.01
    %v1137 = vmul.f32 %v740, 0.01
    %v1138 = vmul.f32 %v742, 0.01
    %v1139 = vmul.f32 %v901, 0.01
    %v1140 = vmul.f32 %v903, 0.01
    %v1141 = vmul.f32 %v424, 0.01
    %v1142 = vmul.f32 %v426, 0.01
    %v1143 = vmul.f32 %v585, 0.01
    %v1144 = vmul.f32 %v587, 0.01
    %v1145 = vmul.f32 %v746, 0.01
    %v1146 = vmul.f32 %v748, 0.01
    %v1147 = vmul.f32 %v907, 0.01
    %v1148 = vmul.f32 %v909, 0.01
    %v1149 = vmul.f32 %v430, 0.01
    %v1150 = vmul.f32 %v432, 0.01
    %v1151 = vmul.f32 %v591, 0.01
    %v1152 = vmul.f32 %v593, 0.01
    %v1153 = vmul.f32 %v752, 0.01
    %v1154 = vmul.f32 %v754, 0.01
    %v1155 = vmul.f32 %v913, 0.01
    %v1156 = vmul.f32 %v915, 0.01
    %v1157 = vmul.f32 %v436, 0.01
    %v1158 = vmul.f32 %v438, 0.01
    %v1159 = vmul.f32 %v597, 0.01
    %v1160 = vmul.f32 %v599, 0.01
    %v1161 = vmul.f32 %v758, 0.01
    %v1162 = vmul.f32 %v760, 0.01
    %v1163 = vmul.f32 %v919, 0.01
    %v1164 = vmul.f32 %v921, 0.01
    %v1165 = vmul.f32 %v442, 0.01
    %v1166 = vmul.f32 %v444, 0.01
    %v1167 = vmul.f32 %v603, 0.01
    %v1168 = vmul.f32 %v605, 0.01
    %v1169 = vmul.f32 %v764, 0.01
    %v1170 = vmul.f32 %v766, 0.01
    %v1171 = vmul.f32 %v925, 0.01
    %v1172 = vmul.f32 %v927, 0.01
    %v1173 = vmul.f32 %v448, 0.01
    %v1174 = vmul.f32 %v450, 0.01
    %v1175 = vmul.f32 %v609, 0.01
    %v1176 = vmul.f32 %v611, 0.01
    %v1177 = vmul.f32 %v770, 0.01
    %v1178 = vmul.f32 %v772, 0.01
    %v1179 = vmul.f32 %v931, 0.01
    %v1180 = vmul.f32 %v933, 0.01
    %v1181 = vmul.f32 %v454, 0.01
    %v1182 = vmul.f32 %v456, 0.01
    %v1183 = vmul.f32 %v615, 0.01
    %v1184 = vmul.f32 %v617, 0.01
    %v1185 = vmul.f32 %v776, 0.01
    %v1186 = vmul.f32 %v778, 0.01
    %v1187 = vmul.f32 %v937, 0.01
    %v1188 = vmul.f32 %v939, 0.01
    %v1189 = vmul.f32 %v460, 0.01
    %v1190 = vmul.f32 %v462, 0.01
    %v1191 = vmul.f32 %v621, 0.01
    %v1192 = vmul.f32 %v623, 0.01
    %v1193 = vmul.f32 %v782, 0.01
    %v1194 = vmul.f32 %v784, 0.01
    %v1195 = vmul.f32 %v943, 0.01
    %v1196 = vmul.f32 %v945, 0.01
    %v1197 = vmul.f32 %v466, 0.01
    %v1198 = vmul.f32 %v468, 0.01
    %v1199 = vmul.f32 %v627, 0.01
    %v1200 = vmul.f32 %v629, 0.01
    %v1201 = vmul.f32 %v788, 0.01
    %v1202 = vmul.f32 %v790, 0.01
    %v1203 = vmul.f32 %v949, 0.01
    %v1204 = vmul.f32 %v951, 0.01
    %v1205 = vmul.f32 %v472, 0.01
    %v1206 = vmul.f32 %v474, 0.01
    %v1207 = vmul.f32 %v633, 0.01
    %v1208 = vmul.f32 %v635, 0.01
    %v1209 = vmul.f32 %v794, 0.01
    %v1210 = vmul.f32 %v796, 0.01
    %v1211 = vmul.f32 %v955, 0.01
    %v1212 = vmul.f32 %v957, 0.01
    %v1213 = vmul.f32 %v478, 0.01
    %v1214 = vmul.f32 %v480, 0.01
    %v1215 = vmul.f32 %v639, 0.01
    %v1216 = vmul.f32 %v641, 0.01
    %v1217 = vmul.f32 %v800, 0.01
    %v1218 = vmul.f32 %v802, 0.01
    %v1219 = vmul.f32 %v961, 0.01
    %v1220 = vmul.f32 %v963, 0.01
    %v1221 = vsel %vm965, %v388, %v1093
    %v1222 = vsel %vm966, %v390, %v1094
    %v1223 = vsel %vm967, %v549, %v1095
    %v1224 = vsel %vm968, %v551, %v1096
    %v1225 = vsel %vm969, %v710, %v1097
    %v1226 = vsel %vm970, %v712, %v1098
    %v1227 = vsel %vm971, %v871, %v1099
    %v1228 = vsel %vm972, %v873, %v1100
    %v1229 = vsel %vm973, %v394, %v1101
    %v1230 = vsel %vm974, %v396, %v1102
    %v1231 = vsel %vm975, %v555, %v1103
    %v1232 = vsel %vm976, %v557, %v1104
    %v1233 = vsel %vm977, %v716, %v1105
    %v1234 = vsel %vm978, %v718, %v1106
    %v1235 = vsel %vm979, %v877, %v1107
    %v1236 = vsel %vm980, %v879, %v1108
    %v1237 = vsel %vm981, %v400, %v1109
    %v1238 = vsel %vm982, %v402, %v1110
    %v1239 = vsel %vm983, %v561, %v1111
    %v1240 = vsel %vm984, %v563, %v1112
    %v1241 = vsel %vm985, %v722, %v1113
    %v1242 = vsel %vm986, %v724, %v1114
    %v1243 = vsel %vm987, %v883, %v1115
    %v1244 = vsel %vm988, %v885, %v1116
    %v1245 = vsel %vm989, %v406, %v1117
    %v1246 = vsel %vm990, %v408, %v1118
    %v1247 = vsel %vm991, %v567, %v1119
    %v1248 = vsel %vm992, %v569, %v1120
    %v1249 = vsel %vm993, %v728, %v1121
    %v1250 = vsel %vm994, %v730, %v1122
    %v1251 = vsel %vm995, %v889, %v1123
    %v1252 = vsel %vm996, %v891, %v1124
    %v1253 = vsel %vm997, %v412, %v1125
    %v1254 = vsel %vm998, %v414, %v1126
    %v1255 = vsel %vm999, %v573, %v1127
    %v1256 = vsel %vm1000, %v575, %v1128
    %v1257 = vsel %vm1001, %v734, %v1129
    %v1258 = vsel %vm1002, %v736, %v1130
    %v1259 = vsel %vm1003, %v895, %v1131
    %v1260 = vsel %vm1004, %v897, %v1132
    %v1261 = vsel %vm1005, %v418, %v1133
    %v1262 = vsel %vm1006, %v420, %v1134
    %v1263 = vsel %vm1007, %v579, %v1135
    %v1264 = vsel %vm1008, %v581, %v1136
    %v1265 = vsel %vm1009, %v740, %v1137
    %v1266 = vsel %vm1010, %v742, %v1138
    %v1267 = vsel %vm1011, %v901, %v1139
    %v1268 = vsel %vm1012, %v903, %v1140
    %v1269 = vsel %vm1013, %v424, %v1141
    %v1270 = vsel %vm1014, %v426, %v1142
    %v1271 = vsel %vm1015, %v585, %v1143
    %v1272 = vsel %vm1016, %v587, %v1144
    %v1273 = vsel %vm1017, %v746, %v1145
    %v1274 = vsel %vm1018, %v748, %v1146
    %v1275 = vsel %vm1019, %v907, %v1147
    %v1276 = vsel %vm1020, %v909, %v1148
    %v1277 = vsel %vm1021, %v430, %v1149
    %v1278 = vsel %vm1022, %v432, %v1150
    %v1279 = vsel %vm1023, %v591, %v1151
    %v1280 = vsel %vm1024, %v593, %v1152
    %v1281 = vsel %vm1025, %v752, %v1153
    %v1282 = vsel %vm1026, %v754, %v1154
    %v1283 = vsel %vm1027, %v913, %v1155
    %v1284 = vsel %vm1028, %v915, %v1156
    %v1285 = vsel %vm1029, %v436, %v1157
    %v1286 = vsel %vm1030, %v438, %v1158
    %v1287 = vsel %vm1031, %v597, %v1159
    %v1288 = vsel %vm1032, %v599, %v1160
    %v1289 = vsel %vm1033, %v758, %v1161
    %v1290 = vsel %vm1034, %v760, %v1162
    %v1291 = vsel %vm1035, %v919, %v1163
    %v1292 = vsel %vm1036, %v921, %v1164
    %v1293 = vsel %vm1037, %v442, %v1165
    %v1294 = vsel %vm1038, %v444, %v1166
    %v1295 = vsel %vm1039, %v603, %v1167
    %v1296 = vsel %vm1040, %v605, %v1168
    %v1297 = vsel %vm1041, %v764, %v1169
    %v1298 = vsel %vm1042, %v766, %v1170
    %v1299 = vsel %vm1043, %v925, %v1171
    %v1300 = vsel %vm1044, %v927, %v1172
    %v1301 = vsel %vm1045, %v448, %v1173
    %v1302 = vsel %vm1046, %v450, %v1174
    %v1303 = vsel %vm1047, %v609, %v1175
    %v1304 = vsel %vm1048, %v611, %v1176
    %v1305 = vsel %vm1049, %v770, %v1177
    %v1306 = vsel %vm1050, %v772, %v1178
    %v1307 = vsel %vm1051, %v931, %v1179
    %v1308 = vsel %vm1052, %v933, %v1180
    %v1309 = vsel %vm1053, %v454, %v1181
    %v1310 = vsel %vm1054, %v456, %v1182
    %v1311 = vsel %vm1055, %v615, %v1183
    %v1312 = vsel %vm1056, %v617, %v1184
    %v1313 = vsel %vm1057, %v776, %v1185
    %v1314 = vsel %vm1058, %v778, %v1186
    %v1315 = vsel %vm1059, %v937, %v1187
    %v1316 = vsel %vm1060, %v939, %v1188
    %v1317 = vsel %vm1061, %v460, %v1189
    %v1318 = vsel %vm1062, %v462, %v1190
    %v1319 = vsel %vm1063, %v621, %v1191
    %v1320 = vsel %vm1064, %v623, %v1192
    %v1321 = vsel %vm1065, %v782, %v1193
    %v1322 = vsel %vm1066, %v784, %v1194
    %v1323 = vsel %vm1067, %v943, %v1195
    %v1324 = vsel %vm1068, %v945, %v1196
    %v1325 = vsel %vm1069, %v466, %v1197
    %v1326 = vsel %vm1070, %v468, %v1198
    %v1327 = vsel %vm1071, %v627, %v1199
    %v1328 = vsel %vm1072, %v629, %v1200
    %v1329 = vsel %vm1073, %v788, %v1201
    %v1330 = vsel %vm1074, %v790, %v1202
    %v1331 = vsel %vm1075, %v949, %v1203
    %v1332 = vsel %vm1076, %v951, %v1204
    %v1333 = vsel %vm1077, %v472, %v1205
    %v1334 = vsel %vm1078, %v474, %v1206
    %v1335 = vsel %vm1079, %v633, %v1207
    %v1336 = vsel %vm1080, %v635, %v1208
    %v1337 = vsel %vm1081, %v794, %v1209
    %v1338 = vsel %vm1082, %v796, %v1210
    %v1339 = vsel %vm1083, %v955, %v1211
    %v1340 = vsel %vm1084, %v957, %v1212
    %v1341 = vsel %vm1085, %v478, %v1213
    %v1342 = vsel %vm1086, %v480, %v1214
    %v1343 = vsel %vm1087, %v639, %v1215
    %v1344 = vsel %vm1088, %v641, %v1216
    %v1345 = vsel %vm1089, %v800, %v1217
    %v1346 = vsel %vm1090, %v802, %v1218
    %v1347 = vsel %vm1091, %v961, %v1219
    %v1348 = vsel %vm1092, %v963, %v1220
    %v1349 = vld [vmem:[#allocation8] sm:$0xff]
    %v1350 = vld [vmem:[#allocation8 + $0x8] sm:$0xff]
    %v1351 = vld [vmem:[#allocation8 + $0x10] sm:$0xff]
    %v1352 = vld [vmem:[#allocation8 + $0x18] sm:$0xff]
    %v1353 = vld [vmem:[#allocation8 + $0x20] sm:$0xff]
    %v1354 = vld [vmem:[#allocation8 + $0x28] sm:$0xff]
    %v1355 = vld [vmem:[#allocation8 + $0x30] sm:$0xff]
    %v1356 = vld [vmem:[#allocation8 + $0x38] sm:$0xff]
    %v1357 = vld [vmem:[#allocation8 + $0x40] sm:$0xff]
    %v1358 = vld [vmem:[#allocation8 + $0x48] sm:$0xff]
    %v1359 = vld [vmem:[#allocation8 + $0x50] sm:$0xff]
    %v1360 = vld [vmem:[#allocation8 + $0x58] sm:$0xff]
    %v1361 = vld [vmem:[#allocation8 + $0x60] sm:$0xff]
    %v1362 = vld [vmem:[#allocation8 + $0x68] sm:$0xff]
    %v1363 = vld [vmem:[#allocation8 + $0x70] sm:$0xff]
    %v1364 = vld [vmem:[#allocation8 + $0x78] sm:$0xff]
    %v1365 = vld [vmem:[#allocation8 + $0x80] sm:$0xff]
    %v1366 = vld [vmem:[#allocation8 + $0x88] sm:$0xff]
    %v1367 = vld [vmem:[#allocation8 + $0x90] sm:$0xff]
    %v1368 = vld [vmem:[#allocation8 + $0x98] sm:$0xff]
    %v1369 = vld [vmem:[#allocation8 + $0xa0] sm:$0xff]
    %v1370 = vld [vmem:[#allocation8 + $0xa8] sm:$0xff]
    %v1371 = vld [vmem:[#allocation8 + $0xb0] sm:$0xff]
    %v1372 = vld [vmem:[#allocation8 + $0xb8] sm:$0xff]
    %v1373 = vld [vmem:[#allocation8 + $0xc0] sm:$0xff]
    %v1374 = vld [vmem:[#allocation8 + $0xc8] sm:$0xff]
    %v1375 = vld [vmem:[#allocation8 + $0xd0] sm:$0xff]
    %v1376 = vld [vmem:[#allocation8 + $0xd8] sm:$0xff]
    %v1377 = vld [vmem:[#allocation8 + $0xe0] sm:$0xff]
    %v1378 = vld [vmem:[#allocation8 + $0xe8] sm:$0xff]
    %v1379 = vld [vmem:[#allocation8 + $0xf0] sm:$0xff]
    %v1380 = vld [vmem:[#allocation8 + $0xf8] sm:$0xff]
    %v1381 = vld [vmem:[#allocation8 + $0x100] sm:$0xff]
    %v1382 = vld [vmem:[#allocation8 + $0x108] sm:$0xff]
    %v1383 = vld [vmem:[#allocation8 + $0x110] sm:$0xff]
    %v1384 = vld [vmem:[#allocation8 + $0x118] sm:$0xff]
    %v1385 = vld [vmem:[#allocation8 + $0x120] sm:$0xff]
    %v1386 = vld [vmem:[#allocation8 + $0x128] sm:$0xff]
    %v1387 = vld [vmem:[#allocation8 + $0x130] sm:$0xff]
    %v1388 = vld [vmem:[#allocation8 + $0x138] sm:$0xff]
    %v1389 = vld [vmem:[#allocation8 + $0x140] sm:$0xff]
    %v1390 = vld [vmem:[#allocation8 + $0x148] sm:$0xff]
    %v1391 = vld [vmem:[#allocation8 + $0x150] sm:$0xff]
    %v1392 = vld [vmem:[#allocation8 + $0x158] sm:$0xff]
    %v1393 = vld [vmem:[#allocation8 + $0x160] sm:$0xff]
    %v1394 = vld [vmem:[#allocation8 + $0x168] sm:$0xff]
    %v1395 = vld [vmem:[#allocation8 + $0x170] sm:$0xff]
    %v1396 = vld [vmem:[#allocation8 + $0x178] sm:$0xff]
    %v1397 = vld [vmem:[#allocation8 + $0x180] sm:$0xff]
    %v1398 = vld [vmem:[#allocation8 + $0x188] sm:$0xff]
    %v1399 = vld [vmem:[#allocation8 + $0x190] sm:$0xff]
    %v1400 = vld [vmem:[#allocation8 + $0x198] sm:$0xff]
    %v1401 = vld [vmem:[#allocation8 + $0x1a0] sm:$0xff]
    %v1402 = vld [vmem:[#allocation8 + $0x1a8] sm:$0xff]
    %v1403 = vld [vmem:[#allocation8 + $0x1b0] sm:$0xff]
    %v1404 = vld [vmem:[#allocation8 + $0x1b8] sm:$0xff]
    %v1405 = vld [vmem:[#allocation8 + $0x1c0] sm:$0xff]
    %v1406 = vld [vmem:[#allocation8 + $0x1c8] sm:$0xff]
    %v1407 = vld [vmem:[#allocation8 + $0x1d0] sm:$0xff]
    %v1408 = vld [vmem:[#allocation8 + $0x1d8] sm:$0xff]
    %v1409 = vld [vmem:[#allocation8 + $0x1e0] sm:$0xff]
    %v1410 = vld [vmem:[#allocation8 + $0x1e8] sm:$0xff]
    %v1411 = vld [vmem:[#allocation8 + $0x1f0] sm:$0xff]
    %v1412 = vld [vmem:[#allocation8 + $0x1f8] sm:$0xff]
    %v1413 = vld [vmem:[#allocation8 + $0x200] sm:$0xff]
    %v1414 = vld [vmem:[#allocation8 + $0x208] sm:$0xff]
    %v1415 = vld [vmem:[#allocation8 + $0x210] sm:$0xff]
    %v1416 = vld [vmem:[#allocation8 + $0x218] sm:$0xff]
    %v1417 = vld [vmem:[#allocation8 + $0x220] sm:$0xff]
    %v1418 = vld [vmem:[#allocation8 + $0x228] sm:$0xff]
    %v1419 = vld [vmem:[#allocation8 + $0x230] sm:$0xff]
    %v1420 = vld [vmem:[#allocation8 + $0x238] sm:$0xff]
    %v1421 = vld [vmem:[#allocation8 + $0x240] sm:$0xff]
    %v1422 = vld [vmem:[#allocation8 + $0x248] sm:$0xff]
    %v1423 = vld [vmem:[#allocation8 + $0x250] sm:$0xff]
    %v1424 = vld [vmem:[#allocation8 + $0x258] sm:$0xff]
    %v1425 = vld [vmem:[#allocation8 + $0x260] sm:$0xff]
    %v1426 = vld [vmem:[#allocation8 + $0x268] sm:$0xff]
    %v1427 = vld [vmem:[#allocation8 + $0x270] sm:$0xff]
    %v1428 = vld [vmem:[#allocation8 + $0x278] sm:$0xff]
    %v1429 = vld [vmem:[#allocation8 + $0x280] sm:$0xff]
    %v1430 = vld [vmem:[#allocation8 + $0x288] sm:$0xff]
    %v1431 = vld [vmem:[#allocation8 + $0x290] sm:$0xff]
    %v1432 = vld [vmem:[#allocation8 + $0x298] sm:$0xff]
    %v1433 = vld [vmem:[#allocation8 + $0x2a0] sm:$0xff]
    %v1434 = vld [vmem:[#allocation8 + $0x2a8] sm:$0xff]
    %v1435 = vld [vmem:[#allocation8 + $0x2b0] sm:$0xff]
    %v1436 = vld [vmem:[#allocation8 + $0x2b8] sm:$0xff]
    %v1437 = vld [vmem:[#allocation8 + $0x2c0] sm:$0xff]
    %v1438 = vld [vmem:[#allocation8 + $0x2c8] sm:$0xff]
    %v1439 = vld [vmem:[#allocation8 + $0x2d0] sm:$0xff]
    %v1440 = vld [vmem:[#allocation8 + $0x2d8] sm:$0xff]
    %v1441 = vld [vmem:[#allocation8 + $0x2e0] sm:$0xff]
    %v1442 = vld [vmem:[#allocation8 + $0x2e8] sm:$0xff]
    %v1443 = vld [vmem:[#allocation8 + $0x2f0] sm:$0xff]
    %v1444 = vld [vmem:[#allocation8 + $0x2f8] sm:$0xff]
    %v1445 = vld [vmem:[#allocation8 + $0x300] sm:$0xff]
    %v1446 = vld [vmem:[#allocation8 + $0x308] sm:$0xff]
    %v1447 = vld [vmem:[#allocation8 + $0x310] sm:$0xff]
    %v1448 = vld [vmem:[#allocation8 + $0x318] sm:$0xff]
    %v1449 = vld [vmem:[#allocation8 + $0x320] sm:$0xff]
    %v1450 = vld [vmem:[#allocation8 + $0x328] sm:$0xff]
    %v1451 = vld [vmem:[#allocation8 + $0x330] sm:$0xff]
    %v1452 = vld [vmem:[#allocation8 + $0x338] sm:$0xff]
    %v1453 = vld [vmem:[#allocation8 + $0x340] sm:$0xff]
    %v1454 = vld [vmem:[#allocation8 + $0x348] sm:$0xff]
    %v1455 = vld [vmem:[#allocation8 + $0x350] sm:$0xff]
    %v1456 = vld [vmem:[#allocation8 + $0x358] sm:$0xff]
    %v1457 = vld [vmem:[#allocation8 + $0x360] sm:$0xff]
    %v1458 = vld [vmem:[#allocation8 + $0x368] sm:$0xff]
    %v1459 = vld [vmem:[#allocation8 + $0x370] sm:$0xff]
    %v1460 = vld [vmem:[#allocation8 + $0x378] sm:$0xff]
    %v1461 = vld [vmem:[#allocation8 + $0x380] sm:$0xff]
    %v1462 = vld [vmem:[#allocation8 + $0x388] sm:$0xff]
    %v1463 = vld [vmem:[#allocation8 + $0x390] sm:$0xff]
    %v1464 = vld [vmem:[#allocation8 + $0x398] sm:$0xff]
    %v1465 = vld [vmem:[#allocation8 + $0x3a0] sm:$0xff]
    %v1466 = vld [vmem:[#allocation8 + $0x3a8] sm:$0xff]
    %v1467 = vld [vmem:[#allocation8 + $0x3b0] sm:$0xff]
    %v1468 = vld [vmem:[#allocation8 + $0x3b8] sm:$0xff]
    %v1469 = vld [vmem:[#allocation8 + $0x3c0] sm:$0xff]
    %v1470 = vld [vmem:[#allocation8 + $0x3c8] sm:$0xff]
    %v1471 = vld [vmem:[#allocation8 + $0x3d0] sm:$0xff]
    %v1472 = vld [vmem:[#allocation8 + $0x3d8] sm:$0xff]
    %v1473 = vld [vmem:[#allocation8 + $0x3e0] sm:$0xff]
    %v1474 = vld [vmem:[#allocation8 + $0x3e8] sm:$0xff]
    %v1475 = vld [vmem:[#allocation8 + $0x3f0] sm:$0xff]
    %v1476 = vld [vmem:[#allocation8 + $0x3f8] sm:$0xff]
    %v1477 = vld [vmem:[#allocation8 + $0x400] sm:$0xff]
    %v1478 = vld [vmem:[#allocation8 + $0x408] sm:$0xff]
    %v1479 = vld [vmem:[#allocation8 + $0x410] sm:$0xff]
    %v1480 = vld [vmem:[#allocation8 + $0x418] sm:$0xff]
    %v1481 = vld [vmem:[#allocation8 + $0x420] sm:$0xff]
    %v1482 = vld [vmem:[#allocation8 + $0x428] sm:$0xff]
    %v1483 = vld [vmem:[#allocation8 + $0x430] sm:$0xff]
    %v1484 = vld [vmem:[#allocation8 + $0x438] sm:$0xff]
    %v1485 = vld [vmem:[#allocation8 + $0x440] sm:$0xff]
    %v1486 = vld [vmem:[#allocation8 + $0x448] sm:$0xff]
    %v1487 = vld [vmem:[#allocation8 + $0x450] sm:$0xff]
    %v1488 = vld [vmem:[#allocation8 + $0x458] sm:$0xff]
    %v1489 = vld [vmem:[#allocation8 + $0x460] sm:$0xff]
    %v1490 = vld [vmem:[#allocation8 + $0x468] sm:$0xff]
    %v1491 = vld [vmem:[#allocation8 + $0x470] sm:$0xff]
    %v1492 = vld [vmem:[#allocation8 + $0x478] sm:$0xff]
    %v1493 = vld [vmem:[#allocation8 + $0x480] sm:$0xff]
    %v1494 = vld [vmem:[#allocation8 + $0x488] sm:$0xff]
    %v1495 = vld [vmem:[#allocation8 + $0x490] sm:$0xff]
    %v1496 = vld [vmem:[#allocation8 + $0x498] sm:$0xff]
    %v1497 = vld [vmem:[#allocation8 + $0x4a0] sm:$0xff]
    %v1498 = vld [vmem:[#allocation8 + $0x4a8] sm:$0xff]
    %v1499 = vld [vmem:[#allocation8 + $0x4b0] sm:$0xff]
    %v1500 = vld [vmem:[#allocation8 + $0x4b8] sm:$0xff]
    %v1501 = vld [vmem:[#allocation8 + $0x4c0] sm:$0xff]
    %v1502 = vld [vmem:[#allocation8 + $0x4c8] sm:$0xff]
    %v1503 = vld [vmem:[#allocation8 + $0x4d0] sm:$0xff]
    %v1504 = vld [vmem:[#allocation8 + $0x4d8] sm:$0xff]
    %v1505 = vld [vmem:[#allocation8 + $0x4e0] sm:$0xff]
    %v1506 = vld [vmem:[#allocation8 + $0x4e8] sm:$0xff]
    %v1507 = vld [vmem:[#allocation8 + $0x4f0] sm:$0xff]
    %v1508 = vld [vmem:[#allocation8 + $0x4f8] sm:$0xff]
    %v1509 = vld [vmem:[#allocation8 + $0x500] sm:$0xff]
    %v1510 = vld [vmem:[#allocation8 + $0x508] sm:$0xff]
    %v1511 = vld [vmem:[#allocation8 + $0x510] sm:$0xff]
    %v1512 = vld [vmem:[#allocation8 + $0x518] sm:$0xff]
    %v1513 = vld [vmem:[#allocation8 + $0x520] sm:$0xff]
    %v1514 = vld [vmem:[#allocation8 + $0x528] sm:$0xff]
    %v1515 = vld [vmem:[#allocation8 + $0x530] sm:$0xff]
    %v1516 = vld [vmem:[#allocation8 + $0x538] sm:$0xff]
    %v1517 = vld [vmem:[#allocation8 + $0x540] sm:$0xff]
    %v1518 = vld [vmem:[#allocation8 + $0x548] sm:$0xff]
    %v1519 = vld [vmem:[#allocation8 + $0x550] sm:$0xff]
    %v1520 = vld [vmem:[#allocation8 + $0x558] sm:$0xff]
    %v1521 = vld [vmem:[#allocation8 + $0x560] sm:$0xff]
    %v1522 = vld [vmem:[#allocation8 + $0x568] sm:$0xff]
    %v1523 = vld [vmem:[#allocation8 + $0x570] sm:$0xff]
    %v1524 = vld [vmem:[#allocation8 + $0x578] sm:$0xff]
    %v1525 = vld [vmem:[#allocation8 + $0x580] sm:$0xff]
    %v1526 = vld [vmem:[#allocation8 + $0x588] sm:$0xff]
    %v1527 = vld [vmem:[#allocation8 + $0x590] sm:$0xff]
    %v1528 = vld [vmem:[#allocation8 + $0x598] sm:$0xff]
    %v1529 = vld [vmem:[#allocation8 + $0x5a0] sm:$0xff]
    %v1530 = vld [vmem:[#allocation8 + $0x5a8] sm:$0xff]
    %v1531 = vld [vmem:[#allocation8 + $0x5b0] sm:$0xff]
    %v1532 = vld [vmem:[#allocation8 + $0x5b8] sm:$0xff]
    %v1533 = vld [vmem:[#allocation8 + $0x5c0] sm:$0xff]
    %v1534 = vld [vmem:[#allocation8 + $0x5c8] sm:$0xff]
    %v1535 = vld [vmem:[#allocation8 + $0x5d0] sm:$0xff]
    %v1536 = vld [vmem:[#allocation8 + $0x5d8] sm:$0xff]
    %v1537 = vld [vmem:[#allocation8 + $0x5e0] sm:$0xff]
    %v1538 = vld [vmem:[#allocation8 + $0x5e8] sm:$0xff]
    %v1539 = vld [vmem:[#allocation8 + $0x5f0] sm:$0xff]
    %v1540 = vld [vmem:[#allocation8 + $0x5f8] sm:$0xff]
    %v1541 = vld [vmem:[#allocation8 + $0x600] sm:$0xff]
    %v1542 = vld [vmem:[#allocation8 + $0x608] sm:$0xff]
    %v1543 = vld [vmem:[#allocation8 + $0x610] sm:$0xff]
    %v1544 = vld [vmem:[#allocation8 + $0x618] sm:$0xff]
    %v1545 = vld [vmem:[#allocation8 + $0x620] sm:$0xff]
    %v1546 = vld [vmem:[#allocation8 + $0x628] sm:$0xff]
    %v1547 = vld [vmem:[#allocation8 + $0x630] sm:$0xff]
    %v1548 = vld [vmem:[#allocation8 + $0x638] sm:$0xff]
    %v1549 = vld [vmem:[#allocation8 + $0x640] sm:$0xff]
    %v1550 = vld [vmem:[#allocation8 + $0x648] sm:$0xff]
    %v1551 = vld [vmem:[#allocation8 + $0x650] sm:$0xff]
    %v1552 = vld [vmem:[#allocation8 + $0x658] sm:$0xff]
    %v1553 = vld [vmem:[#allocation8 + $0x660] sm:$0xff]
    %v1554 = vld [vmem:[#allocation8 + $0x668] sm:$0xff]
    %v1555 = vld [vmem:[#allocation8 + $0x670] sm:$0xff]
    %v1556 = vld [vmem:[#allocation8 + $0x678] sm:$0xff]
    %v1557 = vld [vmem:[#allocation8 + $0x680] sm:$0xff]
    %v1558 = vld [vmem:[#allocation8 + $0x688] sm:$0xff]
    %v1559 = vld [vmem:[#allocation8 + $0x690] sm:$0xff]
    %v1560 = vld [vmem:[#allocation8 + $0x698] sm:$0xff]
    %v1561 = vld [vmem:[#allocation8 + $0x6a0] sm:$0xff]
    %v1562 = vld [vmem:[#allocation8 + $0x6a8] sm:$0xff]
    %v1563 = vld [vmem:[#allocation8 + $0x6b0] sm:$0xff]
    %v1564 = vld [vmem:[#allocation8 + $0x6b8] sm:$0xff]
    %v1565 = vld [vmem:[#allocation8 + $0x6c0] sm:$0xff]
    %v1566 = vld [vmem:[#allocation8 + $0x6c8] sm:$0xff]
    %v1567 = vld [vmem:[#allocation8 + $0x6d0] sm:$0xff]
    %v1568 = vld [vmem:[#allocation8 + $0x6d8] sm:$0xff]
    %v1569 = vld [vmem:[#allocation8 + $0x6e0] sm:$0xff]
    %v1570 = vld [vmem:[#allocation8 + $0x6e8] sm:$0xff]
    %v1571 = vld [vmem:[#allocation8 + $0x6f0] sm:$0xff]
    %v1572 = vld [vmem:[#allocation8 + $0x6f8] sm:$0xff]
    %v1573 = vld [vmem:[#allocation8 + $0x700] sm:$0xff]
    %v1574 = vld [vmem:[#allocation8 + $0x708] sm:$0xff]
    %v1575 = vld [vmem:[#allocation8 + $0x710] sm:$0xff]
    %v1576 = vld [vmem:[#allocation8 + $0x718] sm:$0xff]
    %v1577 = vld [vmem:[#allocation8 + $0x720] sm:$0xff]
    %v1578 = vld [vmem:[#allocation8 + $0x728] sm:$0xff]
    %v1579 = vld [vmem:[#allocation8 + $0x730] sm:$0xff]
    %v1580 = vld [vmem:[#allocation8 + $0x738] sm:$0xff]
    %v1581 = vld [vmem:[#allocation8 + $0x740] sm:$0xff]
    %v1582 = vld [vmem:[#allocation8 + $0x748] sm:$0xff]
    %v1583 = vld [vmem:[#allocation8 + $0x750] sm:$0xff]
    %v1584 = vld [vmem:[#allocation8 + $0x758] sm:$0xff]
    %v1585 = vld [vmem:[#allocation8 + $0x760] sm:$0xff]
    %v1586 = vld [vmem:[#allocation8 + $0x768] sm:$0xff]
    %v1587 = vld [vmem:[#allocation8 + $0x770] sm:$0xff]
    %v1588 = vld [vmem:[#allocation8 + $0x778] sm:$0xff]
    %v1589 = vld [vmem:[#allocation8 + $0x780] sm:$0xff]
    %v1590 = vld [vmem:[#allocation8 + $0x788] sm:$0xff]
    %v1591 = vld [vmem:[#allocation8 + $0x790] sm:$0xff]
    %v1592 = vld [vmem:[#allocation8 + $0x798] sm:$0xff]
    %v1593 = vld [vmem:[#allocation8 + $0x7a0] sm:$0xff]
    %v1594 = vld [vmem:[#allocation8 + $0x7a8] sm:$0xff]
    %v1595 = vld [vmem:[#allocation8 + $0x7b0] sm:$0xff]
    %v1596 = vld [vmem:[#allocation8 + $0x7b8] sm:$0xff]
    %v1597 = vld [vmem:[#allocation8 + $0x7c0] sm:$0xff]
    %v1598 = vld [vmem:[#allocation8 + $0x7c8] sm:$0xff]
    %v1599 = vld [vmem:[#allocation8 + $0x7d0] sm:$0xff]
    %v1600 = vld [vmem:[#allocation8 + $0x7d8] sm:$0xff]
    %v1601 = vld [vmem:[#allocation8 + $0x7e0] sm:$0xff]
    %v1602 = vld [vmem:[#allocation8 + $0x7e8] sm:$0xff]
    %v1603 = vld [vmem:[#allocation8 + $0x7f0] sm:$0xff]
    %v1604 = vld [vmem:[#allocation8 + $0x7f8] sm:$0xff]
    %v1605 = vld [vmem:[#allocation8 + $0x800] sm:$0xff]
    %v1606 = vld [vmem:[#allocation8 + $0x808] sm:$0xff]
    %v1607 = vld [vmem:[#allocation8 + $0x810] sm:$0xff]
    %v1608 = vld [vmem:[#allocation8 + $0x818] sm:$0xff]
    %v1609 = vld [vmem:[#allocation8 + $0x820] sm:$0xff]
    %v1610 = vld [vmem:[#allocation8 + $0x828] sm:$0xff]
    %v1611 = vld [vmem:[#allocation8 + $0x830] sm:$0xff]
    %v1612 = vld [vmem:[#allocation8 + $0x838] sm:$0xff]
    %v1613 = vld [vmem:[#allocation8 + $0x840] sm:$0xff]
    %v1614 = vld [vmem:[#allocation8 + $0x848] sm:$0xff]
    %v1615 = vld [vmem:[#allocation8 + $0x850] sm:$0xff]
    %v1616 = vld [vmem:[#allocation8 + $0x858] sm:$0xff]
    %v1617 = vld [vmem:[#allocation8 + $0x860] sm:$0xff]
    %v1618 = vld [vmem:[#allocation8 + $0x868] sm:$0xff]
    %v1619 = vld [vmem:[#allocation8 + $0x870] sm:$0xff]
    %v1620 = vld [vmem:[#allocation8 + $0x878] sm:$0xff]
    %v1621 = vld [vmem:[#allocation8 + $0x880] sm:$0xff]
    %v1622 = vld [vmem:[#allocation8 + $0x888] sm:$0xff]
    %v1623 = vld [vmem:[#allocation8 + $0x890] sm:$0xff]
    %v1624 = vld [vmem:[#allocation8 + $0x898] sm:$0xff]
    %v1625 = vld [vmem:[#allocation8 + $0x8a0] sm:$0xff]
    %v1626 = vld [vmem:[#allocation8 + $0x8a8] sm:$0xff]
    %v1627 = vld [vmem:[#allocation8 + $0x8b0] sm:$0xff]
    %v1628 = vld [vmem:[#allocation8 + $0x8b8] sm:$0xff]
    %v1629 = vld [vmem:[#allocation8 + $0x8c0] sm:$0xff]
    %v1630 = vld [vmem:[#allocation8 + $0x8c8] sm:$0xff]
    %v1631 = vld [vmem:[#allocation8 + $0x8d0] sm:$0xff]
    %v1632 = vld [vmem:[#allocation8 + $0x8d8] sm:$0xff]
    %v1633 = vld [vmem:[#allocation8 + $0x8e0] sm:$0xff]
    %v1634 = vld [vmem:[#allocation8 + $0x8e8] sm:$0xff]
    %v1635 = vld [vmem:[#allocation8 + $0x8f0] sm:$0xff]
    %v1636 = vld [vmem:[#allocation8 + $0x8f8] sm:$0xff]
    %v1637 = vld [vmem:[#allocation8 + $0x900] sm:$0xff]
    %v1638 = vld [vmem:[#allocation8 + $0x908] sm:$0xff]
    %v1639 = vld [vmem:[#allocation8 + $0x910] sm:$0xff]
    %v1640 = vld [vmem:[#allocation8 + $0x918] sm:$0xff]
    %v1641 = vld [vmem:[#allocation8 + $0x920] sm:$0xff]
    %v1642 = vld [vmem:[#allocation8 + $0x928] sm:$0xff]
    %v1643 = vld [vmem:[#allocation8 + $0x930] sm:$0xff]
    %v1644 = vld [vmem:[#allocation8 + $0x938] sm:$0xff]
    %v1645 = vld [vmem:[#allocation8 + $0x940] sm:$0xff]
    %v1646 = vld [vmem:[#allocation8 + $0x948] sm:$0xff]
    %v1647 = vld [vmem:[#allocation8 + $0x950] sm:$0xff]
    %v1648 = vld [vmem:[#allocation8 + $0x958] sm:$0xff]
    %v1649 = vld [vmem:[#allocation8 + $0x960] sm:$0xff]
    %v1650 = vld [vmem:[#allocation8 + $0x968] sm:$0xff]
    %v1651 = vld [vmem:[#allocation8 + $0x970] sm:$0xff]
    %v1652 = vld [vmem:[#allocation8 + $0x978] sm:$0xff]
    %v1653 = vld [vmem:[#allocation8 + $0x980] sm:$0xff]
    %v1654 = vld [vmem:[#allocation8 + $0x988] sm:$0xff]
    %v1655 = vld [vmem:[#allocation8 + $0x990] sm:$0xff]
    %v1656 = vld [vmem:[#allocation8 + $0x998] sm:$0xff]
    %v1657 = vld [vmem:[#allocation8 + $0x9a0] sm:$0xff]
    %v1658 = vld [vmem:[#allocation8 + $0x9a8] sm:$0xff]
    %v1659 = vld [vmem:[#allocation8 + $0x9b0] sm:$0xff]
    %v1660 = vld [vmem:[#allocation8 + $0x9b8] sm:$0xff]
    %v1661 = vld [vmem:[#allocation8 + $0x9c0] sm:$0xff]
    %v1662 = vld [vmem:[#allocation8 + $0x9c8] sm:$0xff]
    %v1663 = vld [vmem:[#allocation8 + $0x9d0] sm:$0xff]
    %v1664 = vld [vmem:[#allocation8 + $0x9d8] sm:$0xff]
    %v1665 = vld [vmem:[#allocation8 + $0x9e0] sm:$0xff]
    %v1666 = vld [vmem:[#allocation8 + $0x9e8] sm:$0xff]
    %v1667 = vld [vmem:[#allocation8 + $0x9f0] sm:$0xff]
    %v1668 = vld [vmem:[#allocation8 + $0x9f8] sm:$0xff]
    %v1669 = vld [vmem:[#allocation8 + $0xa00] sm:$0xff]
    %v1670 = vld [vmem:[#allocation8 + $0xa08] sm:$0xff]
    %v1671 = vld [vmem:[#allocation8 + $0xa10] sm:$0xff]
    %v1672 = vld [vmem:[#allocation8 + $0xa18] sm:$0xff]
    %v1673 = vld [vmem:[#allocation8 + $0xa20] sm:$0xff]
    %v1674 = vld [vmem:[#allocation8 + $0xa28] sm:$0xff]
    %v1675 = vld [vmem:[#allocation8 + $0xa30] sm:$0xff]
    %v1676 = vld [vmem:[#allocation8 + $0xa38] sm:$0xff]
    %v1677 = vld [vmem:[#allocation8 + $0xa40] sm:$0xff]
    %v1678 = vld [vmem:[#allocation8 + $0xa48] sm:$0xff]
    %v1679 = vld [vmem:[#allocation8 + $0xa50] sm:$0xff]
    %v1680 = vld [vmem:[#allocation8 + $0xa58] sm:$0xff]
    %v1681 = vld [vmem:[#allocation8 + $0xa60] sm:$0xff]
    %v1682 = vld [vmem:[#allocation8 + $0xa68] sm:$0xff]
    %v1683 = vld [vmem:[#allocation8 + $0xa70] sm:$0xff]
    %v1684 = vld [vmem:[#allocation8 + $0xa78] sm:$0xff]
    %v1685 = vld [vmem:[#allocation8 + $0xa80] sm:$0xff]
    %v1686 = vld [vmem:[#allocation8 + $0xa88] sm:$0xff]
    %v1687 = vld [vmem:[#allocation8 + $0xa90] sm:$0xff]
    %v1688 = vld [vmem:[#allocation8 + $0xa98] sm:$0xff]
    %v1689 = vld [vmem:[#allocation8 + $0xaa0] sm:$0xff]
    %v1690 = vld [vmem:[#allocation8 + $0xaa8] sm:$0xff]
    %v1691 = vld [vmem:[#allocation8 + $0xab0] sm:$0xff]
    %v1692 = vld [vmem:[#allocation8 + $0xab8] sm:$0xff]
    %v1693 = vld [vmem:[#allocation8 + $0xac0] sm:$0xff]
    %v1694 = vld [vmem:[#allocation8 + $0xac8] sm:$0xff]
    %v1695 = vld [vmem:[#allocation8 + $0xad0] sm:$0xff]
    %v1696 = vld [vmem:[#allocation8 + $0xad8] sm:$0xff]
    %v1697 = vld [vmem:[#allocation8 + $0xae0] sm:$0xff]
    %v1698 = vld [vmem:[#allocation8 + $0xae8] sm:$0xff]
    %v1699 = vld [vmem:[#allocation8 + $0xaf0] sm:$0xff]
    %v1700 = vld [vmem:[#allocation8 + $0xaf8] sm:$0xff]
    %v1701 = vld [vmem:[#allocation8 + $0xb00] sm:$0xff]
    %v1702 = vld [vmem:[#allocation8 + $0xb08] sm:$0xff]
    %v1703 = vld [vmem:[#allocation8 + $0xb10] sm:$0xff]
    %v1704 = vld [vmem:[#allocation8 + $0xb18] sm:$0xff]
    %v1705 = vld [vmem:[#allocation8 + $0xb20] sm:$0xff]
    %v1706 = vld [vmem:[#allocation8 + $0xb28] sm:$0xff]
    %v1707 = vld [vmem:[#allocation8 + $0xb30] sm:$0xff]
    %v1708 = vld [vmem:[#allocation8 + $0xb38] sm:$0xff]
    %v1709 = vld [vmem:[#allocation8 + $0xb40] sm:$0xff]
    %v1710 = vld [vmem:[#allocation8 + $0xb48] sm:$0xff]
    %v1711 = vld [vmem:[#allocation8 + $0xb50] sm:$0xff]
    %v1712 = vld [vmem:[#allocation8 + $0xb58] sm:$0xff]
    %v1713 = vld [vmem:[#allocation8 + $0xb60] sm:$0xff]
    %v1714 = vld [vmem:[#allocation8 + $0xb68] sm:$0xff]
    %v1715 = vld [vmem:[#allocation8 + $0xb70] sm:$0xff]
    %v1716 = vld [vmem:[#allocation8 + $0xb78] sm:$0xff]
    %v1717 = vld [vmem:[#allocation8 + $0xb80] sm:$0xff]
    %v1718 = vld [vmem:[#allocation8 + $0xb88] sm:$0xff]
    %v1719 = vld [vmem:[#allocation8 + $0xb90] sm:$0xff]
    %v1720 = vld [vmem:[#allocation8 + $0xb98] sm:$0xff]
    %v1721 = vld [vmem:[#allocation8 + $0xba0] sm:$0xff]
    %v1722 = vld [vmem:[#allocation8 + $0xba8] sm:$0xff]
    %v1723 = vld [vmem:[#allocation8 + $0xbb0] sm:$0xff]
    %v1724 = vld [vmem:[#allocation8 + $0xbb8] sm:$0xff]
    %v1725 = vld [vmem:[#allocation8 + $0xbc0] sm:$0xff]
    %v1726 = vld [vmem:[#allocation8 + $0xbc8] sm:$0xff]
    %v1727 = vld [vmem:[#allocation8 + $0xbd0] sm:$0xff]
    %v1728 = vld [vmem:[#allocation8 + $0xbd8] sm:$0xff]
    %v1729 = vld [vmem:[#allocation8 + $0xbe0] sm:$0xff]
    %v1730 = vld [vmem:[#allocation8 + $0xbe8] sm:$0xff]
    %v1731 = vld [vmem:[#allocation8 + $0xbf0] sm:$0xff]
    %v1732 = vld [vmem:[#allocation8 + $0xbf8] sm:$0xff]
    %v1733 = vld [vmem:[#allocation8 + $0xc00] sm:$0xff]
    %v1734 = vld [vmem:[#allocation8 + $0xc08] sm:$0xff]
    %v1735 = vld [vmem:[#allocation8 + $0xc10] sm:$0xff]
    %v1736 = vld [vmem:[#allocation8 + $0xc18] sm:$0xff]
    %v1737 = vld [vmem:[#allocation8 + $0xc20] sm:$0xff]
    %v1738 = vld [vmem:[#allocation8 + $0xc28] sm:$0xff]
    %v1739 = vld [vmem:[#allocation8 + $0xc30] sm:$0xff]
    %v1740 = vld [vmem:[#allocation8 + $0xc38] sm:$0xff]
    %v1741 = vld [vmem:[#allocation8 + $0xc40] sm:$0xff]
    %v1742 = vld [vmem:[#allocation8 + $0xc48] sm:$0xff]
    %v1743 = vld [vmem:[#allocation8 + $0xc50] sm:$0xff]
    %v1744 = vld [vmem:[#allocation8 + $0xc58] sm:$0xff]
    %v1745 = vld [vmem:[#allocation8 + $0xc60] sm:$0xff]
    %v1746 = vld [vmem:[#allocation8 + $0xc68] sm:$0xff]
    %v1747 = vld [vmem:[#allocation8 + $0xc70] sm:$0xff]
    %v1748 = vld [vmem:[#allocation8 + $0xc78] sm:$0xff]
    %v1749 = vld [vmem:[#allocation8 + $0xc80] sm:$0xff]
    %v1750 = vld [vmem:[#allocation8 + $0xc88] sm:$0xff]
    %v1751 = vld [vmem:[#allocation8 + $0xc90] sm:$0xff]
    %v1752 = vld [vmem:[#allocation8 + $0xc98] sm:$0xff]
    %v1753 = vld [vmem:[#allocation8 + $0xca0] sm:$0xff]
    %v1754 = vld [vmem:[#allocation8 + $0xca8] sm:$0xff]
    %v1755 = vld [vmem:[#allocation8 + $0xcb0] sm:$0xff]
    %v1756 = vld [vmem:[#allocation8 + $0xcb8] sm:$0xff]
    %v1757 = vld [vmem:[#allocation8 + $0xcc0] sm:$0xff]
    %v1758 = vld [vmem:[#allocation8 + $0xcc8] sm:$0xff]
    %v1759 = vld [vmem:[#allocation8 + $0xcd0] sm:$0xff]
    %v1760 = vld [vmem:[#allocation8 + $0xcd8] sm:$0xff]
    %v1761 = vld [vmem:[#allocation8 + $0xce0] sm:$0xff]
    %v1762 = vld [vmem:[#allocation8 + $0xce8] sm:$0xff]
    %v1763 = vld [vmem:[#allocation8 + $0xcf0] sm:$0xff]
    %v1764 = vld [vmem:[#allocation8 + $0xcf8] sm:$0xff]
    %v1765 = vld [vmem:[#allocation8 + $0xd00] sm:$0xff]
    %v1766 = vld [vmem:[#allocation8 + $0xd08] sm:$0xff]
    %v1767 = vld [vmem:[#allocation8 + $0xd10] sm:$0xff]
    %v1768 = vld [vmem:[#allocation8 + $0xd18] sm:$0xff]
    %v1769 = vld [vmem:[#allocation8 + $0xd20] sm:$0xff]
    %v1770 = vld [vmem:[#allocation8 + $0xd28] sm:$0xff]
    %v1771 = vld [vmem:[#allocation8 + $0xd30] sm:$0xff]
    %v1772 = vld [vmem:[#allocation8 + $0xd38] sm:$0xff]
    %v1773 = vld [vmem:[#allocation8 + $0xd40] sm:$0xff]
    %v1774 = vld [vmem:[#allocation8 + $0xd48] sm:$0xff]
    %v1775 = vld [vmem:[#allocation8 + $0xd50] sm:$0xff]
    %v1776 = vld [vmem:[#allocation8 + $0xd58] sm:$0xff]
    %v1777 = vld [vmem:[#allocation8 + $0xd60] sm:$0xff]
    %v1778 = vld [vmem:[#allocation8 + $0xd68] sm:$0xff]
    %v1779 = vld [vmem:[#allocation8 + $0xd70] sm:$0xff]
    %v1780 = vld [vmem:[#allocation8 + $0xd78] sm:$0xff]
    %v1781 = vld [vmem:[#allocation8 + $0xd80] sm:$0xff]
    %v1782 = vld [vmem:[#allocation8 + $0xd88] sm:$0xff]
    %v1783 = vld [vmem:[#allocation8 + $0xd90] sm:$0xff]
    %v1784 = vld [vmem:[#allocation8 + $0xd98] sm:$0xff]
    %v1785 = vld [vmem:[#allocation8 + $0xda0] sm:$0xff]
    %v1786 = vld [vmem:[#allocation8 + $0xda8] sm:$0xff]
    %v1787 = vld [vmem:[#allocation8 + $0xdb0] sm:$0xff]
    %v1788 = vld [vmem:[#allocation8 + $0xdb8] sm:$0xff]
    %v1789 = vld [vmem:[#allocation8 + $0xdc0] sm:$0xff]
    %v1790 = vld [vmem:[#allocation8 + $0xdc8] sm:$0xff]
    %v1791 = vld [vmem:[#allocation8 + $0xdd0] sm:$0xff]
    %v1792 = vld [vmem:[#allocation8 + $0xdd8] sm:$0xff]
    %v1793 = vld [vmem:[#allocation8 + $0xde0] sm:$0xff]
    %v1794 = vld [vmem:[#allocation8 + $0xde8] sm:$0xff]
    %v1795 = vld [vmem:[#allocation8 + $0xdf0] sm:$0xff]
    %v1796 = vld [vmem:[#allocation8 + $0xdf8] sm:$0xff]
    %v1797 = vld [vmem:[#allocation8 + $0xe00] sm:$0xff]
    %v1798 = vld [vmem:[#allocation8 + $0xe08] sm:$0xff]
    %v1799 = vld [vmem:[#allocation8 + $0xe10] sm:$0xff]
    %v1800 = vld [vmem:[#allocation8 + $0xe18] sm:$0xff]
    %v1801 = vld [vmem:[#allocation8 + $0xe20] sm:$0xff]
    %v1802 = vld [vmem:[#allocation8 + $0xe28] sm:$0xff]
    %v1803 = vld [vmem:[#allocation8 + $0xe30] sm:$0xff]
    %v1804 = vld [vmem:[#allocation8 + $0xe38] sm:$0xff]
    %v1805 = vld [vmem:[#allocation8 + $0xe40] sm:$0xff]
    %v1806 = vld [vmem:[#allocation8 + $0xe48] sm:$0xff]
    %v1807 = vld [vmem:[#allocation8 + $0xe50] sm:$0xff]
    %v1808 = vld [vmem:[#allocation8 + $0xe58] sm:$0xff]
    %v1809 = vld [vmem:[#allocation8 + $0xe60] sm:$0xff]
    %v1810 = vld [vmem:[#allocation8 + $0xe68] sm:$0xff]
    %v1811 = vld [vmem:[#allocation8 + $0xe70] sm:$0xff]
    %v1812 = vld [vmem:[#allocation8 + $0xe78] sm:$0xff]
    %v1813 = vld [vmem:[#allocation8 + $0xe80] sm:$0xff]
    %v1814 = vld [vmem:[#allocation8 + $0xe88] sm:$0xff]
    %v1815 = vld [vmem:[#allocation8 + $0xe90] sm:$0xff]
    %v1816 = vld [vmem:[#allocation8 + $0xe98] sm:$0xff]
    %v1817 = vld [vmem:[#allocation8 + $0xea0] sm:$0xff]
    %v1818 = vld [vmem:[#allocation8 + $0xea8] sm:$0xff]
    %v1819 = vld [vmem:[#allocation8 + $0xeb0] sm:$0xff]
    %v1820 = vld [vmem:[#allocation8 + $0xeb8] sm:$0xff]
    %v1821 = vld [vmem:[#allocation8 + $0xec0] sm:$0xff]
    %v1822 = vld [vmem:[#allocation8 + $0xec8] sm:$0xff]
    %v1823 = vld [vmem:[#allocation8 + $0xed0] sm:$0xff]
    %v1824 = vld [vmem:[#allocation8 + $0xed8] sm:$0xff]
    %v1825 = vld [vmem:[#allocation8 + $0xee0] sm:$0xff]
    %v1826 = vld [vmem:[#allocation8 + $0xee8] sm:$0xff]
    %v1827 = vld [vmem:[#allocation8 + $0xef0] sm:$0xff]
    %v1828 = vld [vmem:[#allocation8 + $0xef8] sm:$0xff]
    %v1829 = vld [vmem:[#allocation8 + $0xf00] sm:$0xff]
    %v1830 = vld [vmem:[#allocation8 + $0xf08] sm:$0xff]
    %v1831 = vld [vmem:[#allocation8 + $0xf10] sm:$0xff]
    %v1832 = vld [vmem:[#allocation8 + $0xf18] sm:$0xff]
    %v1833 = vld [vmem:[#allocation8 + $0xf20] sm:$0xff]
    %v1834 = vld [vmem:[#allocation8 + $0xf28] sm:$0xff]
    %v1835 = vld [vmem:[#allocation8 + $0xf30] sm:$0xff]
    %v1836 = vld [vmem:[#allocation8 + $0xf38] sm:$0xff]
    %v1837 = vld [vmem:[#allocation8 + $0xf40] sm:$0xff]
    %v1838 = vld [vmem:[#allocation8 + $0xf48] sm:$0xff]
    %v1839 = vld [vmem:[#allocation8 + $0xf50] sm:$0xff]
    %v1840 = vld [vmem:[#allocation8 + $0xf58] sm:$0xff]
    %v1841 = vld [vmem:[#allocation8 + $0xf60] sm:$0xff]
    %v1842 = vld [vmem:[#allocation8 + $0xf68] sm:$0xff]
    %v1843 = vld [vmem:[#allocation8 + $0xf70] sm:$0xff]
    %v1844 = vld [vmem:[#allocation8 + $0xf78] sm:$0xff]
    %v1845 = vld [vmem:[#allocation8 + $0xf80] sm:$0xff]
    %v1846 = vld [vmem:[#allocation8 + $0xf88] sm:$0xff]
    %v1847 = vld [vmem:[#allocation8 + $0xf90] sm:$0xff]
    %v1848 = vld [vmem:[#allocation8 + $0xf98] sm:$0xff]
    %v1849 = vld [vmem:[#allocation8 + $0xfa0] sm:$0xff]
    %v1850 = vld [vmem:[#allocation8 + $0xfa8] sm:$0xff]
    %v1851 = vld [vmem:[#allocation8 + $0xfb0] sm:$0xff]
    %v1852 = vld [vmem:[#allocation8 + $0xfb8] sm:$0xff]
    %v1853 = vld [vmem:[#allocation8 + $0xfc0] sm:$0xff]
    %v1854 = vld [vmem:[#allocation8 + $0xfc8] sm:$0xff]
    %v1855 = vld [vmem:[#allocation8 + $0xfd0] sm:$0xff]
    %v1856 = vld [vmem:[#allocation8 + $0xfd8] sm:$0xff]
    %v1857 = vld [vmem:[#allocation8 + $0xfe0] sm:$0xff]
    %v1858 = vld [vmem:[#allocation8 + $0xfe8] sm:$0xff]
    %v1859 = vld [vmem:[#allocation8 + $0xff0] sm:$0xff]
    %v1860 = vld [vmem:[#allocation8 + $0xff8] sm:$0xff]
    %v1861 = vld [vmem:[#allocation10] sm:$0xf]
    %v1863 = vlaneseq
    %v1864 = vshrl.u32 %v1863, 7
    %v1865 = vsub.s32 0, %v1864
    %v1866 = vrot.slane %v1861, %v1865
    %v1867 = vlaneseq
    %v1868 = vshrl.u32 %v1867, 7
    %v1869 = vsub.s32 1, %v1868
    %v1870 = vrot.slane %v1861, %v1869
    %v1871 = vlaneseq
    %v1872 = vshrl.u32 %v1871, 7
    %v1873 = vsub.s32 2, %v1872
    %v1874 = vrot.slane %v1861, %v1873
    %v1875 = vlaneseq
    %v1876 = vshrl.u32 %v1875, 7
    %v1877 = vsub.s32 3, %v1876
    %v1878 = vrot.slane %v1861, %v1877
    %1883 = vmatprep.subr.mxu0 %v1350
    %1884 = vmatpush1.msra.mxu0 %v1349
    %1885 = vmatprep.subr.mxu0 %v1354
    %1886 = vmatpush1.msra.mxu0 %v1353
    %1887 = vmatprep.subr.mxu0 %v1358
    %1888 = vmatpush1.msra.mxu0 %v1357
    %1889 = vmatprep.subr.mxu0 %v1362
    %1890 = vmatpush1.msra.mxu0 %v1361
    %1891 = vmatprep.subr.mxu0 %v1366
    %1892 = vmatpush1.msra.mxu0 %v1365
    %1893 = vmatprep.subr.mxu0 %v1370
    %1894 = vmatpush1.msra.mxu0 %v1369
    %1895 = vmatprep.subr.mxu0 %v1374
    %1896 = vmatpush1.msra.mxu0 %v1373
    %1897 = vmatprep.subr.mxu0 %v1378
    %1898 = vmatpush1.msra.mxu0 %v1377
    %1899 = vmatprep.subr.mxu0 %v1382
    %1900 = vmatpush1.msra.mxu0 %v1381
    %1901 = vmatprep.subr.mxu0 %v1386
    %1902 = vmatpush1.msra.mxu0 %v1385
    %1903 = vmatprep.subr.mxu0 %v1390
    %1904 = vmatpush1.msra.mxu0 %v1389
    %1905 = vmatprep.subr.mxu0 %v1394
    %1906 = vmatpush1.msra.mxu0 %v1393
    %1907 = vmatprep.subr.mxu0 %v1398
    %1908 = vmatpush1.msra.mxu0 %v1397
    %1909 = vmatprep.subr.mxu0 %v1402
    %1910 = vmatpush1.msra.mxu0 %v1401
    %1911 = vmatprep.subr.mxu0 %v1406
    %1912 = vmatpush1.msra.mxu0 %v1405
    %1913 = vmatprep.subr.mxu0 %v1410
    %1914 = vmatpush1.msra.mxu0 %v1409
    %1915 = vmatprep.subr.mxu0 %v1414
    %1916 = vmatpush1.msra.mxu0 %v1413
    %1917 = vmatprep.subr.mxu0 %v1418
    %1918 = vmatpush1.msra.mxu0 %v1417
    %1919 = vmatprep.subr.mxu0 %v1422
    %1920 = vmatpush1.msra.mxu0 %v1421
    %1921 = vmatprep.subr.mxu0 %v1426
    %1922 = vmatpush1.msra.mxu0 %v1425
    %1923 = vmatprep.subr.mxu0 %v1430
    %1924 = vmatpush1.msra.mxu0 %v1429
    %1925 = vmatprep.subr.mxu0 %v1434
    %1926 = vmatpush1.msra.mxu0 %v1433
    %1927 = vmatprep.subr.mxu0 %v1438
    %1928 = vmatpush1.msra.mxu0 %v1437
    %1929 = vmatprep.subr.mxu0 %v1442
    %1930 = vmatpush1.msra.mxu0 %v1441
    %1931 = vmatprep.subr.mxu0 %v1446
    %1932 = vmatpush1.msra.mxu0 %v1445
    %1933 = vmatprep.subr.mxu0 %v1450
    %1934 = vmatpush1.msra.mxu0 %v1449
    %1935 = vmatprep.subr.mxu0 %v1454
    %1936 = vmatpush1.msra.mxu0 %v1453
    %1937 = vmatprep.subr.mxu0 %v1458
    %1938 = vmatpush1.msra.mxu0 %v1457
    %1939 = vmatprep.subr.mxu0 %v1462
    %1940 = vmatpush1.msra.mxu0 %v1461
    %1941 = vmatprep.subr.mxu0 %v1466
    %1942 = vmatpush1.msra.mxu0 %v1465
    %1943 = vmatprep.subr.mxu0 %v1470
    %1944 = vmatpush1.msra.mxu0 %v1469
    %1945 = vmatprep.subr.mxu0 %v1474
    %1946 = vmatpush1.msra.mxu0 %v1473
    %1947 = vmatprep.mubr.f32.mxu0 %v1222
    %1948 = vmatmul.mubr.f32.gmra.mrb[0].mxu0 %v1221
    %v1949 = vpop.f32.mrb[0].mxu0
    %v1950 = vadd.f32 %v1866, %v1949
    %v1951 = vpop.f32.mrb[0].mxu0
    %v1952 = vadd.f32 %v1870, %v1951
    %1953 = vmatprep.mubr.f32.mxu0 %v1230
    %1954 = vmatmul.mubr.f32.gmra.mrb[0].mxu0 %v1229
    %v1955 = vpop.f32.mrb[0].mxu0
    %v1956 = vadd.f32 %v1866, %v1955
    %v1957 = vpop.f32.mrb[0].mxu0
    %v1958 = vadd.f32 %v1870, %v1957
    %1959 = vmatprep.mubr.f32.mxu0 %v1238
    %1960 = vmatmul.mubr.f32.gmra.mrb[0].mxu0 %v1237
    %v1961 = vpop.f32.mrb[0].mxu0
    %v1962 = vadd.f32 %v1866, %v1961
    %v1963 = vpop.f32.mrb[0].mxu0
    %v1964 = vadd.f32 %v1870, %v1963
    %1965 = vmatprep.mubr.f32.mxu0 %v1246
    %1966 = vmatmul.mubr.f32.gmra.mrb[0].mxu0 %v1245
    %v1967 = vpop.f32.mrb[0].mxu0
    %v1968 = vadd.f32 %v1866, %v1967
    %v1969 = vpop.f32.mrb[0].mxu0
    %v1970 = vadd.f32 %v1870, %v1969
    %1971 = vmatprep.mubr.f32.mxu0 %v1254
    %1972 = vmatmul.mubr.f32.gmra.mrb[0].mxu0 %v1253
    %v1973 = vpop.f32.mrb[0].mxu0
    %v1974 = vadd.f32 %v1866, %v1973
    %v1975 = vpop.f32.mrb[0].mxu0
    %v1976 = vadd.f32 %v1870, %v1975
    %1977 = vmatprep.mubr.f32.mxu0 %v1262
    %1978 = vmatmul.mubr.f32.gmra.mrb[0].mxu0 %v1261
    %v1979 = vpop.f32.mrb[0].mxu0
    %v1980 = vadd.f32 %v1866, %v1979
    %v1981 = vpop.f32.mrb[0].mxu0
    %v1982 = vadd.f32 %v1870, %v1981
    %1983 = vmatprep.mubr.f32.mxu0 %v1270
    %1984 = vmatmul.mubr.f32.gmra.mrb[0].mxu0 %v1269
    %v1985 = vpop.f32.mrb[0].mxu0
    %v1986 = vadd.f32 %v1866, %v1985
    %v1987 = vpop.f32.mrb[0].mxu0
    %v1988 = vadd.f32 %v1870, %v1987
    %1989 = vmatprep.mubr.f32.mxu0 %v1278
    %1990 = vmatmul.mubr.f32.gmra.mrb[0].mxu0 %v1277
    %v1991 = vpop.f32.mrb[0].mxu0
    %v1992 = vadd.f32 %v1866, %v1991
    %v1993 = vpop.f32.mrb[0].mxu0
    %v1994 = vadd.f32 %v1870, %v1993
    %1995 = vmatprep.mubr.f32.mxu0 %v1286
    %1996 = vmatmul.mubr.f32.gmra.mrb[0].mxu0 %v1285
    %v1997 = vpop.f32.mrb[0].mxu0
    %v1998 = vadd.f32 %v1866, %v1997
    %v1999 = vpop.f32.mrb[0].mxu0
    %v2000 = vadd.f32 %v1870, %v1999
    %2001 = vmatprep.mubr.f32.mxu0 %v1294
    %2002 = vmatmul.mubr.f32.gmra.mrb[0].mxu0 %v1293
    %v2003 = vpop.f32.mrb[0].mxu0
    %v2004 = vadd.f32 %v1866, %v2003
    %v2005 = vpop.f32.mrb[0].mxu0
    %v2006 = vadd.f32 %v1870, %v2005
    %2007 = vmatprep.mubr.f32.mxu0 %v1302
    %2008 = vmatmul.mubr.f32.gmra.mrb[0].mxu0 %v1301
    %v2009 = vpop.f32.mrb[0].mxu0
    %v2010 = vadd.f32 %v1866, %v2009
    %v2011 = vpop.f32.mrb[0].mxu0
    %v2012 = vadd.f32 %v1870, %v2011
    %2013 = vmatprep.mubr.f32.mxu0 %v1310
    %2014 = vmatmul.mubr.f32.gmra.mrb[0].mxu0 %v1309
    %v2015 = vpop.f32.mrb[0].mxu0
    %v2016 = vadd.f32 %v1866, %v2015
    %v2017 = vpop.f32.mrb[0].mxu0
    %v2018 = vadd.f32 %v1870, %v2017
    %2019 = vmatprep.mubr.f32.mxu0 %v1318
    %2020 = vmatmul.mubr.f32.gmra.mrb[0].mxu0 %v1317
    %v2021 = vpop.f32.mrb[0].mxu0
    %v2022 = vadd.f32 %v1866, %v2021
    %v2023 = vpop.f32.mrb[0].mxu0
    %v2024 = vadd.f32 %v1870, %v2023
    %2025 = vmatprep.mubr.f32.mxu0 %v1326
    %2026 = vmatmul.mubr.f32.gmra.mrb[0].mxu0 %v1325
    %v2027 = vpop.f32.mrb[0].mxu0
    %v2028 = vadd.f32 %v1866, %v2027
    %v2029 = vpop.f32.mrb[0].mxu0
    %v2030 = vadd.f32 %v1870, %v2029
    %2031 = vmatprep.mubr.f32.mxu0 %v1334
    %2032 = vmatmul.mubr.f32.gmra.mrb[0].mxu0 %v1333
    %v2033 = vpop.f32.mrb[0].mxu0
    %v2034 = vadd.f32 %v1866, %v2033
    %v2035 = vpop.f32.mrb[0].mxu0
    %v2036 = vadd.f32 %v1870, %v2035
    %2037 = vmatprep.mubr.f32.mxu0 %v1342
    %2038 = vmatmul.mubr.f32.gmra.mrb[0].mxu0 %v1341
    %v2039 = vpop.f32.mrb[0].mxu0
    %v2040 = vadd.f32 %v1866, %v2039
    %v2041 = vpop.f32.mrb[0].mxu0
    %v2042 = vadd.f32 %v1870, %v2041
    %2043 = vdwg.mxu0
    %2044 = vmatprep.subr.mxu0 %v1478
    %2045 = vmatpush1.msra.mxu0 %v1477
    %2046 = vmatprep.subr.mxu0 %v1482
    %2047 = vmatpush1.msra.mxu0 %v1481
    %2048 = vmatprep.subr.mxu0 %v1486
    %2049 = vmatpush1.msra.mxu0 %v1485
    %2050 = vmatprep.subr.mxu0 %v1490
    %2051 = vmatpush1.msra.mxu0 %v1489
    %2052 = vmatprep.subr.mxu0 %v1494
    %2053 = vmatpush1.msra.mxu0 %v1493
    %2054 = vmatprep.subr.mxu0 %v1498
    %2055 = vmatpush1.msra.mxu0 %v1497
    %2056 = vmatprep.subr.mxu0 %v1502
    %2057 = vmatpush1.msra.mxu0 %v1501
    %2058 = vmatprep.subr.mxu0 %v1506
    %2059 = vmatpush1.msra.mxu0 %v1505
    %2060 = vmatprep.subr.mxu0 %v1510
    %2061 = vmatpush1.msra.mxu0 %v1509
    %2062 = vmatprep.subr.mxu0 %v1514
    %2063 = vmatpush1.msra.mxu0 %v1513
    %2064 = vmatprep.subr.mxu0 %v1518
    %2065 = vmatpush1.msra.mxu0 %v1517
    %2066 = vmatprep.subr.mxu0 %v1522
    %2067 = vmatpush1.msra.mxu0 %v1521
    %2068 = vmatprep.subr.mxu0 %v1526
    %2069 = vmatpush1.msra.mxu0 %v1525
    %2070 = vmatprep.subr.mxu0 %v1530
    %2071 = vmatpush1.msra.mxu0 %v1529
    %2072 = vmatprep.subr.mxu0 %v1534
    %2073 = vmatpush1.msra.mxu0 %v1533
    %2074 = vmatprep.subr.mxu0 %v1538
    %2075 = vmatpush1.msra.mxu0 %v1537
    %2076 = vmatprep.subr.mxu0 %v1542
    %2077 = vmatpush1.msra.mxu0 %v1541
    %2078 = vmatprep.subr.mxu0 %v1546
    %2079 = vmatpush1.msra.mxu0 %v1545
    %2080 = vmatprep.subr.mxu0 %v1550
    %2081 = vmatpush1.msra.mxu0 %v1549
    %2082 = vmatprep.subr.mxu0 %v1554
    %2083 = vmatpush1.msra.mxu0 %v1553
    %2084 = vmatprep.subr.mxu0 %v1558
    %2085 = vmatpush1.msra.mxu0 %v1557
    %2086 = vmatprep.subr.mxu0 %v1562
    %2087 = vmatpush1.msra.mxu0 %v1561
    %2088 = vmatprep.subr.mxu0 %v1566
    %2089 = vmatpush1.msra.mxu0 %v1565
    %2090 = vmatprep.subr.mxu0 %v1570
    %2091 = vmatpush1.msra.mxu0 %v1569
    %2092 = vmatprep.subr.mxu0 %v1574
    %2093 = vmatpush1.msra.mxu0 %v1573
    %2094 = vmatprep.subr.mxu0 %v1578
    %2095 = vmatpush1.msra.mxu0 %v1577
    %2096 = vmatprep.subr.mxu0 %v1582
    %2097 = vmatpush1.msra.mxu0 %v1581
    %2098 = vmatprep.subr.mxu0 %v1586
    %2099 = vmatpush1.msra.mxu0 %v1585
    %2100 = vmatprep.subr.mxu0 %v1590
    %2101 = vmatpush1.msra.mxu0 %v1589
    %2102 = vmatprep.subr.mxu0 %v1594
    %2103 = vmatpush1.msra.mxu0 %v1593
    %2104 = vmatprep.subr.mxu0 %v1598
    %2105 = vmatpush1.msra.mxu0 %v1597
    %2106 = vmatprep.subr.mxu0 %v1602
    %2107 = vmatpush1.msra.mxu0 %v1601
    %2108 = vmatprep.mubr.f32.mxu0 %v1224
    %2109 = vmatmul.mubr.f32.gmra.mrb[0].mxu0 %v1223
    %v2110 = vpop.f32.mrb[0].mxu0
    %v2111 = vadd.f32 %v1950, %v2110
    %v2112 = vpop.f32.mrb[0].mxu0
    %v2113 = vadd.f32 %v1952, %v2112
    %2114 = vmatprep.mubr.f32.mxu0 %v1232
    %2115 = vmatmul.mubr.f32.gmra.mrb[0].mxu0 %v1231
    %v2116 = vpop.f32.mrb[0].mxu0
    %v2117 = vadd.f32 %v1956, %v2116
    %v2118 = vpop.f32.mrb[0].mxu0
    %v2119 = vadd.f32 %v1958, %v2118
    %2120 = vmatprep.mubr.f32.mxu0 %v1240
    %2121 = vmatmul.mubr.f32.gmra.mrb[0].mxu0 %v1239
    %v2122 = vpop.f32.mrb[0].mxu0
    %v2123 = vadd.f32 %v1962, %v2122
    %v2124 = vpop.f32.mrb[0].mxu0
    %v2125 = vadd.f32 %v1964, %v2124
    %2126 = vmatprep.mubr.f32.mxu0 %v1248
    %2127 = vmatmul.mubr.f32.gmra.mrb[0].mxu0 %v1247
    %v2128 = vpop.f32.mrb[0].mxu0
    %v2129 = vadd.f32 %v1968, %v2128
    %v2130 = vpop.f32.mrb[0].mxu0
    %v2131 = vadd.f32 %v1970, %v2130
    %2132 = vmatprep.mubr.f32.mxu0 %v1256
    %2133 = vmatmul.mubr.f32.gmra.mrb[0].mxu0 %v1255
    %v2134 = vpop.f32.mrb[0].mxu0
    %v2135 = vadd.f32 %v1974, %v2134
    %v2136 = vpop.f32.mrb[0].mxu0
    %v2137 = vadd.f32 %v1976, %v2136
    %2138 = vmatprep.mubr.f32.mxu0 %v1264
    %2139 = vmatmul.mubr.f32.gmra.mrb[0].mxu0 %v1263
    %v2140 = vpop.f32.mrb[0].mxu0
    %v2141 = vadd.f32 %v1980, %v2140
    %v2142 = vpop.f32.mrb[0].mxu0
    %v2143 = vadd.f32 %v1982, %v2142
    %2144 = vmatprep.mubr.f32.mxu0 %v1272
    %2145 = vmatmul.mubr.f32.gmra.mrb[0].mxu0 %v1271
    %v2146 = vpop.f32.mrb[0].mxu0
    %v2147 = vadd.f32 %v1986, %v2146
    %v2148 = vpop.f32.mrb[0].mxu0
    %v2149 = vadd.f32 %v1988, %v2148
    %2150 = vmatprep.mubr.f32.mxu0 %v1280
    %2151 = vmatmul.mubr.f32.gmra.mrb[0].mxu0 %v1279
    %v2152 = vpop.f32.mrb[0].mxu0
    %v2153 = vadd.f32 %v1992, %v2152
    %v2154 = vpop.f32.mrb[0].mxu0
    %v2155 = vadd.f32 %v1994, %v2154
    %2156 = vmatprep.mubr.f32.mxu0 %v1288
    %2157 = vmatmul.mubr.f32.gmra.mrb[0].mxu0 %v1287
    %v2158 = vpop.f32.mrb[0].mxu0
    %v2159 = vadd.f32 %v1998, %v2158
    %v2160 = vpop.f32.mrb[0].mxu0
    %v2161 = vadd.f32 %v2000, %v2160
    %2162 = vmatprep.mubr.f32.mxu0 %v1296
    %2163 = vmatmul.mubr.f32.gmra.mrb[0].mxu0 %v1295
    %v2164 = vpop.f32.mrb[0].mxu0
    %v2165 = vadd.f32 %v2004, %v2164
    %v2166 = vpop.f32.mrb[0].mxu0
    %v2167 = vadd.f32 %v2006, %v2166
    %2168 = vmatprep.mubr.f32.mxu0 %v1304
    %2169 = vmatmul.mubr.f32.gmra.mrb[0].mxu0 %v1303
    %v2170 = vpop.f32.mrb[0].mxu0
    %v2171 = vadd.f32 %v2010, %v2170
    %v2172 = vpop.f32.mrb[0].mxu0
    %v2173 = vadd.f32 %v2012, %v2172
    %2174 = vmatprep.mubr.f32.mxu0 %v1312
    %2175 = vmatmul.mubr.f32.gmra.mrb[0].mxu0 %v1311
    %v2176 = vpop.f32.mrb[0].mxu0
    %v2177 = vadd.f32 %v2016, %v2176
    %v2178 = vpop.f32.mrb[0].mxu0
    %v2179 = vadd.f32 %v2018, %v2178
    %2180 = vmatprep.mubr.f32.mxu0 %v1320
    %2181 = vmatmul.mubr.f32.gmra.mrb[0].mxu0 %v1319
    %v2182 = vpop.f32.mrb[0].mxu0
    %v2183 = vadd.f32 %v2022, %v2182
    %v2184 = vpop.f32.mrb[0].mxu0
    %v2185 = vadd.f32 %v2024, %v2184
    %2186 = vmatprep.mubr.f32.mxu0 %v1328
    %2187 = vmatmul.mubr.f32.gmra.mrb[0].mxu0 %v1327
    %v2188 = vpop.f32.mrb[0].mxu0
    %v2189 = vadd.f32 %v2028, %v2188
    %v2190 = vpop.f32.mrb[0].mxu0
    %v2191 = vadd.f32 %v2030, %v2190
    %2192 = vmatprep.mubr.f32.mxu0 %v1336
    %2193 = vmatmul.mubr.f32.gmra.mrb[0].mxu0 %v1335
    %v2194 = vpop.f32.mrb[0].mxu0
    %v2195 = vadd.f32 %v2034, %v2194
    %v2196 = vpop.f32.mrb[0].mxu0
    %v2197 = vadd.f32 %v2036, %v2196
    %2198 = vmatprep.mubr.f32.mxu0 %v1344
    %2199 = vmatmul.mubr.f32.gmra.mrb[0].mxu0 %v1343
    %v2200 = vpop.f32.mrb[0].mxu0
    %v2201 = vadd.f32 %v2040, %v2200
    %v2202 = vpop.f32.mrb[0].mxu0
    %v2203 = vadd.f32 %v2042, %v2202
    %2204 = vdwg.mxu0
    %2205 = vmatprep.subr.mxu0 %v1606
    %2206 = vmatpush1.msra.mxu0 %v1605
    %2207 = vmatprep.subr.mxu0 %v1610
    %2208 = vmatpush1.msra.mxu0 %v1609
    %2209 = vmatprep.subr.mxu0 %v1614
    %2210 = vmatpush1.msra.mxu0 %v1613
    %2211 = vmatprep.subr.mxu0 %v1618
    %2212 = vmatpush1.msra.mxu0 %v1617
    %2213 = vmatprep.subr.mxu0 %v1622
    %2214 = vmatpush1.msra.mxu0 %v1621
    %2215 = vmatprep.subr.mxu0 %v1626
    %2216 = vmatpush1.msra.mxu0 %v1625
    %2217 = vmatprep.subr.mxu0 %v1630
    %2218 = vmatpush1.msra.mxu0 %v1629
    %2219 = vmatprep.subr.mxu0 %v1634
    %2220 = vmatpush1.msra.mxu0 %v1633
    %2221 = vmatprep.subr.mxu0 %v1638
    %2222 = vmatpush1.msra.mxu0 %v1637
    %2223 = vmatprep.subr.mxu0 %v1642
    %2224 = vmatpush1.msra.mxu0 %v1641
    %2225 = vmatprep.subr.mxu0 %v1646
    %2226 = vmatpush1.msra.mxu0 %v1645
    %2227 = vmatprep.subr.mxu0 %v1650
    %2228 = vmatpush1.msra.mxu0 %v1649
    %2229 = vmatprep.subr.mxu0 %v1654
    %2230 = vmatpush1.msra.mxu0 %v1653
    %2231 = vmatprep.subr.mxu0 %v1658
    %2232 = vmatpush1.msra.mxu0 %v1657
    %2233 = vmatprep.subr.mxu0 %v1662
    %2234 = vmatpush1.msra.mxu0 %v1661
    %2235 = vmatprep.subr.mxu0 %v1666
    %2236 = vmatpush1.msra.mxu0 %v1665
    %2237 = vmatprep.subr.mxu0 %v1670
    %2238 = vmatpush1.msra.mxu0 %v1669
    %2239 = vmatprep.subr.mxu0 %v1674
    %2240 = vmatpush1.msra.mxu0 %v1673
    %2241 = vmatprep.subr.mxu0 %v1678
    %2242 = vmatpush1.msra.mxu0 %v1677
    %2243 = vmatprep.subr.mxu0 %v1682
    %2244 = vmatpush1.msra.mxu0 %v1681
    %2245 = vmatprep.subr.mxu0 %v1686
    %2246 = vmatpush1.msra.mxu0 %v1685
    %2247 = vmatprep.subr.mxu0 %v1690
    %2248 = vmatpush1.msra.mxu0 %v1689
    %2249 = vmatprep.subr.mxu0 %v1694
    %2250 = vmatpush1.msra.mxu0 %v1693
    %2251 = vmatprep.subr.mxu0 %v1698
    %2252 = vmatpush1.msra.mxu0 %v1697
    %2253 = vmatprep.subr.mxu0 %v1702
    %2254 = vmatpush1.msra.mxu0 %v1701
    %2255 = vmatprep.subr.mxu0 %v1706
    %2256 = vmatpush1.msra.mxu0 %v1705
    %2257 = vmatprep.subr.mxu0 %v1710
    %2258 = vmatpush1.msra.mxu0 %v1709
    %2259 = vmatprep.subr.mxu0 %v1714
    %2260 = vmatpush1.msra.mxu0 %v1713
    %2261 = vmatprep.subr.mxu0 %v1718
    %2262 = vmatpush1.msra.mxu0 %v1717
    %2263 = vmatprep.subr.mxu0 %v1722
    %2264 = vmatpush1.msra.mxu0 %v1721
    %2265 = vmatprep.subr.mxu0 %v1726
    %2266 = vmatpush1.msra.mxu0 %v1725
    %2267 = vmatprep.subr.mxu0 %v1730
    %2268 = vmatpush1.msra.mxu0 %v1729
    %2269 = vmatprep.mubr.f32.mxu0 %v1226
    %2270 = vmatmul.mubr.f32.gmra.mrb[0].mxu0 %v1225
    %v2271 = vpop.f32.mrb[0].mxu0
    %v2272 = vadd.f32 %v2111, %v2271
    %v2273 = vpop.f32.mrb[0].mxu0
    %v2274 = vadd.f32 %v2113, %v2273
    %2275 = vmatprep.mubr.f32.mxu0 %v1234
    %2276 = vmatmul.mubr.f32.gmra.mrb[0].mxu0 %v1233
    %v2277 = vpop.f32.mrb[0].mxu0
    %v2278 = vadd.f32 %v2117, %v2277
    %v2279 = vpop.f32.mrb[0].mxu0
    %v2280 = vadd.f32 %v2119, %v2279
    %2281 = vmatprep.mubr.f32.mxu0 %v1242
    %2282 = vmatmul.mubr.f32.gmra.mrb[0].mxu0 %v1241
    %v2283 = vpop.f32.mrb[0].mxu0
    %v2284 = vadd.f32 %v2123, %v2283
    %v2285 = vpop.f32.mrb[0].mxu0
    %v2286 = vadd.f32 %v2125, %v2285
    %2287 = vmatprep.mubr.f32.mxu0 %v1250
    %2288 = vmatmul.mubr.f32.gmra.mrb[0].mxu0 %v1249
    %v2289 = vpop.f32.mrb[0].mxu0
    %v2290 = vadd.f32 %v2129, %v2289
    %v2291 = vpop.f32.mrb[0].mxu0
    %v2292 = vadd.f32 %v2131, %v2291
    %2293 = vmatprep.mubr.f32.mxu0 %v1258
    %2294 = vmatmul.mubr.f32.gmra.mrb[0].mxu0 %v1257
    %v2295 = vpop.f32.mrb[0].mxu0
    %v2296 = vadd.f32 %v2135, %v2295
    %v2297 = vpop.f32.mrb[0].mxu0
    %v2298 = vadd.f32 %v2137, %v2297
    %2299 = vmatprep.mubr.f32.mxu0 %v1266
    %2300 = vmatmul.mubr.f32.gmra.mrb[0].mxu0 %v1265
    %v2301 = vpop.f32.mrb[0].mxu0
    %v2302 = vadd.f32 %v2141, %v2301
    %v2303 = vpop.f32.mrb[0].mxu0
    %v2304 = vadd.f32 %v2143, %v2303
    %2305 = vmatprep.mubr.f32.mxu0 %v1274
    %2306 = vmatmul.mubr.f32.gmra.mrb[0].mxu0 %v1273
    %v2307 = vpop.f32.mrb[0].mxu0
    %v2308 = vadd.f32 %v2147, %v2307
    %v2309 = vpop.f32.mrb[0].mxu0
    %v2310 = vadd.f32 %v2149, %v2309
    %2311 = vmatprep.mubr.f32.mxu0 %v1282
    %2312 = vmatmul.mubr.f32.gmra.mrb[0].mxu0 %v1281
    %v2313 = vpop.f32.mrb[0].mxu0
    %v2314 = vadd.f32 %v2153, %v2313
    %v2315 = vpop.f32.mrb[0].mxu0
    %v2316 = vadd.f32 %v2155, %v2315
    %2317 = vmatprep.mubr.f32.mxu0 %v1290
    %2318 = vmatmul.mubr.f32.gmra.mrb[0].mxu0 %v1289
    %v2319 = vpop.f32.mrb[0].mxu0
    %v2320 = vadd.f32 %v2159, %v2319
    %v2321 = vpop.f32.mrb[0].mxu0
    %v2322 = vadd.f32 %v2161, %v2321
    %2323 = vmatprep.mubr.f32.mxu0 %v1298
    %2324 = vmatmul.mubr.f32.gmra.mrb[0].mxu0 %v1297
    %v2325 = vpop.f32.mrb[0].mxu0
    %v2326 = vadd.f32 %v2165, %v2325
    %v2327 = vpop.f32.mrb[0].mxu0
    %v2328 = vadd.f32 %v2167, %v2327
    %2329 = vmatprep.mubr.f32.mxu0 %v1306
    %2330 = vmatmul.mubr.f32.gmra.mrb[0].mxu0 %v1305
    %v2331 = vpop.f32.mrb[0].mxu0
    %v2332 = vadd.f32 %v2171, %v2331
    %v2333 = vpop.f32.mrb[0].mxu0
    %v2334 = vadd.f32 %v2173, %v2333
    %2335 = vmatprep.mubr.f32.mxu0 %v1314
    %2336 = vmatmul.mubr.f32.gmra.mrb[0].mxu0 %v1313
    %v2337 = vpop.f32.mrb[0].mxu0
    %v2338 = vadd.f32 %v2177, %v2337
    %v2339 = vpop.f32.mrb[0].mxu0
    %v2340 = vadd.f32 %v2179, %v2339
    %2341 = vmatprep.mubr.f32.mxu0 %v1322
    %2342 = vmatmul.mubr.f32.gmra.mrb[0].mxu0 %v1321
    %v2343 = vpop.f32.mrb[0].mxu0
    %v2344 = vadd.f32 %v2183, %v2343
    %v2345 = vpop.f32.mrb[0].mxu0
    %v2346 = vadd.f32 %v2185, %v2345
    %2347 = vmatprep.mubr.f32.mxu0 %v1330
    %2348 = vmatmul.mubr.f32.gmra.mrb[0].mxu0 %v1329
    %v2349 = vpop.f32.mrb[0].mxu0
    %v2350 = vadd.f32 %v2189, %v2349
    %v2351 = vpop.f32.mrb[0].mxu0
    %v2352 = vadd.f32 %v2191, %v2351
    %2353 = vmatprep.mubr.f32.mxu0 %v1338
    %2354 = vmatmul.mubr.f32.gmra.mrb[0].mxu0 %v1337
    %v2355 = vpop.f32.mrb[0].mxu0
    %v2356 = vadd.f32 %v2195, %v2355
    %v2357 = vpop.f32.mrb[0].mxu0
    %v2358 = vadd.f32 %v2197, %v2357
    %2359 = vmatprep.mubr.f32.mxu0 %v1346
    %2360 = vmatmul.mubr.f32.gmra.mrb[0].mxu0 %v1345
    %v2361 = vpop.f32.mrb[0].mxu0
    %v2362 = vadd.f32 %v2201, %v2361
    %v2363 = vpop.f32.mrb[0].mxu0
    %v2364 = vadd.f32 %v2203, %v2363
    %2365 = vdwg.mxu0
    %2366 = vmatprep.subr.mxu0 %v1734
    %2367 = vmatpush1.msra.mxu0 %v1733
    %2368 = vmatprep.subr.mxu0 %v1738
    %2369 = vmatpush1.msra.mxu0 %v1737
    %2370 = vmatprep.subr.mxu0 %v1742
    %2371 = vmatpush1.msra.mxu0 %v1741
    %2372 = vmatprep.subr.mxu0 %v1746
    %2373 = vmatpush1.msra.mxu0 %v1745
    %2374 = vmatprep.subr.mxu0 %v1750
    %2375 = vmatpush1.msra.mxu0 %v1749
    %2376 = vmatprep.subr.mxu0 %v1754
    %2377 = vmatpush1.msra.mxu0 %v1753
    %2378 = vmatprep.subr.mxu0 %v1758
    %2379 = vmatpush1.msra.mxu0 %v1757
    %2380 = vmatprep.subr.mxu0 %v1762
    %2381 = vmatpush1.msra.mxu0 %v1761
    %2382 = vmatprep.subr.mxu0 %v1766
    %2383 = vmatpush1.msra.mxu0 %v1765
    %2384 = vmatprep.subr.mxu0 %v1770
    %2385 = vmatpush1.msra.mxu0 %v1769
    %2386 = vmatprep.subr.mxu0 %v1774
    %2387 = vmatpush1.msra.mxu0 %v1773
    %2388 = vmatprep.subr.mxu0 %v1778
    %2389 = vmatpush1.msra.mxu0 %v1777
    %2390 = vmatprep.subr.mxu0 %v1782
    %2391 = vmatpush1.msra.mxu0 %v1781
    %2392 = vmatprep.subr.mxu0 %v1786
    %2393 = vmatpush1.msra.mxu0 %v1785
    %2394 = vmatprep.subr.mxu0 %v1790
    %2395 = vmatpush1.msra.mxu0 %v1789
    %2396 = vmatprep.subr.mxu0 %v1794
    %2397 = vmatpush1.msra.mxu0 %v1793
    %2398 = vmatprep.subr.mxu0 %v1798
    %2399 = vmatpush1.msra.mxu0 %v1797
    %2400 = vmatprep.subr.mxu0 %v1802
    %2401 = vmatpush1.msra.mxu0 %v1801
    %2402 = vmatprep.subr.mxu0 %v1806
    %2403 = vmatpush1.msra.mxu0 %v1805
    %2404 = vmatprep.subr.mxu0 %v1810
    %2405 = vmatpush1.msra.mxu0 %v1809
    %2406 = vmatprep.subr.mxu0 %v1814
    %2407 = vmatpush1.msra.mxu0 %v1813
    %2408 = vmatprep.subr.mxu0 %v1818
    %2409 = vmatpush1.msra.mxu0 %v1817
    %2410 = vmatprep.subr.mxu0 %v1822
    %2411 = vmatpush1.msra.mxu0 %v1821
    %2412 = vmatprep.subr.mxu0 %v1826
    %2413 = vmatpush1.msra.mxu0 %v1825
    %2414 = vmatprep.subr.mxu0 %v1830
    %2415 = vmatpush1.msra.mxu0 %v1829
    %2416 = vmatprep.subr.mxu0 %v1834
    %2417 = vmatpush1.msra.mxu0 %v1833
    %2418 = vmatprep.subr.mxu0 %v1838
    %2419 = vmatpush1.msra.mxu0 %v1837
    %2420 = vmatprep.subr.mxu0 %v1842
    %2421 = vmatpush1.msra.mxu0 %v1841
    %2422 = vmatprep.subr.mxu0 %v1846
    %2423 = vmatpush1.msra.mxu0 %v1845
    %2424 = vmatprep.subr.mxu0 %v1850
    %2425 = vmatpush1.msra.mxu0 %v1849
    %2426 = vmatprep.subr.mxu0 %v1854
    %2427 = vmatpush1.msra.mxu0 %v1853
    %2428 = vmatprep.subr.mxu0 %v1858
    %2429 = vmatpush1.msra.mxu0 %v1857
    %2430 = vmatprep.mubr.f32.mxu0 %v1228
    %2431 = vmatmul.mubr.f32.gmra.mrb[0].mxu0 %v1227
    %v2432 = vpop.f32.mrb[0].mxu0
    %v2433 = vadd.f32 %v2272, %v2432
    %v2434 = vpop.f32.mrb[0].mxu0
    %v2435 = vadd.f32 %v2274, %v2434
    %2436 = vmatprep.mubr.f32.mxu0 %v1236
    %2437 = vmatmul.mubr.f32.gmra.mrb[0].mxu0 %v1235
    %v2438 = vpop.f32.mrb[0].mxu0
    %v2439 = vadd.f32 %v2278, %v2438
    %v2440 = vpop.f32.mrb[0].mxu0
    %v2441 = vadd.f32 %v2280, %v2440
    %2442 = vmatprep.mubr.f32.mxu0 %v1244
    %2443 = vmatmul.mubr.f32.gmra.mrb[0].mxu0 %v1243
    %v2444 = vpop.f32.mrb[0].mxu0
    %v2445 = vadd.f32 %v2284, %v2444
    %v2446 = vpop.f32.mrb[0].mxu0
    %v2447 = vadd.f32 %v2286, %v2446
    %2448 = vmatprep.mubr.f32.mxu0 %v1252
    %2449 = vmatmul.mubr.f32.gmra.mrb[0].mxu0 %v1251
    %v2450 = vpop.f32.mrb[0].mxu0
    %v2451 = vadd.f32 %v2290, %v2450
    %v2452 = vpop.f32.mrb[0].mxu0
    %v2453 = vadd.f32 %v2292, %v2452
    %2454 = vmatprep.mubr.f32.mxu0 %v1260
    %2455 = vmatmul.mubr.f32.gmra.mrb[0].mxu0 %v1259
    %v2456 = vpop.f32.mrb[0].mxu0
    %v2457 = vadd.f32 %v2296, %v2456
    %v2458 = vpop.f32.mrb[0].mxu0
    %v2459 = vadd.f32 %v2298, %v2458
    %2460 = vmatprep.mubr.f32.mxu0 %v1268
    %2461 = vmatmul.mubr.f32.gmra.mrb[0].mxu0 %v1267
    %v2462 = vpop.f32.mrb[0].mxu0
    %v2463 = vadd.f32 %v2302, %v2462
    %v2464 = vpop.f32.mrb[0].mxu0
    %v2465 = vadd.f32 %v2304, %v2464
    %2466 = vmatprep.mubr.f32.mxu0 %v1276
    %2467 = vmatmul.mubr.f32.gmra.mrb[0].mxu0 %v1275
    %v2468 = vpop.f32.mrb[0].mxu0
    %v2469 = vadd.f32 %v2308, %v2468
    %v2470 = vpop.f32.mrb[0].mxu0
    %v2471 = vadd.f32 %v2310, %v2470
    %2472 = vmatprep.mubr.f32.mxu0 %v1284
    %2473 = vmatmul.mubr.f32.gmra.mrb[0].mxu0 %v1283
    %v2474 = vpop.f32.mrb[0].mxu0
    %v2475 = vadd.f32 %v2314, %v2474
    %v2476 = vpop.f32.mrb[0].mxu0
    %v2477 = vadd.f32 %v2316, %v2476
    %2478 = vmatprep.mubr.f32.mxu0 %v1292
    %2479 = vmatmul.mubr.f32.gmra.mrb[0].mxu0 %v1291
    %v2480 = vpop.f32.mrb[0].mxu0
    %v2481 = vadd.f32 %v2320, %v2480
    %v2482 = vpop.f32.mrb[0].mxu0
    %v2483 = vadd.f32 %v2322, %v2482
    %2484 = vmatprep.mubr.f32.mxu0 %v1300
    %2485 = vmatmul.mubr.f32.gmra.mrb[0].mxu0 %v1299
    %v2486 = vpop.f32.mrb[0].mxu0
    %v2487 = vadd.f32 %v2326, %v2486
    %v2488 = vpop.f32.mrb[0].mxu0
    %v2489 = vadd.f32 %v2328, %v2488
    %2490 = vmatprep.mubr.f32.mxu0 %v1308
    %2491 = vmatmul.mubr.f32.gmra.mrb[0].mxu0 %v1307
    %v2492 = vpop.f32.mrb[0].mxu0
    %v2493 = vadd.f32 %v2332, %v2492
    %v2494 = vpop.f32.mrb[0].mxu0
    %v2495 = vadd.f32 %v2334, %v2494
    %2496 = vmatprep.mubr.f32.mxu0 %v1316
    %2497 = vmatmul.mubr.f32.gmra.mrb[0].mxu0 %v1315
    %v2498 = vpop.f32.mrb[0].mxu0
    %v2499 = vadd.f32 %v2338, %v2498
    %v2500 = vpop.f32.mrb[0].mxu0
    %v2501 = vadd.f32 %v2340, %v2500
    %2502 = vmatprep.mubr.f32.mxu0 %v1324
    %2503 = vmatmul.mubr.f32.gmra.mrb[0].mxu0 %v1323
    %v2504 = vpop.f32.mrb[0].mxu0
    %v2505 = vadd.f32 %v2344, %v2504
    %v2506 = vpop.f32.mrb[0].mxu0
    %v2507 = vadd.f32 %v2346, %v2506
    %2508 = vmatprep.mubr.f32.mxu0 %v1332
    %2509 = vmatmul.mubr.f32.gmra.mrb[0].mxu0 %v1331
    %v2510 = vpop.f32.mrb[0].mxu0
    %v2511 = vadd.f32 %v2350, %v2510
    %v2512 = vpop.f32.mrb[0].mxu0
    %v2513 = vadd.f32 %v2352, %v2512
    %2514 = vmatprep.mubr.f32.mxu0 %v1340
    %2515 = vmatmul.mubr.f32.gmra.mrb[0].mxu0 %v1339
    %v2516 = vpop.f32.mrb[0].mxu0
    %v2517 = vadd.f32 %v2356, %v2516
    %v2518 = vpop.f32.mrb[0].mxu0
    %v2519 = vadd.f32 %v2358, %v2518
    %2520 = vmatprep.mubr.f32.mxu0 %v1348
    %2521 = vmatmul.mubr.f32.gmra.mrb[0].mxu0 %v1347
    %v2522 = vpop.f32.mrb[0].mxu0
    %v2523 = vadd.f32 %v2362, %v2522
    %v2524 = vpop.f32.mrb[0].mxu0
    %v2525 = vadd.f32 %v2364, %v2524
    %2526 = vdwg.mxu0
    %2527 = vmatprep.subr.mxu0 %v1352
    %2528 = vmatpush1.msra.mxu0 %v1351
    %2529 = vmatprep.subr.mxu0 %v1356
    %2530 = vmatpush1.msra.mxu0 %v1355
    %2531 = vmatprep.subr.mxu0 %v1360
    %2532 = vmatpush1.msra.mxu0 %v1359
    %2533 = vmatprep.subr.mxu0 %v1364
    %2534 = vmatpush1.msra.mxu0 %v1363
    %2535 = vmatprep.subr.mxu0 %v1368
    %2536 = vmatpush1.msra.mxu0 %v1367
    %2537 = vmatprep.subr.mxu0 %v1372
    %2538 = vmatpush1.msra.mxu0 %v1371
    %2539 = vmatprep.subr.mxu0 %v1376
    %2540 = vmatpush1.msra.mxu0 %v1375
    %2541 = vmatprep.subr.mxu0 %v1380
    %2542 = vmatpush1.msra.mxu0 %v1379
    %2543 = vmatprep.subr.mxu0 %v1384
    %2544 = vmatpush1.msra.mxu0 %v1383
    %2545 = vmatprep.subr.mxu0 %v1388
    %2546 = vmatpush1.msra.mxu0 %v1387
    %2547 = vmatprep.subr.mxu0 %v1392
    %2548 = vmatpush1.msra.mxu0 %v1391
    %2549 = vmatprep.subr.mxu0 %v1396
    %2550 = vmatpush1.msra.mxu0 %v1395
    %2551 = vmatprep.subr.mxu0 %v1400
    %2552 = vmatpush1.msra.mxu0 %v1399
    %2553 = vmatprep.subr.mxu0 %v1404
    %2554 = vmatpush1.msra.mxu0 %v1403
    %2555 = vmatprep.subr.mxu0 %v1408
    %2556 = vmatpush1.msra.mxu0 %v1407
    %2557 = vmatprep.subr.mxu0 %v1412
    %2558 = vmatpush1.msra.mxu0 %v1411
    %2559 = vmatprep.subr.mxu0 %v1416
    %2560 = vmatpush1.msra.mxu0 %v1415
    %2561 = vmatprep.subr.mxu0 %v1420
    %2562 = vmatpush1.msra.mxu0 %v1419
    %2563 = vmatprep.subr.mxu0 %v1424
    %2564 = vmatpush1.msra.mxu0 %v1423
    %2565 = vmatprep.subr.mxu0 %v1428
    %2566 = vmatpush1.msra.mxu0 %v1427
    %2567 = vmatprep.subr.mxu0 %v1432
    %2568 = vmatpush1.msra.mxu0 %v1431
    %2569 = vmatprep.subr.mxu0 %v1436
    %2570 = vmatpush1.msra.mxu0 %v1435
    %2571 = vmatprep.subr.mxu0 %v1440
    %2572 = vmatpush1.msra.mxu0 %v1439
    %2573 = vmatprep.subr.mxu0 %v1444
    %2574 = vmatpush1.msra.mxu0 %v1443
    %2575 = vmatprep.subr.mxu0 %v1448
    %2576 = vmatpush1.msra.mxu0 %v1447
    %2577 = vmatprep.subr.mxu0 %v1452
    %2578 = vmatpush1.msra.mxu0 %v1451
    %2579 = vmatprep.subr.mxu0 %v1456
    %2580 = vmatpush1.msra.mxu0 %v1455
    %2581 = vmatprep.subr.mxu0 %v1460
    %2582 = vmatpush1.msra.mxu0 %v1459
    %2583 = vmatprep.subr.mxu0 %v1464
    %2584 = vmatpush1.msra.mxu0 %v1463
    %2585 = vmatprep.subr.mxu0 %v1468
    %2586 = vmatpush1.msra.mxu0 %v1467
    %2587 = vmatprep.subr.mxu0 %v1472
    %2588 = vmatpush1.msra.mxu0 %v1471
    %2589 = vmatprep.subr.mxu0 %v1476
    %2590 = vmatpush1.msra.mxu0 %v1475
    %2591 = vmatprep.mubr.f32.mxu0 %v1222
    %2592 = vmatmul.mubr.f32.gmra.mrb[0].mxu0 %v1221
    %v2593 = vpop.f32.mrb[0].mxu0
    %v2594 = vadd.f32 %v1874, %v2593
    %v2595 = vpop.f32.mrb[0].mxu0
    %v2596 = vadd.f32 %v1878, %v2595
    %2597 = vmatprep.mubr.f32.mxu0 %v1230
    %2598 = vmatmul.mubr.f32.gmra.mrb[0].mxu0 %v1229
    %v2599 = vpop.f32.mrb[0].mxu0
    %v2600 = vadd.f32 %v1874, %v2599
    %v2601 = vpop.f32.mrb[0].mxu0
    %v2602 = vadd.f32 %v1878, %v2601
    %2603 = vmatprep.mubr.f32.mxu0 %v1238
    %2604 = vmatmul.mubr.f32.gmra.mrb[0].mxu0 %v1237
    %v2605 = vpop.f32.mrb[0].mxu0
    %v2606 = vadd.f32 %v1874, %v2605
    %v2607 = vpop.f32.mrb[0].mxu0
    %v2608 = vadd.f32 %v1878, %v2607
    %2609 = vmatprep.mubr.f32.mxu0 %v1246
    %2610 = vmatmul.mubr.f32.gmra.mrb[0].mxu0 %v1245
    %v2611 = vpop.f32.mrb[0].mxu0
    %v2612 = vadd.f32 %v1874, %v2611
    %v2613 = vpop.f32.mrb[0].mxu0
    %v2614 = vadd.f32 %v1878, %v2613
    %2615 = vmatprep.mubr.f32.mxu0 %v1254
    %2616 = vmatmul.mubr.f32.gmra.mrb[0].mxu0 %v1253
    %v2617 = vpop.f32.mrb[0].mxu0
    %v2618 = vadd.f32 %v1874, %v2617
    %v2619 = vpop.f32.mrb[0].mxu0
    %v2620 = vadd.f32 %v1878, %v2619
    %2621 = vmatprep.mubr.f32.mxu0 %v1262
    %2622 = vmatmul.mubr.f32.gmra.mrb[0].mxu0 %v1261
    %v2623 = vpop.f32.mrb[0].mxu0
    %v2624 = vadd.f32 %v1874, %v2623
    %v2625 = vpop.f32.mrb[0].mxu0
    %v2626 = vadd.f32 %v1878, %v2625
    %2627 = vmatprep.mubr.f32.mxu0 %v1270
    %2628 = vmatmul.mubr.f32.gmra.mrb[0].mxu0 %v1269
    %v2629 = vpop.f32.mrb[0].mxu0
    %v2630 = vadd.f32 %v1874, %v2629
    %v2631 = vpop.f32.mrb[0].mxu0
    %v2632 = vadd.f32 %v1878, %v2631
    %2633 = vmatprep.mubr.f32.mxu0 %v1278
    %2634 = vmatmul.mubr.f32.gmra.mrb[0].mxu0 %v1277
    %v2635 = vpop.f32.mrb[0].mxu0
    %v2636 = vadd.f32 %v1874, %v2635
    %v2637 = vpop.f32.mrb[0].mxu0
    %v2638 = vadd.f32 %v1878, %v2637
    %2639 = vmatprep.mubr.f32.mxu0 %v1286
    %2640 = vmatmul.mubr.f32.gmra.mrb[0].mxu0 %v1285
    %v2641 = vpop.f32.mrb[0].mxu0
    %v2642 = vadd.f32 %v1874, %v2641
    %v2643 = vpop.f32.mrb[0].mxu0
    %v2644 = vadd.f32 %v1878, %v2643
    %2645 = vmatprep.mubr.f32.mxu0 %v1294
    %2646 = vmatmul.mubr.f32.gmra.mrb[0].mxu0 %v1293
    %v2647 = vpop.f32.mrb[0].mxu0
    %v2648 = vadd.f32 %v1874, %v2647
    %v2649 = vpop.f32.mrb[0].mxu0
    %v2650 = vadd.f32 %v1878, %v2649
    %2651 = vmatprep.mubr.f32.mxu0 %v1302
    %2652 = vmatmul.mubr.f32.gmra.mrb[0].mxu0 %v1301
    %v2653 = vpop.f32.mrb[0].mxu0
    %v2654 = vadd.f32 %v1874, %v2653
    %v2655 = vpop.f32.mrb[0].mxu0
    %v2656 = vadd.f32 %v1878, %v2655
    %2657 = vmatprep.mubr.f32.mxu0 %v1310
    %2658 = vmatmul.mubr.f32.gmra.mrb[0].mxu0 %v1309
    %v2659 = vpop.f32.mrb[0].mxu0
    %v2660 = vadd.f32 %v1874, %v2659
    %v2661 = vpop.f32.mrb[0].mxu0
    %v2662 = vadd.f32 %v1878, %v2661
    %2663 = vmatprep.mubr.f32.mxu0 %v1318
    %2664 = vmatmul.mubr.f32.gmra.mrb[0].mxu0 %v1317
    %v2665 = vpop.f32.mrb[0].mxu0
    %v2666 = vadd.f32 %v1874, %v2665
    %v2667 = vpop.f32.mrb[0].mxu0
    %v2668 = vadd.f32 %v1878, %v2667
    %2669 = vmatprep.mubr.f32.mxu0 %v1326
    %2670 = vmatmul.mubr.f32.gmra.mrb[0].mxu0 %v1325
    %v2671 = vpop.f32.mrb[0].mxu0
    %v2672 = vadd.f32 %v1874, %v2671
    %v2673 = vpop.f32.mrb[0].mxu0
    %v2674 = vadd.f32 %v1878, %v2673
    %2675 = vmatprep.mubr.f32.mxu0 %v1334
    %2676 = vmatmul.mubr.f32.gmra.mrb[0].mxu0 %v1333
    %v2677 = vpop.f32.mrb[0].mxu0
    %v2678 = vadd.f32 %v1874, %v2677
    %v2679 = vpop.f32.mrb[0].mxu0
    %v2680 = vadd.f32 %v1878, %v2679
    %2681 = vmatprep.mubr.f32.mxu0 %v1342
    %2682 = vmatmul.mubr.f32.gmra.mrb[0].mxu0 %v1341
    %v2683 = vpop.f32.mrb[0].mxu0
    %v2684 = vadd.f32 %v1874, %v2683
    %v2685 = vpop.f32.mrb[0].mxu0
    %v2686 = vadd.f32 %v1878, %v2685
    %2687 = vdwg.mxu0
    %2688 = vmatprep.subr.mxu0 %v1480
    %2689 = vmatpush1.msra.mxu0 %v1479
    %2690 = vmatprep.subr.mxu0 %v1484
    %2691 = vmatpush1.msra.mxu0 %v1483
    %2692 = vmatprep.subr.mxu0 %v1488
    %2693 = vmatpush1.msra.mxu0 %v1487
    %2694 = vmatprep.subr.mxu0 %v1492
    %2695 = vmatpush1.msra.mxu0 %v1491
    %2696 = vmatprep.subr.mxu0 %v1496
    %2697 = vmatpush1.msra.mxu0 %v1495
    %2698 = vmatprep.subr.mxu0 %v1500
    %2699 = vmatpush1.msra.mxu0 %v1499
    %2700 = vmatprep.subr.mxu0 %v1504
    %2701 = vmatpush1.msra.mxu0 %v1503
    %2702 = vmatprep.subr.mxu0 %v1508
    %2703 = vmatpush1.msra.mxu0 %v1507
    %2704 = vmatprep.subr.mxu0 %v1512
    %2705 = vmatpush1.msra.mxu0 %v1511
    %2706 = vmatprep.subr.mxu0 %v1516
    %2707 = vmatpush1.msra.mxu0 %v1515
    %2708 = vmatprep.subr.mxu0 %v1520
    %2709 = vmatpush1.msra.mxu0 %v1519
    %2710 = vmatprep.subr.mxu0 %v1524
    %2711 = vmatpush1.msra.mxu0 %v1523
    %2712 = vmatprep.subr.mxu0 %v1528
    %2713 = vmatpush1.msra.mxu0 %v1527
    %2714 = vmatprep.subr.mxu0 %v1532
    %2715 = vmatpush1.msra.mxu0 %v1531
    %2716 = vmatprep.subr.mxu0 %v1536
    %2717 = vmatpush1.msra.mxu0 %v1535
    %2718 = vmatprep.subr.mxu0 %v1540
    %2719 = vmatpush1.msra.mxu0 %v1539
    %2720 = vmatprep.subr.mxu0 %v1544
    %2721 = vmatpush1.msra.mxu0 %v1543
    %2722 = vmatprep.subr.mxu0 %v1548
    %2723 = vmatpush1.msra.mxu0 %v1547
    %2724 = vmatprep.subr.mxu0 %v1552
    %2725 = vmatpush1.msra.mxu0 %v1551
    %2726 = vmatprep.subr.mxu0 %v1556
    %2727 = vmatpush1.msra.mxu0 %v1555
    %2728 = vmatprep.subr.mxu0 %v1560
    %2729 = vmatpush1.msra.mxu0 %v1559
    %2730 = vmatprep.subr.mxu0 %v1564
    %2731 = vmatpush1.msra.mxu0 %v1563
    %2732 = vmatprep.subr.mxu0 %v1568
    %2733 = vmatpush1.msra.mxu0 %v1567
    %2734 = vmatprep.subr.mxu0 %v1572
    %2735 = vmatpush1.msra.mxu0 %v1571
    %2736 = vmatprep.subr.mxu0 %v1576
    %2737 = vmatpush1.msra.mxu0 %v1575
    %2738 = vmatprep.subr.mxu0 %v1580
    %2739 = vmatpush1.msra.mxu0 %v1579
    %2740 = vmatprep.subr.mxu0 %v1584
    %2741 = vmatpush1.msra.mxu0 %v1583
    %2742 = vmatprep.subr.mxu0 %v1588
    %2743 = vmatpush1.msra.mxu0 %v1587
    %2744 = vmatprep.subr.mxu0 %v1592
    %2745 = vmatpush1.msra.mxu0 %v1591
    %2746 = vmatprep.subr.mxu0 %v1596
    %2747 = vmatpush1.msra.mxu0 %v1595
    %2748 = vmatprep.subr.mxu0 %v1600
    %2749 = vmatpush1.msra.mxu0 %v1599
    %2750 = vmatprep.subr.mxu0 %v1604
    %2751 = vmatpush1.msra.mxu0 %v1603
    %2752 = vmatprep.mubr.f32.mxu0 %v1224
    %2753 = vmatmul.mubr.f32.gmra.mrb[0].mxu0 %v1223
    %v2754 = vpop.f32.mrb[0].mxu0
    %v2755 = vadd.f32 %v2594, %v2754
    %v2756 = vpop.f32.mrb[0].mxu0
    %v2757 = vadd.f32 %v2596, %v2756
    %2758 = vmatprep.mubr.f32.mxu0 %v1232
    %2759 = vmatmul.mubr.f32.gmra.mrb[0].mxu0 %v1231
    %v2760 = vpop.f32.mrb[0].mxu0
    %v2761 = vadd.f32 %v2600, %v2760
    %v2762 = vpop.f32.mrb[0].mxu0
    %v2763 = vadd.f32 %v2602, %v2762
    %2764 = vmatprep.mubr.f32.mxu0 %v1240
    %2765 = vmatmul.mubr.f32.gmra.mrb[0].mxu0 %v1239
    %v2766 = vpop.f32.mrb[0].mxu0
    %v2767 = vadd.f32 %v2606, %v2766
    %v2768 = vpop.f32.mrb[0].mxu0
    %v2769 = vadd.f32 %v2608, %v2768
    %2770 = vmatprep.mubr.f32.mxu0 %v1248
    %2771 = vmatmul.mubr.f32.gmra.mrb[0].mxu0 %v1247
    %v2772 = vpop.f32.mrb[0].mxu0
    %v2773 = vadd.f32 %v2612, %v2772
    %v2774 = vpop.f32.mrb[0].mxu0
    %v2775 = vadd.f32 %v2614, %v2774
    %2776 = vmatprep.mubr.f32.mxu0 %v1256
    %2777 = vmatmul.mubr.f32.gmra.mrb[0].mxu0 %v1255
    %v2778 = vpop.f32.mrb[0].mxu0
    %v2779 = vadd.f32 %v2618, %v2778
    %v2780 = vpop.f32.mrb[0].mxu0
    %v2781 = vadd.f32 %v2620, %v2780
    %2782 = vmatprep.mubr.f32.mxu0 %v1264
    %2783 = vmatmul.mubr.f32.gmra.mrb[0].mxu0 %v1263
    %v2784 = vpop.f32.mrb[0].mxu0
    %v2785 = vadd.f32 %v2624, %v2784
    %v2786 = vpop.f32.mrb[0].mxu0
    %v2787 = vadd.f32 %v2626, %v2786
    %2788 = vmatprep.mubr.f32.mxu0 %v1272
    %2789 = vmatmul.mubr.f32.gmra.mrb[0].mxu0 %v1271
    %v2790 = vpop.f32.mrb[0].mxu0
    %v2791 = vadd.f32 %v2630, %v2790
    %v2792 = vpop.f32.mrb[0].mxu0
    %v2793 = vadd.f32 %v2632, %v2792
    %2794 = vmatprep.mubr.f32.mxu0 %v1280
    %2795 = vmatmul.mubr.f32.gmra.mrb[0].mxu0 %v1279
    %v2796 = vpop.f32.mrb[0].mxu0
    %v2797 = vadd.f32 %v2636, %v2796
    %v2798 = vpop.f32.mrb[0].mxu0
    %v2799 = vadd.f32 %v2638, %v2798
    %2800 = vmatprep.mubr.f32.mxu0 %v1288
    %2801 = vmatmul.mubr.f32.gmra.mrb[0].mxu0 %v1287
    %v2802 = vpop.f32.mrb[0].mxu0
    %v2803 = vadd.f32 %v2642, %v2802
    %v2804 = vpop.f32.mrb[0].mxu0
    %v2805 = vadd.f32 %v2644, %v2804
    %2806 = vmatprep.mubr.f32.mxu0 %v1296
    %2807 = vmatmul.mubr.f32.gmra.mrb[0].mxu0 %v1295
    %v2808 = vpop.f32.mrb[0].mxu0
    %v2809 = vadd.f32 %v2648, %v2808
    %v2810 = vpop.f32.mrb[0].mxu0
    %v2811 = vadd.f32 %v2650, %v2810
    %2812 = vmatprep.mubr.f32.mxu0 %v1304
    %2813 = vmatmul.mubr.f32.gmra.mrb[0].mxu0 %v1303
    %v2814 = vpop.f32.mrb[0].mxu0
    %v2815 = vadd.f32 %v2654, %v2814
    %v2816 = vpop.f32.mrb[0].mxu0
    %v2817 = vadd.f32 %v2656, %v2816
    %2818 = vmatprep.mubr.f32.mxu0 %v1312
    %2819 = vmatmul.mubr.f32.gmra.mrb[0].mxu0 %v1311
    %v2820 = vpop.f32.mrb[0].mxu0
    %v2821 = vadd.f32 %v2660, %v2820
    %v2822 = vpop.f32.mrb[0].mxu0
    %v2823 = vadd.f32 %v2662, %v2822
    %2824 = vmatprep.mubr.f32.mxu0 %v1320
    %2825 = vmatmul.mubr.f32.gmra.mrb[0].mxu0 %v1319
    %v2826 = vpop.f32.mrb[0].mxu0
    %v2827 = vadd.f32 %v2666, %v2826
    %v2828 = vpop.f32.mrb[0].mxu0
    %v2829 = vadd.f32 %v2668, %v2828
    %2830 = vmatprep.mubr.f32.mxu0 %v1328
    %2831 = vmatmul.mubr.f32.gmra.mrb[0].mxu0 %v1327
    %v2832 = vpop.f32.mrb[0].mxu0
    %v2833 = vadd.f32 %v2672, %v2832
    %v2834 = vpop.f32.mrb[0].mxu0
    %v2835 = vadd.f32 %v2674, %v2834
    %2836 = vmatprep.mubr.f32.mxu0 %v1336
    %2837 = vmatmul.mubr.f32.gmra.mrb[0].mxu0 %v1335
    %v2838 = vpop.f32.mrb[0].mxu0
    %v2839 = vadd.f32 %v2678, %v2838
    %v2840 = vpop.f32.mrb[0].mxu0
    %v2841 = vadd.f32 %v2680, %v2840
    %2842 = vmatprep.mubr.f32.mxu0 %v1344
    %2843 = vmatmul.mubr.f32.gmra.mrb[0].mxu0 %v1343
    %v2844 = vpop.f32.mrb[0].mxu0
    %v2845 = vadd.f32 %v2684, %v2844
    %v2846 = vpop.f32.mrb[0].mxu0
    %v2847 = vadd.f32 %v2686, %v2846
    %2848 = vdwg.mxu0
    %2849 = vmatprep.subr.mxu0 %v1608
    %2850 = vmatpush1.msra.mxu0 %v1607
    %2851 = vmatprep.subr.mxu0 %v1612
    %2852 = vmatpush1.msra.mxu0 %v1611
    %2853 = vmatprep.subr.mxu0 %v1616
    %2854 = vmatpush1.msra.mxu0 %v1615
    %2855 = vmatprep.subr.mxu0 %v1620
    %2856 = vmatpush1.msra.mxu0 %v1619
    %2857 = vmatprep.subr.mxu0 %v1624
    %2858 = vmatpush1.msra.mxu0 %v1623
    %2859 = vmatprep.subr.mxu0 %v1628
    %2860 = vmatpush1.msra.mxu0 %v1627
    %2861 = vmatprep.subr.mxu0 %v1632
    %2862 = vmatpush1.msra.mxu0 %v1631
    %2863 = vmatprep.subr.mxu0 %v1636
    %2864 = vmatpush1.msra.mxu0 %v1635
    %2865 = vmatprep.subr.mxu0 %v1640
    %2866 = vmatpush1.msra.mxu0 %v1639
    %2867 = vmatprep.subr.mxu0 %v1644
    %2868 = vmatpush1.msra.mxu0 %v1643
    %2869 = vmatprep.subr.mxu0 %v1648
    %2870 = vmatpush1.msra.mxu0 %v1647
    %2871 = vmatprep.subr.mxu0 %v1652
    %2872 = vmatpush1.msra.mxu0 %v1651
    %2873 = vmatprep.subr.mxu0 %v1656
    %2874 = vmatpush1.msra.mxu0 %v1655
    %2875 = vmatprep.subr.mxu0 %v1660
    %2876 = vmatpush1.msra.mxu0 %v1659
    %2877 = vmatprep.subr.mxu0 %v1664
    %2878 = vmatpush1.msra.mxu0 %v1663
    %2879 = vmatprep.subr.mxu0 %v1668
    %2880 = vmatpush1.msra.mxu0 %v1667
    %2881 = vmatprep.subr.mxu0 %v1672
    %2882 = vmatpush1.msra.mxu0 %v1671
    %2883 = vmatprep.subr.mxu0 %v1676
    %2884 = vmatpush1.msra.mxu0 %v1675
    %2885 = vmatprep.subr.mxu0 %v1680
    %2886 = vmatpush1.msra.mxu0 %v1679
    %2887 = vmatprep.subr.mxu0 %v1684
    %2888 = vmatpush1.msra.mxu0 %v1683
    %2889 = vmatprep.subr.mxu0 %v1688
    %2890 = vmatpush1.msra.mxu0 %v1687
    %2891 = vmatprep.subr.mxu0 %v1692
    %2892 = vmatpush1.msra.mxu0 %v1691
    %2893 = vmatprep.subr.mxu0 %v1696
    %2894 = vmatpush1.msra.mxu0 %v1695
    %2895 = vmatprep.subr.mxu0 %v1700
    %2896 = vmatpush1.msra.mxu0 %v1699
    %2897 = vmatprep.subr.mxu0 %v1704
    %2898 = vmatpush1.msra.mxu0 %v1703
    %2899 = vmatprep.subr.mxu0 %v1708
    %2900 = vmatpush1.msra.mxu0 %v1707
    %2901 = vmatprep.subr.mxu0 %v1712
    %2902 = vmatpush1.msra.mxu0 %v1711
    %2903 = vmatprep.subr.mxu0 %v1716
    %2904 = vmatpush1.msra.mxu0 %v1715
    %2905 = vmatprep.subr.mxu0 %v1720
    %2906 = vmatpush1.msra.mxu0 %v1719
    %2907 = vmatprep.subr.mxu0 %v1724
    %2908 = vmatpush1.msra.mxu0 %v1723
    %2909 = vmatprep.subr.mxu0 %v1728
    %2910 = vmatpush1.msra.mxu0 %v1727
    %2911 = vmatprep.subr.mxu0 %v1732
    %2912 = vmatpush1.msra.mxu0 %v1731
    %2913 = vmatprep.mubr.f32.mxu0 %v1226
    %2914 = vmatmul.mubr.f32.gmra.mrb[0].mxu0 %v1225
    %v2915 = vpop.f32.mrb[0].mxu0
    %v2916 = vadd.f32 %v2755, %v2915
    %v2917 = vpop.f32.mrb[0].mxu0
    %v2918 = vadd.f32 %v2757, %v2917
    %2919 = vmatprep.mubr.f32.mxu0 %v1234
    %2920 = vmatmul.mubr.f32.gmra.mrb[0].mxu0 %v1233
    %v2921 = vpop.f32.mrb[0].mxu0
    %v2922 = vadd.f32 %v2761, %v2921
    %v2923 = vpop.f32.mrb[0].mxu0
    %v2924 = vadd.f32 %v2763, %v2923
    %2925 = vmatprep.mubr.f32.mxu0 %v1242
    %2926 = vmatmul.mubr.f32.gmra.mrb[0].mxu0 %v1241
    %v2927 = vpop.f32.mrb[0].mxu0
    %v2928 = vadd.f32 %v2767, %v2927
    %v2929 = vpop.f32.mrb[0].mxu0
    %v2930 = vadd.f32 %v2769, %v2929
    %2931 = vmatprep.mubr.f32.mxu0 %v1250
    %2932 = vmatmul.mubr.f32.gmra.mrb[0].mxu0 %v1249
    %v2933 = vpop.f32.mrb[0].mxu0
    %v2934 = vadd.f32 %v2773, %v2933
    %v2935 = vpop.f32.mrb[0].mxu0
    %v2936 = vadd.f32 %v2775, %v2935
    %2937 = vmatprep.mubr.f32.mxu0 %v1258
    %2938 = vmatmul.mubr.f32.gmra.mrb[0].mxu0 %v1257
    %v2939 = vpop.f32.mrb[0].mxu0
    %v2940 = vadd.f32 %v2779, %v2939
    %v2941 = vpop.f32.mrb[0].mxu0
    %v2942 = vadd.f32 %v2781, %v2941
    %2943 = vmatprep.mubr.f32.mxu0 %v1266
    %2944 = vmatmul.mubr.f32.gmra.mrb[0].mxu0 %v1265
    %v2945 = vpop.f32.mrb[0].mxu0
    %v2946 = vadd.f32 %v2785, %v2945
    %v2947 = vpop.f32.mrb[0].mxu0
    %v2948 = vadd.f32 %v2787, %v2947
    %2949 = vmatprep.mubr.f32.mxu0 %v1274
    %2950 = vmatmul.mubr.f32.gmra.mrb[0].mxu0 %v1273
    %v2951 = vpop.f32.mrb[0].mxu0
    %v2952 = vadd.f32 %v2791, %v2951
    %v2953 = vpop.f32.mrb[0].mxu0
    %v2954 = vadd.f32 %v2793, %v2953
    %2955 = vmatprep.mubr.f32.mxu0 %v1282
    %2956 = vmatmul.mubr.f32.gmra.mrb[0].mxu0 %v1281
    %v2957 = vpop.f32.mrb[0].mxu0
    %v2958 = vadd.f32 %v2797, %v2957
    %v2959 = vpop.f32.mrb[0].mxu0
    %v2960 = vadd.f32 %v2799, %v2959
    %2961 = vmatprep.mubr.f32.mxu0 %v1290
    %2962 = vmatmul.mubr.f32.gmra.mrb[0].mxu0 %v1289
    %v2963 = vpop.f32.mrb[0].mxu0
    %v2964 = vadd.f32 %v2803, %v2963
    %v2965 = vpop.f32.mrb[0].mxu0
    %v2966 = vadd.f32 %v2805, %v2965
    %2967 = vmatprep.mubr.f32.mxu0 %v1298
    %2968 = vmatmul.mubr.f32.gmra.mrb[0].mxu0 %v1297
    %v2969 = vpop.f32.mrb[0].mxu0
    %v2970 = vadd.f32 %v2809, %v2969
    %v2971 = vpop.f32.mrb[0].mxu0
    %v2972 = vadd.f32 %v2811, %v2971
    %2973 = vmatprep.mubr.f32.mxu0 %v1306
    %2974 = vmatmul.mubr.f32.gmra.mrb[0].mxu0 %v1305
    %v2975 = vpop.f32.mrb[0].mxu0
    %v2976 = vadd.f32 %v2815, %v2975
    %v2977 = vpop.f32.mrb[0].mxu0
    %v2978 = vadd.f32 %v2817, %v2977
    %2979 = vmatprep.mubr.f32.mxu0 %v1314
    %2980 = vmatmul.mubr.f32.gmra.mrb[0].mxu0 %v1313
    %v2981 = vpop.f32.mrb[0].mxu0
    %v2982 = vadd.f32 %v2821, %v2981
    %v2983 = vpop.f32.mrb[0].mxu0
    %v2984 = vadd.f32 %v2823, %v2983
    %2985 = vmatprep.mubr.f32.mxu0 %v1322
    %2986 = vmatmul.mubr.f32.gmra.mrb[0].mxu0 %v1321
    %v2987 = vpop.f32.mrb[0].mxu0
    %v2988 = vadd.f32 %v2827, %v2987
    %v2989 = vpop.f32.mrb[0].mxu0
    %v2990 = vadd.f32 %v2829, %v2989
    %2991 = vmatprep.mubr.f32.mxu0 %v1330
    %2992 = vmatmul.mubr.f32.gmra.mrb[0].mxu0 %v1329
    %v2993 = vpop.f32.mrb[0].mxu0
    %v2994 = vadd.f32 %v2833, %v2993
    %v2995 = vpop.f32.mrb[0].mxu0
    %v2996 = vadd.f32 %v2835, %v2995
    %2997 = vmatprep.mubr.f32.mxu0 %v1338
    %2998 = vmatmul.mubr.f32.gmra.mrb[0].mxu0 %v1337
    %v2999 = vpop.f32.mrb[0].mxu0
    %v3000 = vadd.f32 %v2839, %v2999
    %v3001 = vpop.f32.mrb[0].mxu0
    %v3002 = vadd.f32 %v2841, %v3001
    %3003 = vmatprep.mubr.f32.mxu0 %v1346
    %3004 = vmatmul.mubr.f32.gmra.mrb[0].mxu0 %v1345
    %v3005 = vpop.f32.mrb[0].mxu0
    %v3006 = vadd.f32 %v2845, %v3005
    %v3007 = vpop.f32.mrb[0].mxu0
    %v3008 = vadd.f32 %v2847, %v3007
    %3009 = vdwg.mxu0
    %3010 = vmatprep.subr.mxu0 %v1736
    %3011 = vmatpush1.msra.mxu0 %v1735
    %3012 = vmatprep.subr.mxu0 %v1740
    %3013 = vmatpush1.msra.mxu0 %v1739
    %3014 = vmatprep.subr.mxu0 %v1744
    %3015 = vmatpush1.msra.mxu0 %v1743
    %3016 = vmatprep.subr.mxu0 %v1748
    %3017 = vmatpush1.msra.mxu0 %v1747
    %3018 = vmatprep.subr.mxu0 %v1752
    %3019 = vmatpush1.msra.mxu0 %v1751
    %3020 = vmatprep.subr.mxu0 %v1756
    %3021 = vmatpush1.msra.mxu0 %v1755
    %3022 = vmatprep.subr.mxu0 %v1760
    %3023 = vmatpush1.msra.mxu0 %v1759
    %3024 = vmatprep.subr.mxu0 %v1764
    %3025 = vmatpush1.msra.mxu0 %v1763
    %3026 = vmatprep.subr.mxu0 %v1768
    %3027 = vmatpush1.msra.mxu0 %v1767
    %3028 = vmatprep.subr.mxu0 %v1772
    %3029 = vmatpush1.msra.mxu0 %v1771
    %3030 = vmatprep.subr.mxu0 %v1776
    %3031 = vmatpush1.msra.mxu0 %v1775
    %3032 = vmatprep.subr.mxu0 %v1780
    %3033 = vmatpush1.msra.mxu0 %v1779
    %3034 = vmatprep.subr.mxu0 %v1784
    %3035 = vmatpush1.msra.mxu0 %v1783
    %3036 = vmatprep.subr.mxu0 %v1788
    %3037 = vmatpush1.msra.mxu0 %v1787
    %3038 = vmatprep.subr.mxu0 %v1792
    %3039 = vmatpush1.msra.mxu0 %v1791
    %3040 = vmatprep.subr.mxu0 %v1796
    %3041 = vmatpush1.msra.mxu0 %v1795
    %3042 = vmatprep.subr.mxu0 %v1800
    %3043 = vmatpush1.msra.mxu0 %v1799
    %3044 = vmatprep.subr.mxu0 %v1804
    %3045 = vmatpush1.msra.mxu0 %v1803
    %3046 = vmatprep.subr.mxu0 %v1808
    %3047 = vmatpush1.msra.mxu0 %v1807
    %3048 = vmatprep.subr.mxu0 %v1812
    %3049 = vmatpush1.msra.mxu0 %v1811
    %3050 = vmatprep.subr.mxu0 %v1816
    %3051 = vmatpush1.msra.mxu0 %v1815
    %3052 = vmatprep.subr.mxu0 %v1820
    %3053 = vmatpush1.msra.mxu0 %v1819
    %3054 = vmatprep.subr.mxu0 %v1824
    %3055 = vmatpush1.msra.mxu0 %v1823
    %3056 = vmatprep.subr.mxu0 %v1828
    %3057 = vmatpush1.msra.mxu0 %v1827
    %3058 = vmatprep.subr.mxu0 %v1832
    %3059 = vmatpush1.msra.mxu0 %v1831
    %3060 = vmatprep.subr.mxu0 %v1836
    %3061 = vmatpush1.msra.mxu0 %v1835
    %3062 = vmatprep.subr.mxu0 %v1840
    %3063 = vmatpush1.msra.mxu0 %v1839
    %3064 = vmatprep.subr.mxu0 %v1844
    %3065 = vmatpush1.msra.mxu0 %v1843
    %3066 = vmatprep.subr.mxu0 %v1848
    %3067 = vmatpush1.msra.mxu0 %v1847
    %3068 = vmatprep.subr.mxu0 %v1852
    %3069 = vmatpush1.msra.mxu0 %v1851
    %3070 = vmatprep.subr.mxu0 %v1856
    %3071 = vmatpush1.msra.mxu0 %v1855
    %3072 = vmatprep.subr.mxu0 %v1860
    %3073 = vmatpush1.msra.mxu0 %v1859
    %3074 = vmatprep.mubr.f32.mxu0 %v1228
    %3075 = vmatmul.mubr.f32.gmra.mrb[0].mxu0 %v1227
    %v3076 = vpop.f32.mrb[0].mxu0
    %v3077 = vadd.f32 %v2916, %v3076
    %v3078 = vpop.f32.mrb[0].mxu0
    %v3079 = vadd.f32 %v2918, %v3078
    %3080 = vmatprep.mubr.f32.mxu0 %v1236
    %3081 = vmatmul.mubr.f32.gmra.mrb[0].mxu0 %v1235
    %v3082 = vpop.f32.mrb[0].mxu0
    %v3083 = vadd.f32 %v2922, %v3082
    %v3084 = vpop.f32.mrb[0].mxu0
    %v3085 = vadd.f32 %v2924, %v3084
    %3086 = vmatprep.mubr.f32.mxu0 %v1244
    %3087 = vmatmul.mubr.f32.gmra.mrb[0].mxu0 %v1243
    %v3088 = vpop.f32.mrb[0].mxu0
    %v3089 = vadd.f32 %v2928, %v3088
    %v3090 = vpop.f32.mrb[0].mxu0
    %v3091 = vadd.f32 %v2930, %v3090
    %3092 = vmatprep.mubr.f32.mxu0 %v1252
    %3093 = vmatmul.mubr.f32.gmra.mrb[0].mxu0 %v1251
    %v3094 = vpop.f32.mrb[0].mxu0
    %v3095 = vadd.f32 %v2934, %v3094
    %v3096 = vpop.f32.mrb[0].mxu0
    %v3097 = vadd.f32 %v2936, %v3096
    %3098 = vmatprep.mubr.f32.mxu0 %v1260
    %3099 = vmatmul.mubr.f32.gmra.mrb[0].mxu0 %v1259
    %v3100 = vpop.f32.mrb[0].mxu0
    %v3101 = vadd.f32 %v2940, %v3100
    %v3102 = vpop.f32.mrb[0].mxu0
    %v3103 = vadd.f32 %v2942, %v3102
    %3104 = vmatprep.mubr.f32.mxu0 %v1268
    %3105 = vmatmul.mubr.f32.gmra.mrb[0].mxu0 %v1267
    %v3106 = vpop.f32.mrb[0].mxu0
    %v3107 = vadd.f32 %v2946, %v3106
    %v3108 = vpop.f32.mrb[0].mxu0
    %v3109 = vadd.f32 %v2948, %v3108
    %3110 = vmatprep.mubr.f32.mxu0 %v1276
    %3111 = vmatmul.mubr.f32.gmra.mrb[0].mxu0 %v1275
    %v3112 = vpop.f32.mrb[0].mxu0
    %v3113 = vadd.f32 %v2952, %v3112
    %v3114 = vpop.f32.mrb[0].mxu0
    %v3115 = vadd.f32 %v2954, %v3114
    %3116 = vmatprep.mubr.f32.mxu0 %v1284
    %3117 = vmatmul.mubr.f32.gmra.mrb[0].mxu0 %v1283
    %v3118 = vpop.f32.mrb[0].mxu0
    %v3119 = vadd.f32 %v2958, %v3118
    %v3120 = vpop.f32.mrb[0].mxu0
    %v3121 = vadd.f32 %v2960, %v3120
    %3122 = vmatprep.mubr.f32.mxu0 %v1292
    %3123 = vmatmul.mubr.f32.gmra.mrb[0].mxu0 %v1291
    %v3124 = vpop.f32.mrb[0].mxu0
    %v3125 = vadd.f32 %v2964, %v3124
    %v3126 = vpop.f32.mrb[0].mxu0
    %v3127 = vadd.f32 %v2966, %v3126
    %3128 = vmatprep.mubr.f32.mxu0 %v1300
    %3129 = vmatmul.mubr.f32.gmra.mrb[0].mxu0 %v1299
    %v3130 = vpop.f32.mrb[0].mxu0
    %v3131 = vadd.f32 %v2970, %v3130
    %v3132 = vpop.f32.mrb[0].mxu0
    %v3133 = vadd.f32 %v2972, %v3132
    %3134 = vmatprep.mubr.f32.mxu0 %v1308
    %3135 = vmatmul.mubr.f32.gmra.mrb[0].mxu0 %v1307
    %v3136 = vpop.f32.mrb[0].mxu0
    %v3137 = vadd.f32 %v2976, %v3136
    %v3138 = vpop.f32.mrb[0].mxu0
    %v3139 = vadd.f32 %v2978, %v3138
    %3140 = vmatprep.mubr.f32.mxu0 %v1316
    %3141 = vmatmul.mubr.f32.gmra.mrb[0].mxu0 %v1315
    %v3142 = vpop.f32.mrb[0].mxu0
    %v3143 = vadd.f32 %v2982, %v3142
    %v3144 = vpop.f32.mrb[0].mxu0
    %v3145 = vadd.f32 %v2984, %v3144
    %3146 = vmatprep.mubr.f32.mxu0 %v1324
    %3147 = vmatmul.mubr.f32.gmra.mrb[0].mxu0 %v1323
    %v3148 = vpop.f32.mrb[0].mxu0
    %v3149 = vadd.f32 %v2988, %v3148
    %v3150 = vpop.f32.mrb[0].mxu0
    %v3151 = vadd.f32 %v2990, %v3150
    %3152 = vmatprep.mubr.f32.mxu0 %v1332
    %3153 = vmatmul.mubr.f32.gmra.mrb[0].mxu0 %v1331
    %v3154 = vpop.f32.mrb[0].mxu0
    %v3155 = vadd.f32 %v2994, %v3154
    %v3156 = vpop.f32.mrb[0].mxu0
    %v3157 = vadd.f32 %v2996, %v3156
    %3158 = vmatprep.mubr.f32.mxu0 %v1340
    %3159 = vmatmul.mubr.f32.gmra.mrb[0].mxu0 %v1339
    %v3160 = vpop.f32.mrb[0].mxu0
    %v3161 = vadd.f32 %v3000, %v3160
    %v3162 = vpop.f32.mrb[0].mxu0
    %v3163 = vadd.f32 %v3002, %v3162
    %3164 = vmatprep.mubr.f32.mxu0 %v1348
    %3165 = vmatmul.mubr.f32.gmra.mrb[0].mxu0 %v1347
    %v3166 = vpop.f32.mrb[0].mxu0
    %v3167 = vadd.f32 %v3006, %v3166
    %v3168 = vpop.f32.mrb[0].mxu0
    %v3169 = vadd.f32 %v3008, %v3168
    %3170 = vdwg.mxu0
    %vm3171 = vcmp.gt.f32.partialorder %v2433, 0.0
    %vm3172 = vcmp.gt.f32.partialorder %v2435, 0.0
    %vm3173 = vcmp.gt.f32.partialorder %v3077, 0.0
    %vm3174 = vcmp.gt.f32.partialorder %v3079, 0.0
    %vm3175 = vcmp.gt.f32.partialorder %v2439, 0.0
    %vm3176 = vcmp.gt.f32.partialorder %v2441, 0.0
    %vm3177 = vcmp.gt.f32.partialorder %v3083, 0.0
    %vm3178 = vcmp.gt.f32.partialorder %v3085, 0.0
    %vm3179 = vcmp.gt.f32.partialorder %v2445, 0.0
    %vm3180 = vcmp.gt.f32.partialorder %v2447, 0.0
    %vm3181 = vcmp.gt.f32.partialorder %v3089, 0.0
    %vm3182 = vcmp.gt.f32.partialorder %v3091, 0.0
    %vm3183 = vcmp.gt.f32.partialorder %v2451, 0.0
    %vm3184 = vcmp.gt.f32.partialorder %v2453, 0.0
    %vm3185 = vcmp.gt.f32.partialorder %v3095, 0.0
    %vm3186 = vcmp.gt.f32.partialorder %v3097, 0.0
    %vm3187 = vcmp.gt.f32.partialorder %v2457, 0.0
    %vm3188 = vcmp.gt.f32.partialorder %v2459, 0.0
    %vm3189 = vcmp.gt.f32.partialorder %v3101, 0.0
    %vm3190 = vcmp.gt.f32.partialorder %v3103, 0.0
    %vm3191 = vcmp.gt.f32.partialorder %v2463, 0.0
    %vm3192 = vcmp.gt.f32.partialorder %v2465, 0.0
    %vm3193 = vcmp.gt.f32.partialorder %v3107, 0.0
    %vm3194 = vcmp.gt.f32.partialorder %v3109, 0.0
    %vm3195 = vcmp.gt.f32.partialorder %v2469, 0.0
    %vm3196 = vcmp.gt.f32.partialorder %v2471, 0.0
    %vm3197 = vcmp.gt.f32.partialorder %v3113, 0.0
    %vm3198 = vcmp.gt.f32.partialorder %v3115, 0.0
    %vm3199 = vcmp.gt.f32.partialorder %v2475, 0.0
    %vm3200 = vcmp.gt.f32.partialorder %v2477, 0.0
    %vm3201 = vcmp.gt.f32.partialorder %v3119, 0.0
    %vm3202 = vcmp.gt.f32.partialorder %v3121, 0.0
    %vm3203 = vcmp.gt.f32.partialorder %v2481, 0.0
    %vm3204 = vcmp.gt.f32.partialorder %v2483, 0.0
    %vm3205 = vcmp.gt.f32.partialorder %v3125, 0.0
    %vm3206 = vcmp.gt.f32.partialorder %v3127, 0.0
    %vm3207 = vcmp.gt.f32.partialorder %v2487, 0.0
    %vm3208 = vcmp.gt.f32.partialorder %v2489, 0.0
    %vm3209 = vcmp.gt.f32.partialorder %v3131, 0.0
    %vm3210 = vcmp.gt.f32.partialorder %v3133, 0.0
    %vm3211 = vcmp.gt.f32.partialorder %v2493, 0.0
    %vm3212 = vcmp.gt.f32.partialorder %v2495, 0.0
    %vm3213 = vcmp.gt.f32.partialorder %v3137, 0.0
    %vm3214 = vcmp.gt.f32.partialorder %v3139, 0.0
    %vm3215 = vcmp.gt.f32.partialorder %v2499, 0.0
    %vm3216 = vcmp.gt.f32.partialorder %v2501, 0.0
    %vm3217 = vcmp.gt.f32.partialorder %v3143, 0.0
    %vm3218 = vcmp.gt.f32.partialorder %v3145, 0.0
    %vm3219 = vcmp.gt.f32.partialorder %v2505, 0.0
    %vm3220 = vcmp.gt.f32.partialorder %v2507, 0.0
    %vm3221 = vcmp.gt.f32.partialorder %v3149, 0.0
    %vm3222 = vcmp.gt.f32.partialorder %v3151, 0.0
    %vm3223 = vcmp.gt.f32.partialorder %v2511, 0.0
    %vm3224 = vcmp.gt.f32.partialorder %v2513, 0.0
    %vm3225 = vcmp.gt.f32.partialorder %v3155, 0.0
    %vm3226 = vcmp.gt.f32.partialorder %v3157, 0.0
    %vm3227 = vcmp.gt.f32.partialorder %v2517, 0.0
    %vm3228 = vcmp.gt.f32.partialorder %v2519, 0.0
    %vm3229 = vcmp.gt.f32.partialorder %v3161, 0.0
    %vm3230 = vcmp.gt.f32.partialorder %v3163, 0.0
    %vm3231 = vcmp.gt.f32.partialorder %v2523, 0.0
    %vm3232 = vcmp.gt.f32.partialorder %v2525, 0.0
    %vm3233 = vcmp.gt.f32.partialorder %v3167, 0.0
    %vm3234 = vcmp.gt.f32.partialorder %v3169, 0.0
    %v3235 = vmul.f32 %v2433, 0.01
    %v3236 = vmul.f32 %v2435, 0.01
    %v3237 = vmul.f32 %v3077, 0.01
    %v3238 = vmul.f32 %v3079, 0.01
    %v3239 = vmul.f32 %v2439, 0.01
    %v3240 = vmul.f32 %v2441, 0.01
    %v3241 = vmul.f32 %v3083, 0.01
    %v3242 = vmul.f32 %v3085, 0.01
    %v3243 = vmul.f32 %v2445, 0.01
    %v3244 = vmul.f32 %v2447, 0.01
    %v3245 = vmul.f32 %v3089, 0.01
    %v3246 = vmul.f32 %v3091, 0.01
    %v3247 = vmul.f32 %v2451, 0.01
    %v3248 = vmul.f32 %v2453, 0.01
    %v3249 = vmul.f32 %v3095, 0.01
    %v3250 = vmul.f32 %v3097, 0.01
    %v3251 = vmul.f32 %v2457, 0.01
    %v3252 = vmul.f32 %v2459, 0.01
    %v3253 = vmul.f32 %v3101, 0.01
    %v3254 = vmul.f32 %v3103, 0.01
    %v3255 = vmul.f32 %v2463, 0.01
    %v3256 = vmul.f32 %v2465, 0.01
    %v3257 = vmul.f32 %v3107, 0.01
    %v3258 = vmul.f32 %v3109, 0.01
    %v3259 = vmul.f32 %v2469, 0.01
    %v3260 = vmul.f32 %v2471, 0.01
    %v3261 = vmul.f32 %v3113, 0.01
    %v3262 = vmul.f32 %v3115, 0.01
    %v3263 = vmul.f32 %v2475, 0.01
    %v3264 = vmul.f32 %v2477, 0.01
    %v3265 = vmul.f32 %v3119, 0.01
    %v3266 = vmul.f32 %v3121, 0.01
    %v3267 = vmul.f32 %v2481, 0.01
    %v3268 = vmul.f32 %v2483, 0.01
    %v3269 = vmul.f32 %v3125, 0.01
    %v3270 = vmul.f32 %v3127, 0.01
    %v3271 = vmul.f32 %v2487, 0.01
    %v3272 = vmul.f32 %v2489, 0.01
    %v3273 = vmul.f32 %v3131, 0.01
    %v3274 = vmul.f32 %v3133, 0.01
    %v3275 = vmul.f32 %v2493, 0.01
    %v3276 = vmul.f32 %v2495, 0.01
    %v3277 = vmul.f32 %v3137, 0.01
    %v3278 = vmul.f32 %v3139, 0.01
    %v3279 = vmul.f32 %v2499, 0.01
    %v3280 = vmul.f32 %v2501, 0.01
    %v3281 = vmul.f32 %v3143, 0.01
    %v3282 = vmul.f32 %v3145, 0.01
    %v3283 = vmul.f32 %v2505, 0.01
    %v3284 = vmul.f32 %v2507, 0.01
    %v3285 = vmul.f32 %v3149, 0.01
    %v3286 = vmul.f32 %v3151, 0.01
    %v3287 = vmul.f32 %v2511, 0.01
    %v3288 = vmul.f32 %v2513, 0.01
    %v3289 = vmul.f32 %v3155, 0.01
    %v3290 = vmul.f32 %v3157, 0.01
    %v3291 = vmul.f32 %v2517, 0.01
    %v3292 = vmul.f32 %v2519, 0.01
    %v3293 = vmul.f32 %v3161, 0.01
    %v3294 = vmul.f32 %v3163, 0.01
    %v3295 = vmul.f32 %v2523, 0.01
    %v3296 = vmul.f32 %v2525, 0.01
    %v3297 = vmul.f32 %v3167, 0.01
    %v3298 = vmul.f32 %v3169, 0.01
    %v3299 = vsel %vm3171, %v2433, %v3235
    %v3300 = vsel %vm3172, %v2435, %v3236
    %v3301 = vsel %vm3173, %v3077, %v3237
    %v3302 = vsel %vm3174, %v3079, %v3238
    %v3303 = vsel %vm3175, %v2439, %v3239
    %v3304 = vsel %vm3176, %v2441, %v3240
    %v3305 = vsel %vm3177, %v3083, %v3241
    %v3306 = vsel %vm3178, %v3085, %v3242
    %v3307 = vsel %vm3179, %v2445, %v3243
    %v3308 = vsel %vm3180, %v2447, %v3244
    %v3309 = vsel %vm3181, %v3089, %v3245
    %v3310 = vsel %vm3182, %v3091, %v3246
    %v3311 = vsel %vm3183, %v2451, %v3247
    %v3312 = vsel %vm3184, %v2453, %v3248
    %v3313 = vsel %vm3185, %v3095, %v3249
    %v3314 = vsel %vm3186, %v3097, %v3250
    %v3315 = vsel %vm3187, %v2457, %v3251
    %v3316 = vsel %vm3188, %v2459, %v3252
    %v3317 = vsel %vm3189, %v3101, %v3253
    %v3318 = vsel %vm3190, %v3103, %v3254
    %v3319 = vsel %vm3191, %v2463, %v3255
    %v3320 = vsel %vm3192, %v2465, %v3256
    %v3321 = vsel %vm3193, %v3107, %v3257
    %v3322 = vsel %vm3194, %v3109, %v3258
    %v3323 = vsel %vm3195, %v2469, %v3259
    %v3324 = vsel %vm3196, %v2471, %v3260
    %v3325 = vsel %vm3197, %v3113, %v3261
    %v3326 = vsel %vm3198, %v3115, %v3262
    %v3327 = vsel %vm3199, %v2475, %v3263
    %v3328 = vsel %vm3200, %v2477, %v3264
    %v3329 = vsel %vm3201, %v3119, %v3265
    %v3330 = vsel %vm3202, %v3121, %v3266
    %v3331 = vsel %vm3203, %v2481, %v3267
    %v3332 = vsel %vm3204, %v2483, %v3268
    %v3333 = vsel %vm3205, %v3125, %v3269
    %v3334 = vsel %vm3206, %v3127, %v3270
    %v3335 = vsel %vm3207, %v2487, %v3271
    %v3336 = vsel %vm3208, %v2489, %v3272
    %v3337 = vsel %vm3209, %v3131, %v3273
    %v3338 = vsel %vm3210, %v3133, %v3274
    %v3339 = vsel %vm3211, %v2493, %v3275
    %v3340 = vsel %vm3212, %v2495, %v3276
    %v3341 = vsel %vm3213, %v3137, %v3277
    %v3342 = vsel %vm3214, %v3139, %v3278
    %v3343 = vsel %vm3215, %v2499, %v3279
    %v3344 = vsel %vm3216, %v2501, %v3280
    %v3345 = vsel %vm3217, %v3143, %v3281
    %v3346 = vsel %vm3218, %v3145, %v3282
    %v3347 = vsel %vm3219, %v2505, %v3283
    %v3348 = vsel %vm3220, %v2507, %v3284
    %v3349 = vsel %vm3221, %v3149, %v3285
    %v3350 = vsel %vm3222, %v3151, %v3286
    %v3351 = vsel %vm3223, %v2511, %v3287
    %v3352 = vsel %vm3224, %v2513, %v3288
    %v3353 = vsel %vm3225, %v3155, %v3289
    %v3354 = vsel %vm3226, %v3157, %v3290
    %v3355 = vsel %vm3227, %v2517, %v3291
    %v3356 = vsel %vm3228, %v2519, %v3292
    %v3357 = vsel %vm3229, %v3161, %v3293
    %v3358 = vsel %vm3230, %v3163, %v3294
    %v3359 = vsel %vm3231, %v2523, %v3295
    %v3360 = vsel %vm3232, %v2525, %v3296
    %v3361 = vsel %vm3233, %v3167, %v3297
    %v3362 = vsel %vm3234, %v3169, %v3298
    %v3363 = vld [vmem:[#allocation11] sm:$0xff]
    %v3364 = vld [vmem:[#allocation11 + $0x8] sm:$0xff]
    %v3365 = vld [vmem:[#allocation11 + $0x10] sm:$0xff]
    %v3366 = vld [vmem:[#allocation11 + $0x18] sm:$0xff]
    %v3367 = vld [vmem:[#allocation11 + $0x20] sm:$0xff]
    %v3368 = vld [vmem:[#allocation11 + $0x28] sm:$0xff]
    %v3369 = vld [vmem:[#allocation11 + $0x30] sm:$0xff]
    %v3370 = vld [vmem:[#allocation11 + $0x38] sm:$0xff]
    %v3371 = vld [vmem:[#allocation11 + $0x40] sm:$0xff]
    %v3372 = vld [vmem:[#allocation11 + $0x48] sm:$0xff]
    %v3373 = vld [vmem:[#allocation11 + $0x50] sm:$0xff]
    %v3374 = vld [vmem:[#allocation11 + $0x58] sm:$0xff]
    %v3375 = vld [vmem:[#allocation11 + $0x60] sm:$0xff]
    %v3376 = vld [vmem:[#allocation11 + $0x68] sm:$0xff]
    %v3377 = vld [vmem:[#allocation11 + $0x70] sm:$0xff]
    %v3378 = vld [vmem:[#allocation11 + $0x78] sm:$0xff]
    %v3379 = vld [vmem:[#allocation11 + $0x80] sm:$0xff]
    %v3380 = vld [vmem:[#allocation11 + $0x88] sm:$0xff]
    %v3381 = vld [vmem:[#allocation11 + $0x90] sm:$0xff]
    %v3382 = vld [vmem:[#allocation11 + $0x98] sm:$0xff]
    %v3383 = vld [vmem:[#allocation11 + $0xa0] sm:$0xff]
    %v3384 = vld [vmem:[#allocation11 + $0xa8] sm:$0xff]
    %v3385 = vld [vmem:[#allocation11 + $0xb0] sm:$0xff]
    %v3386 = vld [vmem:[#allocation11 + $0xb8] sm:$0xff]
    %v3387 = vld [vmem:[#allocation11 + $0xc0] sm:$0xff]
    %v3388 = vld [vmem:[#allocation11 + $0xc8] sm:$0xff]
    %v3389 = vld [vmem:[#allocation11 + $0xd0] sm:$0xff]
    %v3390 = vld [vmem:[#allocation11 + $0xd8] sm:$0xff]
    %v3391 = vld [vmem:[#allocation11 + $0xe0] sm:$0xff]
    %v3392 = vld [vmem:[#allocation11 + $0xe8] sm:$0xff]
    %v3393 = vld [vmem:[#allocation11 + $0xf0] sm:$0xff]
    %v3394 = vld [vmem:[#allocation11 + $0xf8] sm:$0xff]
    %v3395 = vld [vmem:[#allocation11 + $0x100] sm:$0xff]
    %v3396 = vld [vmem:[#allocation11 + $0x108] sm:$0xff]
    %v3397 = vld [vmem:[#allocation11 + $0x110] sm:$0xff]
    %v3398 = vld [vmem:[#allocation11 + $0x118] sm:$0xff]
    %v3399 = vld [vmem:[#allocation11 + $0x120] sm:$0xff]
    %v3400 = vld [vmem:[#allocation11 + $0x128] sm:$0xff]
    %v3401 = vld [vmem:[#allocation11 + $0x130] sm:$0xff]
    %v3402 = vld [vmem:[#allocation11 + $0x138] sm:$0xff]
    %v3403 = vld [vmem:[#allocation11 + $0x140] sm:$0xff]
    %v3404 = vld [vmem:[#allocation11 + $0x148] sm:$0xff]
    %v3405 = vld [vmem:[#allocation11 + $0x150] sm:$0xff]
    %v3406 = vld [vmem:[#allocation11 + $0x158] sm:$0xff]
    %v3407 = vld [vmem:[#allocation11 + $0x160] sm:$0xff]
    %v3408 = vld [vmem:[#allocation11 + $0x168] sm:$0xff]
    %v3409 = vld [vmem:[#allocation11 + $0x170] sm:$0xff]
    %v3410 = vld [vmem:[#allocation11 + $0x178] sm:$0xff]
    %v3411 = vld [vmem:[#allocation11 + $0x180] sm:$0xff]
    %v3412 = vld [vmem:[#allocation11 + $0x188] sm:$0xff]
    %v3413 = vld [vmem:[#allocation11 + $0x190] sm:$0xff]
    %v3414 = vld [vmem:[#allocation11 + $0x198] sm:$0xff]
    %v3415 = vld [vmem:[#allocation11 + $0x1a0] sm:$0xff]
    %v3416 = vld [vmem:[#allocation11 + $0x1a8] sm:$0xff]
    %v3417 = vld [vmem:[#allocation11 + $0x1b0] sm:$0xff]
    %v3418 = vld [vmem:[#allocation11 + $0x1b8] sm:$0xff]
    %v3419 = vld [vmem:[#allocation11 + $0x1c0] sm:$0xff]
    %v3420 = vld [vmem:[#allocation11 + $0x1c8] sm:$0xff]
    %v3421 = vld [vmem:[#allocation11 + $0x1d0] sm:$0xff]
    %v3422 = vld [vmem:[#allocation11 + $0x1d8] sm:$0xff]
    %v3423 = vld [vmem:[#allocation11 + $0x1e0] sm:$0xff]
    %v3424 = vld [vmem:[#allocation11 + $0x1e8] sm:$0xff]
    %v3425 = vld [vmem:[#allocation11 + $0x1f0] sm:$0xff]
    %v3426 = vld [vmem:[#allocation11 + $0x1f8] sm:$0xff]
    %v3427 = vld [vmem:[#allocation11 + $0x200] sm:$0xff]
    %v3428 = vld [vmem:[#allocation11 + $0x208] sm:$0xff]
    %v3429 = vld [vmem:[#allocation11 + $0x210] sm:$0xff]
    %v3430 = vld [vmem:[#allocation11 + $0x218] sm:$0xff]
    %v3431 = vld [vmem:[#allocation11 + $0x220] sm:$0xff]
    %v3432 = vld [vmem:[#allocation11 + $0x228] sm:$0xff]
    %v3433 = vld [vmem:[#allocation11 + $0x230] sm:$0xff]
    %v3434 = vld [vmem:[#allocation11 + $0x238] sm:$0xff]
    %v3435 = vld [vmem:[#allocation11 + $0x240] sm:$0xff]
    %v3436 = vld [vmem:[#allocation11 + $0x248] sm:$0xff]
    %v3437 = vld [vmem:[#allocation11 + $0x250] sm:$0xff]
    %v3438 = vld [vmem:[#allocation11 + $0x258] sm:$0xff]
    %v3439 = vld [vmem:[#allocation11 + $0x260] sm:$0xff]
    %v3440 = vld [vmem:[#allocation11 + $0x268] sm:$0xff]
    %v3441 = vld [vmem:[#allocation11 + $0x270] sm:$0xff]
    %v3442 = vld [vmem:[#allocation11 + $0x278] sm:$0xff]
    %v3443 = vld [vmem:[#allocation11 + $0x280] sm:$0xff]
    %v3444 = vld [vmem:[#allocation11 + $0x288] sm:$0xff]
    %v3445 = vld [vmem:[#allocation11 + $0x290] sm:$0xff]
    %v3446 = vld [vmem:[#allocation11 + $0x298] sm:$0xff]
    %v3447 = vld [vmem:[#allocation11 + $0x2a0] sm:$0xff]
    %v3448 = vld [vmem:[#allocation11 + $0x2a8] sm:$0xff]
    %v3449 = vld [vmem:[#allocation11 + $0x2b0] sm:$0xff]
    %v3450 = vld [vmem:[#allocation11 + $0x2b8] sm:$0xff]
    %v3451 = vld [vmem:[#allocation11 + $0x2c0] sm:$0xff]
    %v3452 = vld [vmem:[#allocation11 + $0x2c8] sm:$0xff]
    %v3453 = vld [vmem:[#allocation11 + $0x2d0] sm:$0xff]
    %v3454 = vld [vmem:[#allocation11 + $0x2d8] sm:$0xff]
    %v3455 = vld [vmem:[#allocation11 + $0x2e0] sm:$0xff]
    %v3456 = vld [vmem:[#allocation11 + $0x2e8] sm:$0xff]
    %v3457 = vld [vmem:[#allocation11 + $0x2f0] sm:$0xff]
    %v3458 = vld [vmem:[#allocation11 + $0x2f8] sm:$0xff]
    %v3459 = vld [vmem:[#allocation11 + $0x300] sm:$0xff]
    %v3460 = vld [vmem:[#allocation11 + $0x308] sm:$0xff]
    %v3461 = vld [vmem:[#allocation11 + $0x310] sm:$0xff]
    %v3462 = vld [vmem:[#allocation11 + $0x318] sm:$0xff]
    %v3463 = vld [vmem:[#allocation11 + $0x320] sm:$0xff]
    %v3464 = vld [vmem:[#allocation11 + $0x328] sm:$0xff]
    %v3465 = vld [vmem:[#allocation11 + $0x330] sm:$0xff]
    %v3466 = vld [vmem:[#allocation11 + $0x338] sm:$0xff]
    %v3467 = vld [vmem:[#allocation11 + $0x340] sm:$0xff]
    %v3468 = vld [vmem:[#allocation11 + $0x348] sm:$0xff]
    %v3469 = vld [vmem:[#allocation11 + $0x350] sm:$0xff]
    %v3470 = vld [vmem:[#allocation11 + $0x358] sm:$0xff]
    %v3471 = vld [vmem:[#allocation11 + $0x360] sm:$0xff]
    %v3472 = vld [vmem:[#allocation11 + $0x368] sm:$0xff]
    %v3473 = vld [vmem:[#allocation11 + $0x370] sm:$0xff]
    %v3474 = vld [vmem:[#allocation11 + $0x378] sm:$0xff]
    %v3475 = vld [vmem:[#allocation11 + $0x380] sm:$0xff]
    %v3476 = vld [vmem:[#allocation11 + $0x388] sm:$0xff]
    %v3477 = vld [vmem:[#allocation11 + $0x390] sm:$0xff]
    %v3478 = vld [vmem:[#allocation11 + $0x398] sm:$0xff]
    %v3479 = vld [vmem:[#allocation11 + $0x3a0] sm:$0xff]
    %v3480 = vld [vmem:[#allocation11 + $0x3a8] sm:$0xff]
    %v3481 = vld [vmem:[#allocation11 + $0x3b0] sm:$0xff]
    %v3482 = vld [vmem:[#allocation11 + $0x3b8] sm:$0xff]
    %v3483 = vld [vmem:[#allocation11 + $0x3c0] sm:$0xff]
    %v3484 = vld [vmem:[#allocation11 + $0x3c8] sm:$0xff]
    %v3485 = vld [vmem:[#allocation11 + $0x3d0] sm:$0xff]
    %v3486 = vld [vmem:[#allocation11 + $0x3d8] sm:$0xff]
    %v3487 = vld [vmem:[#allocation11 + $0x3e0] sm:$0xff]
    %v3488 = vld [vmem:[#allocation11 + $0x3e8] sm:$0xff]
    %v3489 = vld [vmem:[#allocation11 + $0x3f0] sm:$0xff]
    %v3490 = vld [vmem:[#allocation11 + $0x3f8] sm:$0xff]
    %v3491 = vld [vmem:[#allocation13] sm:$0x3]
    %v3493 = vlaneseq
    %v3494 = vshrl.u32 %v3493, 7
    %v3495 = vsub.s32 0, %v3494
    %v3496 = vrot.slane %v3491, %v3495
    %v3497 = vlaneseq
    %v3498 = vshrl.u32 %v3497, 7
    %v3499 = vsub.s32 1, %v3498
    %v3500 = vrot.slane %v3491, %v3499
    %3503 = vmatprep.subr.mxu0 %v3364
    %3504 = vmatpush1.msra.mxu0 %v3363
    %3505 = vmatprep.subr.mxu0 %v3366
    %3506 = vmatpush1.msra.mxu0 %v3365
    %3507 = vmatprep.subr.mxu0 %v3368
    %3508 = vmatpush1.msra.mxu0 %v3367
    %3509 = vmatprep.subr.mxu0 %v3370
    %3510 = vmatpush1.msra.mxu0 %v3369
    %3511 = vmatprep.subr.mxu0 %v3372
    %3512 = vmatpush1.msra.mxu0 %v3371
    %3513 = vmatprep.subr.mxu0 %v3374
    %3514 = vmatpush1.msra.mxu0 %v3373
    %3515 = vmatprep.subr.mxu0 %v3376
    %3516 = vmatpush1.msra.mxu0 %v3375
    %3517 = vmatprep.subr.mxu0 %v3378
    %3518 = vmatpush1.msra.mxu0 %v3377
    %3519 = vmatprep.subr.mxu0 %v3380
    %3520 = vmatpush1.msra.mxu0 %v3379
    %3521 = vmatprep.subr.mxu0 %v3382
    %3522 = vmatpush1.msra.mxu0 %v3381
    %3523 = vmatprep.subr.mxu0 %v3384
    %3524 = vmatpush1.msra.mxu0 %v3383
    %3525 = vmatprep.subr.mxu0 %v3386
    %3526 = vmatpush1.msra.mxu0 %v3385
    %3527 = vmatprep.subr.mxu0 %v3388
    %3528 = vmatpush1.msra.mxu0 %v3387
    %3529 = vmatprep.subr.mxu0 %v3390
    %3530 = vmatpush1.msra.mxu0 %v3389
    %3531 = vmatprep.subr.mxu0 %v3392
    %3532 = vmatpush1.msra.mxu0 %v3391
    %3533 = vmatprep.subr.mxu0 %v3394
    %3534 = vmatpush1.msra.mxu0 %v3393
    %3535 = vmatprep.subr.mxu0 %v3396
    %3536 = vmatpush1.msra.mxu0 %v3395
    %3537 = vmatprep.subr.mxu0 %v3398
    %3538 = vmatpush1.msra.mxu0 %v3397
    %3539 = vmatprep.subr.mxu0 %v3400
    %3540 = vmatpush1.msra.mxu0 %v3399
    %3541 = vmatprep.subr.mxu0 %v3402
    %3542 = vmatpush1.msra.mxu0 %v3401
    %3543 = vmatprep.subr.mxu0 %v3404
    %3544 = vmatpush1.msra.mxu0 %v3403
    %3545 = vmatprep.subr.mxu0 %v3406
    %3546 = vmatpush1.msra.mxu0 %v3405
    %3547 = vmatprep.subr.mxu0 %v3408
    %3548 = vmatpush1.msra.mxu0 %v3407
    %3549 = vmatprep.subr.mxu0 %v3410
    %3550 = vmatpush1.msra.mxu0 %v3409
    %3551 = vmatprep.subr.mxu0 %v3412
    %3552 = vmatpush1.msra.mxu0 %v3411
    %3553 = vmatprep.subr.mxu0 %v3414
    %3554 = vmatpush1.msra.mxu0 %v3413
    %3555 = vmatprep.subr.mxu0 %v3416
    %3556 = vmatpush1.msra.mxu0 %v3415
    %3557 = vmatprep.subr.mxu0 %v3418
    %3558 = vmatpush1.msra.mxu0 %v3417
    %3559 = vmatprep.subr.mxu0 %v3420
    %3560 = vmatpush1.msra.mxu0 %v3419
    %3561 = vmatprep.subr.mxu0 %v3422
    %3562 = vmatpush1.msra.mxu0 %v3421
    %3563 = vmatprep.subr.mxu0 %v3424
    %3564 = vmatpush1.msra.mxu0 %v3423
    %3565 = vmatprep.subr.mxu0 %v3426
    %3566 = vmatpush1.msra.mxu0 %v3425
    %3567 = vmatprep.mubr.f32.mxu0 %v3300
    %3568 = vmatmul.mubr.f32.gmra.mrb[0].mxu0 %v3299
    %v3569 = vpop.f32.mrb[0].mxu0
    %v3570 = vadd.f32 %v3496, %v3569
    %v3571 = vpop.f32.mrb[0].mxu0
    %v3572 = vadd.f32 %v3500, %v3571
    %3573 = vmatprep.mubr.f32.mxu0 %v3304
    %3574 = vmatmul.mubr.f32.gmra.mrb[0].mxu0 %v3303
    %v3575 = vpop.f32.mrb[0].mxu0
    %v3576 = vadd.f32 %v3496, %v3575
    %v3577 = vpop.f32.mrb[0].mxu0
    %v3578 = vadd.f32 %v3500, %v3577
    %3579 = vmatprep.mubr.f32.mxu0 %v3308
    %3580 = vmatmul.mubr.f32.gmra.mrb[0].mxu0 %v3307
    %v3581 = vpop.f32.mrb[0].mxu0
    %v3582 = vadd.f32 %v3496, %v3581
    %v3583 = vpop.f32.mrb[0].mxu0
    %v3584 = vadd.f32 %v3500, %v3583
    %3585 = vmatprep.mubr.f32.mxu0 %v3312
    %3586 = vmatmul.mubr.f32.gmra.mrb[0].mxu0 %v3311
    %v3587 = vpop.f32.mrb[0].mxu0
    %v3588 = vadd.f32 %v3496, %v3587
    %v3589 = vpop.f32.mrb[0].mxu0
    %v3590 = vadd.f32 %v3500, %v3589
    %3591 = vmatprep.mubr.f32.mxu0 %v3316
    %3592 = vmatmul.mubr.f32.gmra.mrb[0].mxu0 %v3315
    %v3593 = vpop.f32.mrb[0].mxu0
    %v3594 = vadd.f32 %v3496, %v3593
    %v3595 = vpop.f32.mrb[0].mxu0
    %v3596 = vadd.f32 %v3500, %v3595
    %3597 = vmatprep.mubr.f32.mxu0 %v3320
    %3598 = vmatmul.mubr.f32.gmra.mrb[0].mxu0 %v3319
    %v3599 = vpop.f32.mrb[0].mxu0
    %v3600 = vadd.f32 %v3496, %v3599
    %v3601 = vpop.f32.mrb[0].mxu0
    %v3602 = vadd.f32 %v3500, %v3601
    %3603 = vmatprep.mubr.f32.mxu0 %v3324
    %3604 = vmatmul.mubr.f32.gmra.mrb[0].mxu0 %v3323
    %v3605 = vpop.f32.mrb[0].mxu0
    %v3606 = vadd.f32 %v3496, %v3605
    %v3607 = vpop.f32.mrb[0].mxu0
    %v3608 = vadd.f32 %v3500, %v3607
    %3609 = vmatprep.mubr.f32.mxu0 %v3328
    %3610 = vmatmul.mubr.f32.gmra.mrb[0].mxu0 %v3327
    %v3611 = vpop.f32.mrb[0].mxu0
    %v3612 = vadd.f32 %v3496, %v3611
    %v3613 = vpop.f32.mrb[0].mxu0
    %v3614 = vadd.f32 %v3500, %v3613
    %3615 = vmatprep.mubr.f32.mxu0 %v3332
    %3616 = vmatmul.mubr.f32.gmra.mrb[0].mxu0 %v3331
    %v3617 = vpop.f32.mrb[0].mxu0
    %v3618 = vadd.f32 %v3496, %v3617
    %v3619 = vpop.f32.mrb[0].mxu0
    %v3620 = vadd.f32 %v3500, %v3619
    %3621 = vmatprep.mubr.f32.mxu0 %v3336
    %3622 = vmatmul.mubr.f32.gmra.mrb[0].mxu0 %v3335
    %v3623 = vpop.f32.mrb[0].mxu0
    %v3624 = vadd.f32 %v3496, %v3623
    %v3625 = vpop.f32.mrb[0].mxu0
    %v3626 = vadd.f32 %v3500, %v3625
    %3627 = vmatprep.mubr.f32.mxu0 %v3340
    %3628 = vmatmul.mubr.f32.gmra.mrb[0].mxu0 %v3339
    %v3629 = vpop.f32.mrb[0].mxu0
    %v3630 = vadd.f32 %v3496, %v3629
    %v3631 = vpop.f32.mrb[0].mxu0
    %v3632 = vadd.f32 %v3500, %v3631
    %3633 = vmatprep.mubr.f32.mxu0 %v3344
    %3634 = vmatmul.mubr.f32.gmra.mrb[0].mxu0 %v3343
    %v3635 = vpop.f32.mrb[0].mxu0
    %v3636 = vadd.f32 %v3496, %v3635
    %v3637 = vpop.f32.mrb[0].mxu0
    %v3638 = vadd.f32 %v3500, %v3637
    %3639 = vmatprep.mubr.f32.mxu0 %v3348
    %3640 = vmatmul.mubr.f32.gmra.mrb[0].mxu0 %v3347
    %v3641 = vpop.f32.mrb[0].mxu0
    %v3642 = vadd.f32 %v3496, %v3641
    %v3643 = vpop.f32.mrb[0].mxu0
    %v3644 = vadd.f32 %v3500, %v3643
    %3645 = vmatprep.mubr.f32.mxu0 %v3352
    %3646 = vmatmul.mubr.f32.gmra.mrb[0].mxu0 %v3351
    %v3647 = vpop.f32.mrb[0].mxu0
    %v3648 = vadd.f32 %v3496, %v3647
    %v3649 = vpop.f32.mrb[0].mxu0
    %v3650 = vadd.f32 %v3500, %v3649
    %3651 = vmatprep.mubr.f32.mxu0 %v3356
    %3652 = vmatmul.mubr.f32.gmra.mrb[0].mxu0 %v3355
    %v3653 = vpop.f32.mrb[0].mxu0
    %v3654 = vadd.f32 %v3496, %v3653
    %v3655 = vpop.f32.mrb[0].mxu0
    %v3656 = vadd.f32 %v3500, %v3655
    %3657 = vmatprep.mubr.f32.mxu0 %v3360
    %3658 = vmatmul.mubr.f32.gmra.mrb[0].mxu0 %v3359
    %v3659 = vpop.f32.mrb[0].mxu0
    %v3660 = vadd.f32 %v3496, %v3659
    %v3661 = vpop.f32.mrb[0].mxu0
    %v3662 = vadd.f32 %v3500, %v3661
    %3663 = vdwg.mxu0
    %3664 = vmatprep.subr.mxu0 %v3428
    %3665 = vmatpush1.msra.mxu0 %v3427
    %3666 = vmatprep.subr.mxu0 %v3430
    %3667 = vmatpush1.msra.mxu0 %v3429
    %3668 = vmatprep.subr.mxu0 %v3432
    %3669 = vmatpush1.msra.mxu0 %v3431
    %3670 = vmatprep.subr.mxu0 %v3434
    %3671 = vmatpush1.msra.mxu0 %v3433
    %3672 = vmatprep.subr.mxu0 %v3436
    %3673 = vmatpush1.msra.mxu0 %v3435
    %3674 = vmatprep.subr.mxu0 %v3438
    %3675 = vmatpush1.msra.mxu0 %v3437
    %3676 = vmatprep.subr.mxu0 %v3440
    %3677 = vmatpush1.msra.mxu0 %v3439
    %3678 = vmatprep.subr.mxu0 %v3442
    %3679 = vmatpush1.msra.mxu0 %v3441
    %3680 = vmatprep.subr.mxu0 %v3444
    %3681 = vmatpush1.msra.mxu0 %v3443
    %3682 = vmatprep.subr.mxu0 %v3446
    %3683 = vmatpush1.msra.mxu0 %v3445
    %3684 = vmatprep.subr.mxu0 %v3448
    %3685 = vmatpush1.msra.mxu0 %v3447
    %3686 = vmatprep.subr.mxu0 %v3450
    %3687 = vmatpush1.msra.mxu0 %v3449
    %3688 = vmatprep.subr.mxu0 %v3452
    %3689 = vmatpush1.msra.mxu0 %v3451
    %3690 = vmatprep.subr.mxu0 %v3454
    %3691 = vmatpush1.msra.mxu0 %v3453
    %3692 = vmatprep.subr.mxu0 %v3456
    %3693 = vmatpush1.msra.mxu0 %v3455
    %3694 = vmatprep.subr.mxu0 %v3458
    %3695 = vmatpush1.msra.mxu0 %v3457
    %3696 = vmatprep.subr.mxu0 %v3460
    %3697 = vmatpush1.msra.mxu0 %v3459
    %3698 = vmatprep.subr.mxu0 %v3462
    %3699 = vmatpush1.msra.mxu0 %v3461
    %3700 = vmatprep.subr.mxu0 %v3464
    %3701 = vmatpush1.msra.mxu0 %v3463
    %3702 = vmatprep.subr.mxu0 %v3466
    %3703 = vmatpush1.msra.mxu0 %v3465
    %3704 = vmatprep.subr.mxu0 %v3468
    %3705 = vmatpush1.msra.mxu0 %v3467
    %3706 = vmatprep.subr.mxu0 %v3470
    %3707 = vmatpush1.msra.mxu0 %v3469
    %3708 = vmatprep.subr.mxu0 %v3472
    %3709 = vmatpush1.msra.mxu0 %v3471
    %3710 = vmatprep.subr.mxu0 %v3474
    %3711 = vmatpush1.msra.mxu0 %v3473
    %3712 = vmatprep.subr.mxu0 %v3476
    %3713 = vmatpush1.msra.mxu0 %v3475
    %3714 = vmatprep.subr.mxu0 %v3478
    %3715 = vmatpush1.msra.mxu0 %v3477
    %3716 = vmatprep.subr.mxu0 %v3480
    %3717 = vmatpush1.msra.mxu0 %v3479
    %3718 = vmatprep.subr.mxu0 %v3482
    %3719 = vmatpush1.msra.mxu0 %v3481
    %3720 = vmatprep.subr.mxu0 %v3484
    %3721 = vmatpush1.msra.mxu0 %v3483
    %3722 = vmatprep.subr.mxu0 %v3486
    %3723 = vmatpush1.msra.mxu0 %v3485
    %3724 = vmatprep.subr.mxu0 %v3488
    %3725 = vmatpush1.msra.mxu0 %v3487
    %3726 = vmatprep.subr.mxu0 %v3490
    %3727 = vmatpush1.msra.mxu0 %v3489
    %3728 = vmatprep.mubr.f32.mxu0 %v3302
    %3729 = vmatmul.mubr.f32.gmra.mrb[0].mxu0 %v3301
    %v3730 = vpop.f32.mrb[0].mxu0
    %v3731 = vadd.f32 %v3570, %v3730
    %v3732 = vpop.f32.mrb[0].mxu0
    %v3733 = vadd.f32 %v3572, %v3732
    %3734 = vmatprep.mubr.f32.mxu0 %v3306
    %3735 = vmatmul.mubr.f32.gmra.mrb[0].mxu0 %v3305
    %v3736 = vpop.f32.mrb[0].mxu0
    %v3737 = vadd.f32 %v3576, %v3736
    %v3738 = vpop.f32.mrb[0].mxu0
    %v3739 = vadd.f32 %v3578, %v3738
    %3740 = vmatprep.mubr.f32.mxu0 %v3310
    %3741 = vmatmul.mubr.f32.gmra.mrb[0].mxu0 %v3309
    %v3742 = vpop.f32.mrb[0].mxu0
    %v3743 = vadd.f32 %v3582, %v3742
    %v3744 = vpop.f32.mrb[0].mxu0
    %v3745 = vadd.f32 %v3584, %v3744
    %3746 = vmatprep.mubr.f32.mxu0 %v3314
    %3747 = vmatmul.mubr.f32.gmra.mrb[0].mxu0 %v3313
    %v3748 = vpop.f32.mrb[0].mxu0
    %v3749 = vadd.f32 %v3588, %v3748
    %v3750 = vpop.f32.mrb[0].mxu0
    %v3751 = vadd.f32 %v3590, %v3750
    %3752 = vmatprep.mubr.f32.mxu0 %v3318
    %3753 = vmatmul.mubr.f32.gmra.mrb[0].mxu0 %v3317
    %v3754 = vpop.f32.mrb[0].mxu0
    %v3755 = vadd.f32 %v3594, %v3754
    %v3756 = vpop.f32.mrb[0].mxu0
    %v3757 = vadd.f32 %v3596, %v3756
    %3758 = vmatprep.mubr.f32.mxu0 %v3322
    %3759 = vmatmul.mubr.f32.gmra.mrb[0].mxu0 %v3321
    %v3760 = vpop.f32.mrb[0].mxu0
    %v3761 = vadd.f32 %v3600, %v3760
    %v3762 = vpop.f32.mrb[0].mxu0
    %v3763 = vadd.f32 %v3602, %v3762
    %3764 = vmatprep.mubr.f32.mxu0 %v3326
    %3765 = vmatmul.mubr.f32.gmra.mrb[0].mxu0 %v3325
    %v3766 = vpop.f32.mrb[0].mxu0
    %v3767 = vadd.f32 %v3606, %v3766
    %v3768 = vpop.f32.mrb[0].mxu0
    %v3769 = vadd.f32 %v3608, %v3768
    %3770 = vmatprep.mubr.f32.mxu0 %v3330
    %3771 = vmatmul.mubr.f32.gmra.mrb[0].mxu0 %v3329
    %v3772 = vpop.f32.mrb[0].mxu0
    %v3773 = vadd.f32 %v3612, %v3772
    %v3774 = vpop.f32.mrb[0].mxu0
    %v3775 = vadd.f32 %v3614, %v3774
    %3776 = vmatprep.mubr.f32.mxu0 %v3334
    %3777 = vmatmul.mubr.f32.gmra.mrb[0].mxu0 %v3333
    %v3778 = vpop.f32.mrb[0].mxu0
    %v3779 = vadd.f32 %v3618, %v3778
    %v3780 = vpop.f32.mrb[0].mxu0
    %v3781 = vadd.f32 %v3620, %v3780
    %3782 = vmatprep.mubr.f32.mxu0 %v3338
    %3783 = vmatmul.mubr.f32.gmra.mrb[0].mxu0 %v3337
    %v3784 = vpop.f32.mrb[0].mxu0
    %v3785 = vadd.f32 %v3624, %v3784
    %v3786 = vpop.f32.mrb[0].mxu0
    %v3787 = vadd.f32 %v3626, %v3786
    %3788 = vmatprep.mubr.f32.mxu0 %v3342
    %3789 = vmatmul.mubr.f32.gmra.mrb[0].mxu0 %v3341
    %v3790 = vpop.f32.mrb[0].mxu0
    %v3791 = vadd.f32 %v3630, %v3790
    %v3792 = vpop.f32.mrb[0].mxu0
    %v3793 = vadd.f32 %v3632, %v3792
    %3794 = vmatprep.mubr.f32.mxu0 %v3346
    %3795 = vmatmul.mubr.f32.gmra.mrb[0].mxu0 %v3345
    %v3796 = vpop.f32.mrb[0].mxu0
    %v3797 = vadd.f32 %v3636, %v3796
    %v3798 = vpop.f32.mrb[0].mxu0
    %v3799 = vadd.f32 %v3638, %v3798
    %3800 = vmatprep.mubr.f32.mxu0 %v3350
    %3801 = vmatmul.mubr.f32.gmra.mrb[0].mxu0 %v3349
    %v3802 = vpop.f32.mrb[0].mxu0
    %v3803 = vadd.f32 %v3642, %v3802
    %v3804 = vpop.f32.mrb[0].mxu0
    %v3805 = vadd.f32 %v3644, %v3804
    %3806 = vmatprep.mubr.f32.mxu0 %v3354
    %3807 = vmatmul.mubr.f32.gmra.mrb[0].mxu0 %v3353
    %v3808 = vpop.f32.mrb[0].mxu0
    %v3809 = vadd.f32 %v3648, %v3808
    %v3810 = vpop.f32.mrb[0].mxu0
    %v3811 = vadd.f32 %v3650, %v3810
    %3812 = vmatprep.mubr.f32.mxu0 %v3358
    %3813 = vmatmul.mubr.f32.gmra.mrb[0].mxu0 %v3357
    %v3814 = vpop.f32.mrb[0].mxu0
    %v3815 = vadd.f32 %v3654, %v3814
    %v3816 = vpop.f32.mrb[0].mxu0
    %v3817 = vadd.f32 %v3656, %v3816
    %3818 = vmatprep.mubr.f32.mxu0 %v3362
    %3819 = vmatmul.mubr.f32.gmra.mrb[0].mxu0 %v3361
    %v3820 = vpop.f32.mrb[0].mxu0
    %v3821 = vadd.f32 %v3660, %v3820
    %v3822 = vpop.f32.mrb[0].mxu0
    %v3823 = vadd.f32 %v3662, %v3822
    %3824 = vdwg.mxu0
    %vm3825 = vcmp.gt.f32.partialorder %v3731, 0.0
    %vm3826 = vcmp.gt.f32.partialorder %v3733, 0.0
    %vm3827 = vcmp.gt.f32.partialorder %v3737, 0.0
    %vm3828 = vcmp.gt.f32.partialorder %v3739, 0.0
    %vm3829 = vcmp.gt.f32.partialorder %v3743, 0.0
    %vm3830 = vcmp.gt.f32.partialorder %v3745, 0.0
    %vm3831 = vcmp.gt.f32.partialorder %v3749, 0.0
    %vm3832 = vcmp.gt.f32.partialorder %v3751, 0.0
    %vm3833 = vcmp.gt.f32.partialorder %v3755, 0.0
    %vm3834 = vcmp.gt.f32.partialorder %v3757, 0.0
    %vm3835 = vcmp.gt.f32.partialorder %v3761, 0.0
    %vm3836 = vcmp.gt.f32.partialorder %v3763, 0.0
    %vm3837 = vcmp.gt.f32.partialorder %v3767, 0.0
    %vm3838 = vcmp.gt.f32.partialorder %v3769, 0.0
    %vm3839 = vcmp.gt.f32.partialorder %v3773, 0.0
    %vm3840 = vcmp.gt.f32.partialorder %v3775, 0.0
    %vm3841 = vcmp.gt.f32.partialorder %v3779, 0.0
    %vm3842 = vcmp.gt.f32.partialorder %v3781, 0.0
    %vm3843 = vcmp.gt.f32.partialorder %v3785, 0.0
    %vm3844 = vcmp.gt.f32.partialorder %v3787, 0.0
    %vm3845 = vcmp.gt.f32.partialorder %v3791, 0.0
    %vm3846 = vcmp.gt.f32.partialorder %v3793, 0.0
    %vm3847 = vcmp.gt.f32.partialorder %v3797, 0.0
    %vm3848 = vcmp.gt.f32.partialorder %v3799, 0.0
    %vm3849 = vcmp.gt.f32.partialorder %v3803, 0.0
    %vm3850 = vcmp.gt.f32.partialorder %v3805, 0.0
    %vm3851 = vcmp.gt.f32.partialorder %v3809, 0.0
    %vm3852 = vcmp.gt.f32.partialorder %v3811, 0.0
    %vm3853 = vcmp.gt.f32.partialorder %v3815, 0.0
    %vm3854 = vcmp.gt.f32.partialorder %v3817, 0.0
    %vm3855 = vcmp.gt.f32.partialorder %v3821, 0.0
    %vm3856 = vcmp.gt.f32.partialorder %v3823, 0.0
    %v3857 = vmul.f32 %v3731, 0.01
    %v3858 = vmul.f32 %v3733, 0.01
    %v3859 = vmul.f32 %v3737, 0.01
    %v3860 = vmul.f32 %v3739, 0.01
    %v3861 = vmul.f32 %v3743, 0.01
    %v3862 = vmul.f32 %v3745, 0.01
    %v3863 = vmul.f32 %v3749, 0.01
    %v3864 = vmul.f32 %v3751, 0.01
    %v3865 = vmul.f32 %v3755, 0.01
    %v3866 = vmul.f32 %v3757, 0.01
    %v3867 = vmul.f32 %v3761, 0.01
    %v3868 = vmul.f32 %v3763, 0.01
    %v3869 = vmul.f32 %v3767, 0.01
    %v3870 = vmul.f32 %v3769, 0.01
    %v3871 = vmul.f32 %v3773, 0.01
    %v3872 = vmul.f32 %v3775, 0.01
    %v3873 = vmul.f32 %v3779, 0.01
    %v3874 = vmul.f32 %v3781, 0.01
    %v3875 = vmul.f32 %v3785, 0.01
    %v3876 = vmul.f32 %v3787, 0.01
    %v3877 = vmul.f32 %v3791, 0.01
    %v3878 = vmul.f32 %v3793, 0.01
    %v3879 = vmul.f32 %v3797, 0.01
    %v3880 = vmul.f32 %v3799, 0.01
    %v3881 = vmul.f32 %v3803, 0.01
    %v3882 = vmul.f32 %v3805, 0.01
    %v3883 = vmul.f32 %v3809, 0.01
    %v3884 = vmul.f32 %v3811, 0.01
    %v3885 = vmul.f32 %v3815, 0.01
    %v3886 = vmul.f32 %v3817, 0.01
    %v3887 = vmul.f32 %v3821, 0.01
    %v3888 = vmul.f32 %v3823, 0.01
    %v3889 = vsel %vm3825, %v3731, %v3857
    %v3890 = vsel %vm3826, %v3733, %v3858
    %v3891 = vsel %vm3827, %v3737, %v3859
    %v3892 = vsel %vm3828, %v3739, %v3860
    %v3893 = vsel %vm3829, %v3743, %v3861
    %v3894 = vsel %vm3830, %v3745, %v3862
    %v3895 = vsel %vm3831, %v3749, %v3863
    %v3896 = vsel %vm3832, %v3751, %v3864
    %v3897 = vsel %vm3833, %v3755, %v3865
    %v3898 = vsel %vm3834, %v3757, %v3866
    %v3899 = vsel %vm3835, %v3761, %v3867
    %v3900 = vsel %vm3836, %v3763, %v3868
    %v3901 = vsel %vm3837, %v3767, %v3869
    %v3902 = vsel %vm3838, %v3769, %v3870
    %v3903 = vsel %vm3839, %v3773, %v3871
    %v3904 = vsel %vm3840, %v3775, %v3872
    %v3905 = vsel %vm3841, %v3779, %v3873
    %v3906 = vsel %vm3842, %v3781, %v3874
    %v3907 = vsel %vm3843, %v3785, %v3875
    %v3908 = vsel %vm3844, %v3787, %v3876
    %v3909 = vsel %vm3845, %v3791, %v3877
    %v3910 = vsel %vm3846, %v3793, %v3878
    %v3911 = vsel %vm3847, %v3797, %v3879
    %v3912 = vsel %vm3848, %v3799, %v3880
    %v3913 = vsel %vm3849, %v3803, %v3881
    %v3914 = vsel %vm3850, %v3805, %v3882
    %v3915 = vsel %vm3851, %v3809, %v3883
    %v3916 = vsel %vm3852, %v3811, %v3884
    %v3917 = vsel %vm3853, %v3815, %v3885
    %v3918 = vsel %vm3854, %v3817, %v3886
    %v3919 = vsel %vm3855, %v3821, %v3887
    %v3920 = vsel %vm3856, %v3823, %v3888
    %v3921 = vld [vmem:[#allocation14] sm:$0x3]
    %v3923 = vlaneseq
    %v3924 = vshrl.u32 %v3923, 7
    %v3925 = vsub.s32 0, %v3924
    %v3926 = vrot.slane %v3921, %v3925
    %v3927 = vlaneseq
    %v3928 = vshrl.u32 %v3927, 7
    %v3929 = vsub.s32 1, %v3928
    %v3930 = vrot.slane %v3921, %v3929
    %v3933 = vmul.f32 %v3889, %v3926
    %v3934 = vmul.f32 %v3890, %v3930
    %v3935 = vmul.f32 %v3891, %v3926
    %v3936 = vmul.f32 %v3892, %v3930
    %v3937 = vmul.f32 %v3893, %v3926
    %v3938 = vmul.f32 %v3894, %v3930
    %v3939 = vmul.f32 %v3895, %v3926
    %v3940 = vmul.f32 %v3896, %v3930
    %v3941 = vmul.f32 %v3897, %v3926
    %v3942 = vmul.f32 %v3898, %v3930
    %v3943 = vmul.f32 %v3899, %v3926
    %v3944 = vmul.f32 %v3900, %v3930
    %v3945 = vmul.f32 %v3901, %v3926
    %v3946 = vmul.f32 %v3902, %v3930
    %v3947 = vmul.f32 %v3903, %v3926
    %v3948 = vmul.f32 %v3904, %v3930
    %v3949 = vmul.f32 %v3905, %v3926
    %v3950 = vmul.f32 %v3906, %v3930
    %v3951 = vmul.f32 %v3907, %v3926
    %v3952 = vmul.f32 %v3908, %v3930
    %v3953 = vmul.f32 %v3909, %v3926
    %v3954 = vmul.f32 %v3910, %v3930
    %v3955 = vmul.f32 %v3911, %v3926
    %v3956 = vmul.f32 %v3912, %v3930
    %v3957 = vmul.f32 %v3913, %v3926
    %v3958 = vmul.f32 %v3914, %v3930
    %v3959 = vmul.f32 %v3915, %v3926
    %v3960 = vmul.f32 %v3916, %v3930
    %v3961 = vmul.f32 %v3917, %v3926
    %v3962 = vmul.f32 %v3918, %v3930
    %v3963 = vmul.f32 %v3919, %v3926
    %v3964 = vmul.f32 %v3920, %v3930
    %v3965 = vadd.f32 %v3933, %v3934
    %3966 = vadd.xlane.f32.xlu0 %v3965
    %v3967 = vpop.xlane.xlu0 %3966
    %v3968 = vadd.f32 %v3935, %v3936
    %3969 = vadd.xlane.f32.xlu0 %v3968
    %v3970 = vpop.xlane.xlu0 %3969
    %v3971 = vadd.f32 %v3937, %v3938
    %3972 = vadd.xlane.f32.xlu0 %v3971
    %v3973 = vpop.xlane.xlu0 %3972
    %v3974 = vadd.f32 %v3939, %v3940
    %3975 = vadd.xlane.f32.xlu0 %v3974
    %v3976 = vpop.xlane.xlu0 %3975
    %v3977 = vadd.f32 %v3941, %v3942
    %3978 = vadd.xlane.f32.xlu0 %v3977
    %v3979 = vpop.xlane.xlu0 %3978
    %v3980 = vadd.f32 %v3943, %v3944
    %3981 = vadd.xlane.f32.xlu0 %v3980
    %v3982 = vpop.xlane.xlu0 %3981
    %v3983 = vadd.f32 %v3945, %v3946
    %3984 = vadd.xlane.f32.xlu0 %v3983
    %v3985 = vpop.xlane.xlu0 %3984
    %v3986 = vadd.f32 %v3947, %v3948
    %3987 = vadd.xlane.f32.xlu0 %v3986
    %v3988 = vpop.xlane.xlu0 %3987
    %v3989 = vadd.f32 %v3949, %v3950
    %3990 = vadd.xlane.f32.xlu0 %v3989
    %v3991 = vpop.xlane.xlu0 %3990
    %v3992 = vadd.f32 %v3951, %v3952
    %3993 = vadd.xlane.f32.xlu0 %v3992
    %v3994 = vpop.xlane.xlu0 %3993
    %v3995 = vadd.f32 %v3953, %v3954
    %3996 = vadd.xlane.f32.xlu0 %v3995
    %v3997 = vpop.xlane.xlu0 %3996
    %v3998 = vadd.f32 %v3955, %v3956
    %3999 = vadd.xlane.f32.xlu0 %v3998
    %v4000 = vpop.xlane.xlu0 %3999
    %v4001 = vadd.f32 %v3957, %v3958
    %4002 = vadd.xlane.f32.xlu0 %v4001
    %v4003 = vpop.xlane.xlu0 %4002
    %v4004 = vadd.f32 %v3959, %v3960
    %4005 = vadd.xlane.f32.xlu0 %v4004
    %v4006 = vpop.xlane.xlu0 %4005
    %v4007 = vadd.f32 %v3961, %v3962
    %4008 = vadd.xlane.f32.xlu0 %v4007
    %v4009 = vpop.xlane.xlu0 %4008
    %v4010 = vadd.f32 %v3963, %v3964
    %4011 = vadd.xlane.f32.xlu0 %v4010
    %v4012 = vpop.xlane.xlu0 %4011
    %v4013 = vld [vmem:[#allocation2] sm:$0x1]
    %v4015 = vlaneseq
    %v4016 = vshrl.u32 %v4015, 7
    %v4017 = vsub.s32 0, %v4016
    %v4018 = vrot.slane %v4013, %v4017
    %v4020 = vadd.f32 %v3967, %v4018
    %v4021 = vadd.f32 %v3970, %v4018
    %v4022 = vadd.f32 %v3973, %v4018
    %v4023 = vadd.f32 %v3976, %v4018
    %v4024 = vadd.f32 %v3979, %v4018
    %v4025 = vadd.f32 %v3982, %v4018
    %v4026 = vadd.f32 %v3985, %v4018
    %v4027 = vadd.f32 %v3988, %v4018
    %v4028 = vadd.f32 %v3991, %v4018
    %v4029 = vadd.f32 %v3994, %v4018
    %v4030 = vadd.f32 %v3997, %v4018
    %v4031 = vadd.f32 %v4000, %v4018
    %v4032 = vadd.f32 %v4003, %v4018
    %v4033 = vadd.f32 %v4006, %v4018
    %v4034 = vadd.f32 %v4009, %v4018
    %v4035 = vadd.f32 %v4012, %v4018
    %v4036 = vsub.f32 0.0, %v4020
    %v4037 = vsub.f32 0.0, %v4021
    %v4038 = vsub.f32 0.0, %v4022
    %v4039 = vsub.f32 0.0, %v4023
    %v4040 = vsub.f32 0.0, %v4024
    %v4041 = vsub.f32 0.0, %v4025
    %v4042 = vsub.f32 0.0, %v4026
    %v4043 = vsub.f32 0.0, %v4027
    %v4044 = vsub.f32 0.0, %v4028
    %v4045 = vsub.f32 0.0, %v4029
    %v4046 = vsub.f32 0.0, %v4030
    %v4047 = vsub.f32 0.0, %v4031
    %v4048 = vsub.f32 0.0, %v4032
    %v4049 = vsub.f32 0.0, %v4033
    %v4050 = vsub.f32 0.0, %v4034
    %v4051 = vsub.f32 0.0, %v4035
    %v4052 = vmul.f32 %v4036, 1.442695
    %v4053 = vpow.pop %v4052
    %v4054 = vmul.f32 %v4037, 1.442695
    %v4055 = vpow.pop %v4054
    %v4056 = vmul.f32 %v4038, 1.442695
    %v4057 = vpow.pop %v4056
    %v4058 = vmul.f32 %v4039, 1.442695
    %v4059 = vpow.pop %v4058
    %v4060 = vmul.f32 %v4040, 1.442695
    %v4061 = vpow.pop %v4060
    %v4062 = vmul.f32 %v4041, 1.442695
    %v4063 = vpow.pop %v4062
    %v4064 = vmul.f32 %v4042, 1.442695
    %v4065 = vpow.pop %v4064
    %v4066 = vmul.f32 %v4043, 1.442695
    %v4067 = vpow.pop %v4066
    %v4068 = vmul.f32 %v4044, 1.442695
    %v4069 = vpow.pop %v4068
    %v4070 = vmul.f32 %v4045, 1.442695
    %v4071 = vpow.pop %v4070
    %v4072 = vmul.f32 %v4046, 1.442695
    %v4073 = vpow.pop %v4072
    %v4074 = vmul.f32 %v4047, 1.442695
    %v4075 = vpow.pop %v4074
    %v4076 = vmul.f32 %v4048, 1.442695
    %v4077 = vpow.pop %v4076
    %v4078 = vmul.f32 %v4049, 1.442695
    %v4079 = vpow.pop %v4078
    %v4080 = vmul.f32 %v4050, 1.442695
    %v4081 = vpow.pop %v4080
    %v4082 = vmul.f32 %v4051, 1.442695
    %v4083 = vpow.pop %v4082
    %v4084 = vadd.f32 %v4053, 1.0
    %v4085 = vadd.f32 %v4055, 1.0
    %v4086 = vadd.f32 %v4057, 1.0
    %v4087 = vadd.f32 %v4059, 1.0
    %v4088 = vadd.f32 %v4061, 1.0
    %v4089 = vadd.f32 %v4063, 1.0
    %v4090 = vadd.f32 %v4065, 1.0
    %v4091 = vadd.f32 %v4067, 1.0
    %v4092 = vadd.f32 %v4069, 1.0
    %v4093 = vadd.f32 %v4071, 1.0
    %v4094 = vadd.f32 %v4073, 1.0
    %v4095 = vadd.f32 %v4075, 1.0
    %v4096 = vadd.f32 %v4077, 1.0
    %v4097 = vadd.f32 %v4079, 1.0
    %v4098 = vadd.f32 %v4081, 1.0
    %v4099 = vadd.f32 %v4083, 1.0
    %v4100 = vrcp.pop %v4084
    %v4101 = vrcp.pop %v4085
    %v4102 = vrcp.pop %v4086
    %v4103 = vrcp.pop %v4087
    %v4104 = vrcp.pop %v4088
    %v4105 = vrcp.pop %v4089
    %v4106 = vrcp.pop %v4090
    %v4107 = vrcp.pop %v4091
    %v4108 = vrcp.pop %v4092
    %v4109 = vrcp.pop %v4093
    %v4110 = vrcp.pop %v4094
    %v4111 = vrcp.pop %v4095
    %v4112 = vrcp.pop %v4096
    %v4113 = vrcp.pop %v4097
    %v4114 = vrcp.pop %v4098
    %v4115 = vrcp.pop %v4099
    %vm4116 = vcmask 7168
    %4117 = vst.msk [vmem:[%s9] sm:$0xff] %vm4116, %v4100
    %4118 = vst.msk [vmem:[%s9 + $0x8] sm:$0xff] %vm4116, %v4101
    %4119 = vst.msk [vmem:[%s9 + $0x10] sm:$0xff] %vm4116, %v4102
    %4120 = vst.msk [vmem:[%s9 + $0x18] sm:$0xff] %vm4116, %v4103
    %4121 = vst.msk [vmem:[%s9 + $0x20] sm:$0xff] %vm4116, %v4104
    %4122 = vst.msk [vmem:[%s9 + $0x28] sm:$0xff] %vm4116, %v4105
    %4123 = vst.msk [vmem:[%s9 + $0x30] sm:$0xff] %vm4116, %v4106
    %4124 = vst.msk [vmem:[%s9 + $0x38] sm:$0xff] %vm4116, %v4107
    %4125 = vst.msk [vmem:[%s9 + $0x40] sm:$0xff] %vm4116, %v4108
    %4126 = vst.msk [vmem:[%s9 + $0x48] sm:$0xff] %vm4116, %v4109
    %4127 = vst.msk [vmem:[%s9 + $0x50] sm:$0xff] %vm4116, %v4110
    %4128 = vst.msk [vmem:[%s9 + $0x58] sm:$0xff] %vm4116, %v4111
    %4129 = vst.msk [vmem:[%s9 + $0x60] sm:$0xff] %vm4116, %v4112
    %4130 = vst.msk [vmem:[%s9 + $0x68] sm:$0xff] %vm4116, %v4113
    %4131 = vst.msk [vmem:[%s9 + $0x70] sm:$0xff] %vm4116, %v4114
    %4132 = vst.msk [vmem:[%s9 + $0x78] sm:$0xff] %vm4116, %v4115
    // Predicated region
    $region70: #{tpu_custom_call.1} parent=1 // pred_check
      _
    $region71: #{tpu_custom_call.1} parent=1 // pred_check_branch
      %4134 = sbr.rel (0) target = $region73
    $region72: #{tpu_custom_call.1} parent=1 // pred_region
      _
    $region73: #{tpu_custom_call.1} parent=1 // pred_fallthru
      _
    // Predicated region
    $region74: #{tpu_custom_call.1} parent=1 // pred_check
      _
    $region75: #{tpu_custom_call.1} parent=1 // pred_check_branch
      %4136 = sbr.rel (0) target = $region77
    $region76: #{tpu_custom_call.1} parent=1 // pred_region
      _
    $region77: #{tpu_custom_call.1} parent=1 // pred_fallthru
      _
    %4137 = vsyncpa [#allocation4], 1
    %4138 = vsyncpa [#allocation6], 1
    %4139 = vsyncpa [#allocation9], 1
    %4140 = vsyncpa [#allocation12], 1
    %4141 = vsyncpa [#allocation15], 1

</llo_original>
